<compile_context>
chip_gen: v6e
topology: v6e:2x2x1
jax: 0.10.0
libtpu: 0.0.40
codegen_flags: <defaults>
</compile_context>

<pallas_src>
import jax
import jax.numpy as jnp
from jax.experimental import pallas as pl
from jax.experimental.pallas import tpu as pltpu

# ---- model hyper-parameters (small synthetic sizes) ----------------------------------
B = 2            # batch
N = 8            # atoms per molecule
NODE_F = 16      # node_features
EDGE_F = 8       # edge_features
MSG_F = 16       # message_features
ADJ_D = 2        # adjacency_dim
OUT_D = 12       # output_dim
ITERS = 3        # message_steps
S2V_STEPS = 3    # set2vec processing steps
D_READ = 2 * NODE_F          # readout feature dim = cat([node_state, afm])


# ---- the kernel: whole batch in one invocation ----------------------------------------
def molgraph_kernel(afm_ref, mask_ref, edge_in_ref, bfm_rep_ref, maskj_ref,
                    edge_w_ref, prep_ref, wh_ref, bh_ref, wx_ref, bx_ref,
                    ws_ref, batt_ref, bagg_ref,
                    wl_ref, bl_ref, wo_ref, bo_ref,
                    out_ref):
    F, E, M = NODE_F, EDGE_F, MSG_F
    EM = E * M                                   # 128 lanes
    BN = B * N                                   # 16 rows (b, i)

    afm2 = afm_ref[...].reshape(BN, F)           # (16, 16)
    mask2 = mask_ref[...].reshape(BN, 1)         # (16, 1)   validity of atom i
    maskj = maskj_ref[...]                       # (128, 1)  validity of neighbour j at row (b,i,j)
    bfm_rep = bfm_rep_ref[...]                   # (128, 128) bfm[b,i,j,e] replicated over m lanes
    prep = prep_ref[...]                         # (128, 128) P[k,l] = (k%M == l%M)

    # ---------------- hoisted, loop-invariant MXU work (review opts #1 and #4) --------
    # edge_proj columns: [T (3*128) | bterm_rep (3*128) | att logits (3) | adj term (3)]
    edge_proj = jnp.dot(edge_in_ref[...], edge_w_ref[...],
                        preferred_element_type=jnp.float32)                         # (128, 774)
    gh_all = jnp.dot(afm2, wh_ref[...], preferred_element_type=jnp.float32)          # (16, 144)
    c_att = 2 * ITERS * EM
    att_all = jax.nn.sigmoid(edge_proj[:, c_att:c_att + ITERS] + batt_ref[...])      # (128, 3)
    adjterm_all = edge_proj[:, c_att + ITERS:c_att + 2 * ITERS]                      # (128, 3)

    node_state = afm2
    for it in range(ITERS):
        # NOTE: per the reference forward, node_state never feeds back; only the final
        # iteration's node_state reaches the readout.
        T_it = edge_proj[:, it * EM:(it + 1) * EM]                                   # (128,128)
        bterm_it = edge_proj[:, (ITERS + it) * EM:(ITERS + it + 1) * EM]             # (128,128)

        # message: msg[b,i,j,m] = sum_e bfm[b,i,j,e] * T[b,j,e,m] + bterm[b,j,m]
        prod = bfm_rep * T_it                                                        # dense VPU mult
        msg = jnp.dot(prod, prep, preferred_element_type=jnp.float32) + bterm_it     # (128,128), lane l holds msg[.., l % M]

        att = att_all[:, it:it + 1]                                                  # (128,1) edge attention
        # aggregation score: tanh(<att*msg, ws> + <adj, wa> + bagg)
        ws_it = ws_ref[:, it * EM:(it + 1) * EM]                                     # (1,128): ws in lanes [0,M), zeros elsewhere
        s_msg = jnp.sum(msg * ws_it, axis=-1, keepdims=True)                         # (128,1) = sum_m msg*ws
        score = jnp.tanh(att * s_msg + adjterm_all[:, it:it + 1]
                         + bagg_ref[:, it:it + 1])                                   # (128,1)

        # masked softmax over neighbours j (j = fastest-varying row index);
        # score is tanh-bounded so no max-subtraction is needed for stability.
        expd = jnp.exp(score) * maskj                                                # (128,1)
        denom = jnp.sum(expd.reshape(BN, N, 1), axis=1)                              # (16,1)
        wexp = att * expd                                                            # (128,1)
        num = jnp.sum((msg * wexp).reshape(BN, N, EM), axis=1)                       # (16,128)
        agg = (num * pl.reciprocal(denom + 1e-9, approx=True))[:, :M]                # (16,16)

        # ---------------- GRUUpdate (h_prev = original afm, as in the reference) -----
        gx = jnp.dot(agg, wx_ref[it], preferred_element_type=jnp.float32) + bx_ref[it]   # (16,48)
        gh = gh_all[:, it * 3 * F:(it + 1) * 3 * F] + bh_ref[it]                          # (16,48)
        r = jax.nn.sigmoid(gx[:, :F] + gh[:, :F])
        z = jax.nn.sigmoid(gx[:, F:2 * F] + gh[:, F:2 * F])
        n_ = jnp.tanh(gx[:, 2 * F:] + r * gh[:, 2 * F:])
        h_new = (1.0 - z) * n_ + z * afm2
        node_state = h_new * mask2                                                   # (16,16)

    # ---------------- Set2Vec readout over cat([node_state, afm]) ----------------------
    d = D_READ
    x3 = jnp.concatenate([node_state, afm2], axis=-1).reshape(B, N, d)               # (2,8,32)
    mask3 = mask_ref[...]                                                            # (2,8,1)
    wl = wl_ref[...]                                                                 # (96,128) fused [wlh; wlx]
    bl = bl_ref[...]
    q_star = jnp.zeros((B, 2 * d), jnp.float32)
    h = jnp.zeros((B, d), jnp.float32)
    c = jnp.zeros((B, d), jnp.float32)
    for _ in range(S2V_STEPS):
        gates = jnp.dot(jnp.concatenate([h, q_star], axis=-1), wl,
                        preferred_element_type=jnp.float32) + bl                     # (2,128) fused LSTM matmul
        i_g = jax.nn.sigmoid(gates[:, :d])
        f_g = jax.nn.sigmoid(gates[:, d:2 * d])
        g_g = jnp.tanh(gates[:, 2 * d:3 * d])
        o_g = jax.nn.sigmoid(gates[:, 3 * d:])
        c = f_g * c + i_g * g_g
        h = o_g * jnp.tanh(c)                                                        # query (2,32)
        logit = jnp.sum(x3 * h[:, None, :], axis=-1, keepdims=True)                  # (2,8,1)
        logit = logit + (mask3 - 1.0) * 1e9
        lmax = jnp.max(logit, axis=1, keepdims=True)
        wexp2 = jnp.exp(logit - lmax) * mask3
        a = wexp2 * pl.reciprocal(jnp.sum(wexp2, axis=1, keepdims=True) + 1e-9,
                                  approx=True)                                       # (2,8,1)
        r_vec = jnp.sum(a * x3, axis=1)                                              # (2,32)
        q_star = jnp.concatenate([h, r_vec], axis=-1)                                # (2,64)

    out_ref[...] = (jnp.dot(q_star, wo_ref[...], preferred_element_type=jnp.float32)
                    + bo_ref[...])                                                   # (2,12)


# ---- host-side parameter packing (fused / lane-friendly layouts) -----------------------
def _pack_params(p):
    F, E, M, A = NODE_F, EDGE_F, MSG_F, ADJ_D
    EM = E * M
    z = lambda r, c: jnp.zeros((r, c), jnp.float32)

    # T columns (afm_j side): [it*EM + e*M + m] = we[it, f, e*M+m]
    we_cat = jnp.concatenate([p["we"][it] for it in range(ITERS)], axis=1)           # (16, 384)
    # bias-term columns, replicated over the e lane-slots so msg stays lane-dense
    be_rep = jnp.tile(p["be"], (1, 1, E))                                            # (ITERS, 16, 128)
    be_cat = jnp.concatenate([be_rep[it] for it in range(ITERS)], axis=1)            # (16, 384)
    # per-iteration edge-attention / adjacency columns
    wj = jnp.stack([p["watt_j"][it, 0] for it in range(ITERS)], axis=1)              # (16, 3)
    wi = jnp.stack([p["watt_i"][it, 0] for it in range(ITERS)], axis=1)              # (16, 3)
    we_att = jnp.stack([p["watt_e"][it, 0] for it in range(ITERS)], axis=1)          # (8, 3)
    wa = jnp.stack([p["wa"][it, 0] for it in range(ITERS)], axis=1)                  # (2, 3)

    # fused per-edge weight; input rows are [afm_j (16) | afm_i (16) | bfm (8) | adj (2)]
    g_T = jnp.concatenate([we_cat, z(F + E + A, ITERS * EM)], axis=0)                # (42, 384)
    g_B = jnp.concatenate([be_cat, z(F + E + A, ITERS * EM)], axis=0)                # (42, 384)
    g_att = jnp.concatenate([wj, wi, we_att, z(A, ITERS)], axis=0)                   # (42, 3)
    g_adj = jnp.concatenate([z(2 * F + E, ITERS), wa], axis=0)                       # (42, 3)
    edge_w = jnp.concatenate([g_T, g_B, g_att, g_adj], axis=1)                       # (42, 774)

    # e-slot replication pattern for the MXU message contraction: P[k,l] = (k%M == l%M)
    prep = jnp.tile(jnp.eye(M, dtype=jnp.float32), (E, E))                           # (128, 128)

    wh_cat = jnp.concatenate([p["wh"][it] for it in range(ITERS)], axis=1)           # (16, 144)
    ws_pad = jnp.zeros((ITERS, EM), jnp.float32).at[:, :M].set(p["ws"][:, 0, :])
    ws_pad = ws_pad.reshape(1, ITERS * EM)                                           # (1, 384)

    wl_fused = jnp.concatenate([p["wlh"], p["wlx"]], axis=0)                         # (96, 128)

    return dict(edge_w=edge_w, prep=prep, wh_cat=wh_cat, bh=p["bh"],
                wx=p["wx"], bx=p["bx"], ws_pad=ws_pad,
                batt=p["batt"].reshape(1, ITERS), bagg=p["bagg"].reshape(1, ITERS),
                wl_fused=wl_fused, bl=p["bl"], wo=p["wo"], bo=p["bo"])


# ---- wrapper ---------------------------------------------------------------------------
def mol_graph_forward(afm, bfm, adj, mask, params):
    F, E, A, M = NODE_F, EDGE_F, ADJ_D, MSG_F
    BNN = B * N * N

    # host-side layout plumbing: per-edge rows (b,i,j), lane-dense inputs
    afm_j = jnp.broadcast_to(afm[:, None, :, :], (B, N, N, F)).reshape(BNN, F)
    afm_i = jnp.broadcast_to(afm[:, :, None, :], (B, N, N, F)).reshape(BNN, F)
    bfm_flat = bfm.reshape(BNN, E)
    adj_flat = adj.reshape(BNN, A)
    edge_in = jnp.concatenate([afm_j, afm_i, bfm_flat, adj_flat], axis=1)            # (128, 42)
    bfm_rep = jnp.repeat(bfm_flat, M, axis=1)                                        # (128, 128)
    maskj = jnp.broadcast_to(mask[:, None, :, :], (B, N, N, 1)).reshape(BNN, 1)      # (128, 1)

    pk = _pack_params(params)

    vmem = pl.BlockSpec(memory_space=pltpu.MemorySpace.VMEM)
    # Single invocation (no grid): the whole 2-molecule batch is one block.  For large
    # molecule batches, tile a leading "parallel" grid axis over molecule blocks instead.
    out = pl.pallas_call(
        molgraph_kernel,
        in_specs=[vmem] * 18,
        out_specs=vmem,
        out_shape=jax.ShapeDtypeStruct((B, OUT_D), jnp.float32),
    )(afm, mask, edge_in, bfm_rep, maskj,
      pk["edge_w"], pk["prep"], pk["wh_cat"], pk["bh"], pk["wx"], pk["bx"],
      pk["ws_pad"], pk["batt"], pk["bagg"],
      pk["wl_fused"], pk["bl"], pk["wo"], pk["bo"])
    return out                                                                       # (B, OUT_D)


def init_params(key):
    keys = jax.random.split(key, 18)
    nrm = lambda k, shape, s: (s * jax.random.normal(k, shape)).astype(jnp.float32)
    return dict(
        # reassociated edge-network weights: We[it, f, e*MSG_F + m], Be[it, f, m]
        we=nrm(keys[0], (ITERS, NODE_F, EDGE_F * MSG_F), 0.2),
        be=nrm(keys[1], (ITERS, NODE_F, MSG_F), 0.1),
        # edge-attention weights, lane-major
        watt_i=nrm(keys[2], (ITERS, 1, NODE_F), 0.2),
        watt_j=nrm(keys[3], (ITERS, 1, NODE_F), 0.2),
        watt_e=nrm(keys[4], (ITERS, 1, EDGE_F), 0.2),
        batt=nrm(keys[5], (ITERS,), 0.1),
        # aggregation weights
        ws=nrm(keys[6], (ITERS, 1, MSG_F), 0.2),
        wa=nrm(keys[7], (ITERS, 1, ADJ_D), 0.2),
        bagg=nrm(keys[8], (ITERS,), 0.1),
        # GRU update
        wx=nrm(keys[9], (ITERS, MSG_F, 3 * NODE_F), 0.2),
        wh=nrm(keys[10], (ITERS, NODE_F, 3 * NODE_F), 0.2),
        bx=nrm(keys[11], (ITERS, 1, 3 * NODE_F), 0.1),
        bh=nrm(keys[12], (ITERS, 1, 3 * NODE_F), 0.1),
        # Set2Vec readout (LSTM controller) + output head
        wlx=nrm(keys[13], (2 * D_READ, 4 * D_READ), 0.15),
        wlh=nrm(keys[14], (D_READ, 4 * D_READ), 0.15),
        bl=nrm(keys[15], (1, 4 * D_READ), 0.1),
        wo=nrm(keys[16], (2 * D_READ, OUT_D), 0.2),
        bo=nrm(keys[17], (1, OUT_D), 0.1),
    )


if __name__ == "__main__":
    key = jax.random.PRNGKey(0)
    k_afm, k_bfm, k_adj, k_par = jax.random.split(key, 4)

    afm = jax.random.normal(k_afm, (B, N, NODE_F), jnp.float32)
    bfm = jax.random.normal(k_bfm, (B, N, N, EDGE_F), jnp.float32)
    # symmetric-ish 0/1 adjacency channels
    adj_raw = jax.random.uniform(k_adj, (B, N, N, ADJ_D))
    adj = (0.5 * (adj_raw + jnp.swapaxes(adj_raw, 1, 2)) > 0.5).astype(jnp.float32)
    # atom mask: second molecule has its last two atoms masked out
    mask = jnp.ones((B, N, 1), jnp.float32)
    mask = mask.at[1, N - 2:, 0].set(0.0)

    params = init_params(k_par)

    out = jax.jit(mol_graph_forward)(afm, bfm, adj, mask, params)
    out = jax.block_until_ready(out)

    assert out.shape == (B, OUT_D), out.shape
    assert bool(jnp.all(jnp.isfinite(out)))
    print("KERNEL_OK")
</pallas_src>

<mosaic_0001>
module attributes {stable_mosaic.version = 11 : i64} {
  func.func @molgraph_kernel(%arg0: memref<2x8x16xf32, #tpu.memory_space<vmem>>, %arg1: memref<2x8x1xf32, #tpu.memory_space<vmem>>, %arg2: memref<128x42xf32, #tpu.memory_space<vmem>>, %arg3: memref<128x128xf32, #tpu.memory_space<vmem>>, %arg4: memref<128x1xf32, #tpu.memory_space<vmem>>, %arg5: memref<42x774xf32, #tpu.memory_space<vmem>>, %arg6: memref<128x128xf32, #tpu.memory_space<vmem>>, %arg7: memref<16x144xf32, #tpu.memory_space<vmem>>, %arg8: memref<3x1x48xf32, #tpu.memory_space<vmem>>, %arg9: memref<3x16x48xf32, #tpu.memory_space<vmem>>, %arg10: memref<3x1x48xf32, #tpu.memory_space<vmem>>, %arg11: memref<1x384xf32, #tpu.memory_space<vmem>>, %arg12: memref<1x3xf32, #tpu.memory_space<vmem>>, %arg13: memref<1x3xf32, #tpu.memory_space<vmem>>, %arg14: memref<96x128xf32, #tpu.memory_space<vmem>>, %arg15: memref<1x128xf32, #tpu.memory_space<vmem>>, %arg16: memref<64x12xf32, #tpu.memory_space<vmem>>, %arg17: memref<1x12xf32, #tpu.memory_space<vmem>>, %arg18: memref<2x12xf32, #tpu.memory_space<vmem>>) attributes {dimension_semantics = [], scalar_prefetch = 0 : i64, scratch_operands = 0 : i64, tpu.core_type = #tpu.core_type<tc>} {
    %c0 = arith.constant 0 : index
    %c0_0 = arith.constant 0 : index
    %c0_1 = arith.constant 0 : index
    %0 = vector.load %arg0[%c0, %c0_0, %c0_1] : memref<2x8x16xf32, #tpu.memory_space<vmem>>, vector<2x8x16xf32>
    %1 = vector.shape_cast %0 : vector<2x8x16xf32> to vector<16x16xf32>
    %c0_2 = arith.constant 0 : index
    %c0_3 = arith.constant 0 : index
    %c0_4 = arith.constant 0 : index
    %2 = vector.load %arg1[%c0_2, %c0_3, %c0_4] : memref<2x8x1xf32, #tpu.memory_space<vmem>>, vector<2x8x1xf32>
    %3 = vector.shape_cast %2 : vector<2x8x1xf32> to vector<16x1xf32>
    %c0_5 = arith.constant 0 : index
    %c0_6 = arith.constant 0 : index
    %4 = vector.load %arg4[%c0_5, %c0_6] : memref<128x1xf32, #tpu.memory_space<vmem>>, vector<128x1xf32>
    %c0_7 = arith.constant 0 : index
    %c0_8 = arith.constant 0 : index
    %5 = vector.load %arg3[%c0_7, %c0_8] : memref<128x128xf32, #tpu.memory_space<vmem>>, vector<128x128xf32>
    %c0_9 = arith.constant 0 : index
    %c0_10 = arith.constant 0 : index
    %6 = vector.load %arg6[%c0_9, %c0_10] : memref<128x128xf32, #tpu.memory_space<vmem>>, vector<128x128xf32>
    %c0_11 = arith.constant 0 : index
    %c0_12 = arith.constant 0 : index
    %7 = vector.load %arg2[%c0_11, %c0_12] : memref<128x42xf32, #tpu.memory_space<vmem>>, vector<128x42xf32>
    %c0_13 = arith.constant 0 : index
    %c0_14 = arith.constant 0 : index
    %8 = vector.load %arg5[%c0_13, %c0_14] : memref<42x774xf32, #tpu.memory_space<vmem>>, vector<42x774xf32>
    %cst = arith.constant dense<0.000000e+00> : vector<128x774xf32>
    %9 = tpu.matmul %7, %8, %cst {dimension_numbers = #tpu.dot_dimension_numbers<[1], [0], [0], [1], [0, 0, 1, 1], [], []>} : vector<128x42xf32>, vector<42x774xf32>, vector<128x774xf32> -> vector<128x774xf32>
    %c0_15 = arith.constant 0 : index
    %c0_16 = arith.constant 0 : index
    %10 = vector.load %arg7[%c0_15, %c0_16] : memref<16x144xf32, #tpu.memory_space<vmem>>, vector<16x144xf32>
    %cst_17 = arith.constant dense<0.000000e+00> : vector<16x144xf32>
    %11 = tpu.matmul %1, %10, %cst_17 {dimension_numbers = #tpu.dot_dimension_numbers<[1], [0], [0], [1], [0, 0, 1, 1], [], []>} : vector<16x16xf32>, vector<16x144xf32>, vector<16x144xf32> -> vector<16x144xf32>
    %12 = vector.extract_strided_slice %9 {offsets = [0, 768], sizes = [128, 3], strides = [1, 1]} : vector<128x774xf32> to vector<128x3xf32>
    %c0_18 = arith.constant 0 : index
    %c0_19 = arith.constant 0 : index
    %13 = vector.load %arg12[%c0_18, %c0_19] : memref<1x3xf32, #tpu.memory_space<vmem>>, vector<1x3xf32>
    %14 = vector.broadcast %13 : vector<1x3xf32> to vector<128x3xf32>
    %15 = arith.addf %12, %14 : vector<128x3xf32>
    %16 = arith.negf %15 : vector<128x3xf32>
    %17 = math.exp %16 : vector<128x3xf32>
    %cst_20 = arith.constant 1.000000e+00 : f32
    %18 = vector.broadcast %cst_20 : f32 to vector<128x3xf32>
    %19 = arith.addf %18, %17 : vector<128x3xf32>
    %20 = arith.divf %18, %19 : vector<128x3xf32>
    %21 = vector.extract_strided_slice %9 {offsets = [0, 771], sizes = [128, 3], strides = [1, 1]} : vector<128x774xf32> to vector<128x3xf32>
    %22 = vector.extract_strided_slice %9 {offsets = [0, 256], sizes = [128, 128], strides = [1, 1]} : vector<128x774xf32> to vector<128x128xf32>
    %23 = vector.extract_strided_slice %9 {offsets = [0, 640], sizes = [128, 128], strides = [1, 1]} : vector<128x774xf32> to vector<128x128xf32>
    %24 = arith.mulf %5, %22 : vector<128x128xf32>
    %cst_21 = arith.constant dense<0.000000e+00> : vector<128x128xf32>
    %25 = tpu.matmul %24, %6, %cst_21 {dimension_numbers = #tpu.dot_dimension_numbers<[1], [0], [0], [1], [0, 0, 1, 1], [], []>} : vector<128x128xf32>, vector<128x128xf32>, vector<128x128xf32> -> vector<128x128xf32>
    %26 = arith.addf %25, %23 : vector<128x128xf32>
    %27 = vector.extract_strided_slice %20 {offsets = [0, 2], sizes = [128, 1], strides = [1, 1]} : vector<128x3xf32> to vector<128x1xf32>
    %c0_22 = arith.constant 0 : index
    %c256 = arith.constant 256 : index
    %28 = vector.load %arg11[%c0_22, %c256] : memref<1x384xf32, #tpu.memory_space<vmem>>, vector<1x128xf32>
    %29 = vector.broadcast %28 : vector<1x128xf32> to vector<128x128xf32>
    %30 = arith.mulf %26, %29 : vector<128x128xf32>
    %cst_23 = arith.constant dense<0.000000e+00> : vector<128xf32>
    %31 = vector.multi_reduction <add>, %30, %cst_23 [1] : vector<128x128xf32> to vector<128xf32>
    %32 = vector.shape_cast %31 : vector<128xf32> to vector<128x1xf32>
    %33 = arith.mulf %27, %32 : vector<128x1xf32>
    %34 = vector.extract_strided_slice %21 {offsets = [0, 2], sizes = [128, 1], strides = [1, 1]} : vector<128x3xf32> to vector<128x1xf32>
    %35 = arith.addf %33, %34 : vector<128x1xf32>
    %c0_24 = arith.constant 0 : index
    %c2 = arith.constant 2 : index
    %36 = vector.load %arg13[%c0_24, %c2] : memref<1x3xf32, #tpu.memory_space<vmem>>, vector<1x1xf32>
    %37 = vector.broadcast %36 : vector<1x1xf32> to vector<128x1xf32>
    %38 = arith.addf %35, %37 : vector<128x1xf32>
    %39 = math.tanh %38 : vector<128x1xf32>
    %40 = math.exp %39 : vector<128x1xf32>
    %41 = arith.mulf %40, %4 : vector<128x1xf32>
    %42 = vector.shape_cast %41 : vector<128x1xf32> to vector<16x8x1xf32>
    %cst_25 = arith.constant dense<0.000000e+00> : vector<16x1xf32>
    %43 = vector.multi_reduction <add>, %42, %cst_25 [1] : vector<16x8x1xf32> to vector<16x1xf32>
    %44 = arith.mulf %27, %41 : vector<128x1xf32>
    %45 = vector.broadcast %44 : vector<128x1xf32> to vector<128x128xf32>
    %46 = arith.mulf %26, %45 : vector<128x128xf32>
    %47 = vector.shape_cast %46 : vector<128x128xf32> to vector<16x8x128xf32>
    %cst_26 = arith.constant dense<0.000000e+00> : vector<16x128xf32>
    %48 = vector.multi_reduction <add>, %47, %cst_26 [1] : vector<16x8x128xf32> to vector<16x128xf32>
    %cst_27 = arith.constant 9.99999971E-10 : f32
    %49 = vector.broadcast %cst_27 : f32 to vector<16x1xf32>
    %50 = arith.addf %43, %49 : vector<16x1xf32>
    %51 = tpu.reciprocal %50 {approx = true} : vector<16x1xf32> -> vector<16x1xf32>
    %52 = vector.broadcast %51 : vector<16x1xf32> to vector<16x128xf32>
    %53 = arith.mulf %48, %52 : vector<16x128xf32>
    %54 = vector.extract_strided_slice %53 {offsets = [0, 0], sizes = [16, 16], strides = [1, 1]} : vector<16x128xf32> to vector<16x16xf32>
    %c2_28 = arith.constant 2 : index
    %c0_29 = arith.constant 0 : index
    %c0_30 = arith.constant 0 : index
    %55 = vector.load %arg9[%c2_28, %c0_29, %c0_30] : memref<3x16x48xf32, #tpu.memory_space<vmem>>, vector<1x16x48xf32>
    %56 = vector.shape_cast %55 : vector<1x16x48xf32> to vector<16x48xf32>
    %cst_31 = arith.constant dense<0.000000e+00> : vector<16x48xf32>
    %57 = tpu.matmul %54, %56, %cst_31 {dimension_numbers = #tpu.dot_dimension_numbers<[1], [0], [0], [1], [0, 0, 1, 1], [], []>} : vector<16x16xf32>, vector<16x48xf32>, vector<16x48xf32> -> vector<16x48xf32>
    %c2_32 = arith.constant 2 : index
    %c0_33 = arith.constant 0 : index
    %c0_34 = arith.constant 0 : index
    %58 = vector.load %arg10[%c2_32, %c0_33, %c0_34] : memref<3x1x48xf32, #tpu.memory_space<vmem>>, vector<1x1x48xf32>
    %59 = vector.shape_cast %58 : vector<1x1x48xf32> to vector<1x48xf32>
    %60 = vector.broadcast %59 : vector<1x48xf32> to vector<16x48xf32>
    %61 = arith.addf %57, %60 : vector<16x48xf32>
    %62 = vector.extract_strided_slice %11 {offsets = [0, 96], sizes = [16, 48], strides = [1, 1]} : vector<16x144xf32> to vector<16x48xf32>
    %c2_35 = arith.constant 2 : index
    %c0_36 = arith.constant 0 : index
    %c0_37 = arith.constant 0 : index
    %63 = vector.load %arg8[%c2_35, %c0_36, %c0_37] : memref<3x1x48xf32, #tpu.memory_space<vmem>>, vector<1x1x48xf32>
    %64 = vector.shape_cast %63 : vector<1x1x48xf32> to vector<1x48xf32>
    %65 = vector.broadcast %64 : vector<1x48xf32> to vector<16x48xf32>
    %66 = arith.addf %62, %65 : vector<16x48xf32>
    %67 = vector.extract_strided_slice %61 {offsets = [0, 0], sizes = [16, 16], strides = [1, 1]} : vector<16x48xf32> to vector<16x16xf32>
    %68 = vector.extract_strided_slice %66 {offsets = [0, 0], sizes = [16, 16], strides = [1, 1]} : vector<16x48xf32> to vector<16x16xf32>
    %69 = arith.addf %67, %68 : vector<16x16xf32>
    %70 = arith.negf %69 : vector<16x16xf32>
    %71 = math.exp %70 : vector<16x16xf32>
    %cst_38 = arith.constant 1.000000e+00 : f32
    %72 = vector.broadcast %cst_38 : f32 to vector<16x16xf32>
    %73 = arith.addf %72, %71 : vector<16x16xf32>
    %74 = arith.divf %72, %73 : vector<16x16xf32>
    %75 = vector.extract_strided_slice %61 {offsets = [0, 16], sizes = [16, 16], strides = [1, 1]} : vector<16x48xf32> to vector<16x16xf32>
    %76 = vector.extract_strided_slice %66 {offsets = [0, 16], sizes = [16, 16], strides = [1, 1]} : vector<16x48xf32> to vector<16x16xf32>
    %77 = arith.addf %75, %76 : vector<16x16xf32>
    %78 = arith.negf %77 : vector<16x16xf32>
    %79 = math.exp %78 : vector<16x16xf32>
    %cst_39 = arith.constant 1.000000e+00 : f32
    %80 = vector.broadcast %cst_39 : f32 to vector<16x16xf32>
    %81 = arith.addf %80, %79 : vector<16x16xf32>
    %82 = arith.divf %80, %81 : vector<16x16xf32>
    %83 = vector.extract_strided_slice %61 {offsets = [0, 32], sizes = [16, 16], strides = [1, 1]} : vector<16x48xf32> to vector<16x16xf32>
    %84 = vector.extract_strided_slice %66 {offsets = [0, 32], sizes = [16, 16], strides = [1, 1]} : vector<16x48xf32> to vector<16x16xf32>
    %85 = arith.mulf %74, %84 : vector<16x16xf32>
    %86 = arith.addf %83, %85 : vector<16x16xf32>
    %87 = math.tanh %86 : vector<16x16xf32>
    %cst_40 = arith.constant 1.000000e+00 : f32
    %88 = vector.broadcast %cst_40 : f32 to vector<16x16xf32>
    %89 = arith.subf %88, %82 : vector<16x16xf32>
    %90 = arith.mulf %89, %87 : vector<16x16xf32>
    %91 = arith.mulf %82, %1 : vector<16x16xf32>
    %92 = arith.addf %90, %91 : vector<16x16xf32>
    %93 = vector.broadcast %3 : vector<16x1xf32> to vector<16x16xf32>
    %94 = arith.mulf %92, %93 : vector<16x16xf32>
    %95 = tpu.concatenate %94, %1 in 1 : vector<16x16xf32>, vector<16x16xf32> -> vector<16x32xf32>
    %96 = vector.shape_cast %95 : vector<16x32xf32> to vector<2x8x32xf32>
    %c0_41 = arith.constant 0 : index
    %c0_42 = arith.constant 0 : index
    %c0_43 = arith.constant 0 : index
    %97 = vector.load %arg1[%c0_41, %c0_42, %c0_43] : memref<2x8x1xf32, #tpu.memory_space<vmem>>, vector<2x8x1xf32>
    %c0_44 = arith.constant 0 : index
    %c0_45 = arith.constant 0 : index
    %98 = vector.load %arg14[%c0_44, %c0_45] : memref<96x128xf32, #tpu.memory_space<vmem>>, vector<96x128xf32>
    %c0_46 = arith.constant 0 : index
    %c0_47 = arith.constant 0 : index
    %99 = vector.load %arg15[%c0_46, %c0_47] : memref<1x128xf32, #tpu.memory_space<vmem>>, vector<1x128xf32>
    %cst_48 = arith.constant 0.000000e+00 : f32
    %100 = vector.broadcast %cst_48 : f32 to vector<2x64xf32>
    %cst_49 = arith.constant 0.000000e+00 : f32
    %101 = vector.broadcast %cst_49 : f32 to vector<2x32xf32>
    %cst_50 = arith.constant 0.000000e+00 : f32
    %102 = vector.broadcast %cst_50 : f32 to vector<2x32xf32>
    %103 = tpu.concatenate %101, %100 in 1 : vector<2x32xf32>, vector<2x64xf32> -> vector<2x96xf32>
    %cst_51 = arith.constant dense<0.000000e+00> : vector<2x128xf32>
    %104 = tpu.matmul %103, %98, %cst_51 {dimension_numbers = #tpu.dot_dimension_numbers<[1], [0], [0], [1], [0, 0, 1, 1], [], []>} : vector<2x96xf32>, vector<96x128xf32>, vector<2x128xf32> -> vector<2x128xf32>
    %105 = vector.broadcast %99 : vector<1x128xf32> to vector<2x128xf32>
    %106 = arith.addf %104, %105 : vector<2x128xf32>
    %107 = vector.extract_strided_slice %106 {offsets = [0, 0], sizes = [2, 32], strides = [1, 1]} : vector<2x128xf32> to vector<2x32xf32>
    %108 = arith.negf %107 : vector<2x32xf32>
    %109 = math.exp %108 : vector<2x32xf32>
    %cst_52 = arith.constant 1.000000e+00 : f32
    %110 = vector.broadcast %cst_52 : f32 to vector<2x32xf32>
    %111 = arith.addf %110, %109 : vector<2x32xf32>
    %112 = arith.divf %110, %111 : vector<2x32xf32>
    %113 = vector.extract_strided_slice %106 {offsets = [0, 32], sizes = [2, 32], strides = [1, 1]} : vector<2x128xf32> to vector<2x32xf32>
    %114 = arith.negf %113 : vector<2x32xf32>
    %115 = math.exp %114 : vector<2x32xf32>
    %cst_53 = arith.constant 1.000000e+00 : f32
    %116 = vector.broadcast %cst_53 : f32 to vector<2x32xf32>
    %117 = arith.addf %116, %115 : vector<2x32xf32>
    %118 = arith.divf %116, %117 : vector<2x32xf32>
    %119 = vector.extract_strided_slice %106 {offsets = [0, 64], sizes = [2, 32], strides = [1, 1]} : vector<2x128xf32> to vector<2x32xf32>
    %120 = math.tanh %119 : vector<2x32xf32>
    %121 = vector.extract_strided_slice %106 {offsets = [0, 96], sizes = [2, 32], strides = [1, 1]} : vector<2x128xf32> to vector<2x32xf32>
    %122 = arith.negf %121 : vector<2x32xf32>
    %123 = math.exp %122 : vector<2x32xf32>
    %cst_54 = arith.constant 1.000000e+00 : f32
    %124 = vector.broadcast %cst_54 : f32 to vector<2x32xf32>
    %125 = arith.addf %124, %123 : vector<2x32xf32>
    %126 = arith.divf %124, %125 : vector<2x32xf32>
    %127 = arith.mulf %118, %102 : vector<2x32xf32>
    %128 = arith.mulf %112, %120 : vector<2x32xf32>
    %129 = arith.addf %127, %128 : vector<2x32xf32>
    %130 = math.tanh %129 : vector<2x32xf32>
    %131 = arith.mulf %126, %130 : vector<2x32xf32>
    %132 = vector.shape_cast %131 : vector<2x32xf32> to vector<2x1x32xf32>
    %133 = vector.broadcast %132 : vector<2x1x32xf32> to vector<2x8x32xf32>
    %134 = arith.mulf %96, %133 : vector<2x8x32xf32>
    %cst_55 = arith.constant dense<0.000000e+00> : vector<2x8xf32>
    %135 = vector.multi_reduction <add>, %134, %cst_55 [2] : vector<2x8x32xf32> to vector<2x8xf32>
    %136 = vector.shape_cast %135 : vector<2x8xf32> to vector<2x8x1xf32>
    %cst_56 = arith.constant 1.000000e+00 : f32
    %137 = vector.broadcast %cst_56 : f32 to vector<2x8x1xf32>
    %138 = arith.subf %97, %137 : vector<2x8x1xf32>
    %cst_57 = arith.constant 1.000000e+09 : f32
    %139 = vector.broadcast %cst_57 : f32 to vector<2x8x1xf32>
    %140 = arith.mulf %138, %139 : vector<2x8x1xf32>
    %141 = arith.addf %136, %140 : vector<2x8x1xf32>
    %cst_58 = arith.constant dense<0xFF800000> : vector<2x1xf32>
    %142 = vector.multi_reduction <maximumf>, %141, %cst_58 [1] : vector<2x8x1xf32> to vector<2x1xf32>
    %143 = vector.shape_cast %142 : vector<2x1xf32> to vector<2x1x1xf32>
    %144 = vector.broadcast %143 : vector<2x1x1xf32> to vector<2x8x1xf32>
    %145 = arith.subf %141, %144 : vector<2x8x1xf32>
    %146 = math.exp %145 : vector<2x8x1xf32>
    %147 = arith.mulf %146, %97 : vector<2x8x1xf32>
    %cst_59 = arith.constant dense<0.000000e+00> : vector<2x1xf32>
    %148 = vector.multi_reduction <add>, %147, %cst_59 [1] : vector<2x8x1xf32> to vector<2x1xf32>
    %149 = vector.shape_cast %148 : vector<2x1xf32> to vector<2x1x1xf32>
    %cst_60 = arith.constant 9.99999971E-10 : f32
    %150 = vector.broadcast %cst_60 : f32 to vector<2x1x1xf32>
    %151 = arith.addf %149, %150 : vector<2x1x1xf32>
    %152 = tpu.reciprocal %151 {approx = true} : vector<2x1x1xf32> -> vector<2x1x1xf32>
    %153 = vector.broadcast %152 : vector<2x1x1xf32> to vector<2x8x1xf32>
    %154 = arith.mulf %147, %153 : vector<2x8x1xf32>
    %155 = vector.broadcast %154 : vector<2x8x1xf32> to vector<2x8x32xf32>
    %156 = arith.mulf %155, %96 : vector<2x8x32xf32>
    %cst_61 = arith.constant dense<0.000000e+00> : vector<2x32xf32>
    %157 = vector.multi_reduction <add>, %156, %cst_61 [1] : vector<2x8x32xf32> to vector<2x32xf32>
    %158 = tpu.concatenate %131, %157 in 1 : vector<2x32xf32>, vector<2x32xf32> -> vector<2x64xf32>
    %159 = tpu.concatenate %131, %158 in 1 : vector<2x32xf32>, vector<2x64xf32> -> vector<2x96xf32>
    %cst_62 = arith.constant dense<0.000000e+00> : vector<2x128xf32>
    %160 = tpu.matmul %159, %98, %cst_62 {dimension_numbers = #tpu.dot_dimension_numbers<[1], [0], [0], [1], [0, 0, 1, 1], [], []>} : vector<2x96xf32>, vector<96x128xf32>, vector<2x128xf32> -> vector<2x128xf32>
    %161 = vector.broadcast %99 : vector<1x128xf32> to vector<2x128xf32>
    %162 = arith.addf %160, %161 : vector<2x128xf32>
    %163 = vector.extract_strided_slice %162 {offsets = [0, 0], sizes = [2, 32], strides = [1, 1]} : vector<2x128xf32> to vector<2x32xf32>
    %164 = arith.negf %163 : vector<2x32xf32>
    %165 = math.exp %164 : vector<2x32xf32>
    %cst_63 = arith.constant 1.000000e+00 : f32
    %166 = vector.broadcast %cst_63 : f32 to vector<2x32xf32>
    %167 = arith.addf %166, %165 : vector<2x32xf32>
    %168 = arith.divf %166, %167 : vector<2x32xf32>
    %169 = vector.extract_strided_slice %162 {offsets = [0, 32], sizes = [2, 32], strides = [1, 1]} : vector<2x128xf32> to vector<2x32xf32>
    %170 = arith.negf %169 : vector<2x32xf32>
    %171 = math.exp %170 : vector<2x32xf32>
    %cst_64 = arith.constant 1.000000e+00 : f32
    %172 = vector.broadcast %cst_64 : f32 to vector<2x32xf32>
    %173 = arith.addf %172, %171 : vector<2x32xf32>
    %174 = arith.divf %172, %173 : vector<2x32xf32>
    %175 = vector.extract_strided_slice %162 {offsets = [0, 64], sizes = [2, 32], strides = [1, 1]} : vector<2x128xf32> to vector<2x32xf32>
    %176 = math.tanh %175 : vector<2x32xf32>
    %177 = vector.extract_strided_slice %162 {offsets = [0, 96], sizes = [2, 32], strides = [1, 1]} : vector<2x128xf32> to vector<2x32xf32>
    %178 = arith.negf %177 : vector<2x32xf32>
    %179 = math.exp %178 : vector<2x32xf32>
    %cst_65 = arith.constant 1.000000e+00 : f32
    %180 = vector.broadcast %cst_65 : f32 to vector<2x32xf32>
    %181 = arith.addf %180, %179 : vector<2x32xf32>
    %182 = arith.divf %180, %181 : vector<2x32xf32>
    %183 = arith.mulf %174, %129 : vector<2x32xf32>
    %184 = arith.mulf %168, %176 : vector<2x32xf32>
    %185 = arith.addf %183, %184 : vector<2x32xf32>
    %186 = math.tanh %185 : vector<2x32xf32>
    %187 = arith.mulf %182, %186 : vector<2x32xf32>
    %188 = vector.shape_cast %187 : vector<2x32xf32> to vector<2x1x32xf32>
    %189 = vector.broadcast %188 : vector<2x1x32xf32> to vector<2x8x32xf32>
    %190 = arith.mulf %96, %189 : vector<2x8x32xf32>
    %cst_66 = arith.constant dense<0.000000e+00> : vector<2x8xf32>
    %191 = vector.multi_reduction <add>, %190, %cst_66 [2] : vector<2x8x32xf32> to vector<2x8xf32>
    %192 = vector.shape_cast %191 : vector<2x8xf32> to vector<2x8x1xf32>
    %cst_67 = arith.constant 1.000000e+00 : f32
    %193 = vector.broadcast %cst_67 : f32 to vector<2x8x1xf32>
    %194 = arith.subf %97, %193 : vector<2x8x1xf32>
    %cst_68 = arith.constant 1.000000e+09 : f32
    %195 = vector.broadcast %cst_68 : f32 to vector<2x8x1xf32>
    %196 = arith.mulf %194, %195 : vector<2x8x1xf32>
    %197 = arith.addf %192, %196 : vector<2x8x1xf32>
    %cst_69 = arith.constant dense<0xFF800000> : vector<2x1xf32>
    %198 = vector.multi_reduction <maximumf>, %197, %cst_69 [1] : vector<2x8x1xf32> to vector<2x1xf32>
    %199 = vector.shape_cast %198 : vector<2x1xf32> to vector<2x1x1xf32>
    %200 = vector.broadcast %199 : vector<2x1x1xf32> to vector<2x8x1xf32>
    %201 = arith.subf %197, %200 : vector<2x8x1xf32>
    %202 = math.exp %201 : vector<2x8x1xf32>
    %203 = arith.mulf %202, %97 : vector<2x8x1xf32>
    %cst_70 = arith.constant dense<0.000000e+00> : vector<2x1xf32>
    %204 = vector.multi_reduction <add>, %203, %cst_70 [1] : vector<2x8x1xf32> to vector<2x1xf32>
    %205 = vector.shape_cast %204 : vector<2x1xf32> to vector<2x1x1xf32>
    %cst_71 = arith.constant 9.99999971E-10 : f32
    %206 = vector.broadcast %cst_71 : f32 to vector<2x1x1xf32>
    %207 = arith.addf %205, %206 : vector<2x1x1xf32>
    %208 = tpu.reciprocal %207 {approx = true} : vector<2x1x1xf32> -> vector<2x1x1xf32>
    %209 = vector.broadcast %208 : vector<2x1x1xf32> to vector<2x8x1xf32>
    %210 = arith.mulf %203, %209 : vector<2x8x1xf32>
    %211 = vector.broadcast %210 : vector<2x8x1xf32> to vector<2x8x32xf32>
    %212 = arith.mulf %211, %96 : vector<2x8x32xf32>
    %cst_72 = arith.constant dense<0.000000e+00> : vector<2x32xf32>
    %213 = vector.multi_reduction <add>, %212, %cst_72 [1] : vector<2x8x32xf32> to vector<2x32xf32>
    %214 = tpu.concatenate %187, %213 in 1 : vector<2x32xf32>, vector<2x32xf32> -> vector<2x64xf32>
    %215 = tpu.concatenate %187, %214 in 1 : vector<2x32xf32>, vector<2x64xf32> -> vector<2x96xf32>
    %cst_73 = arith.constant dense<0.000000e+00> : vector<2x128xf32>
    %216 = tpu.matmul %215, %98, %cst_73 {dimension_numbers = #tpu.dot_dimension_numbers<[1], [0], [0], [1], [0, 0, 1, 1], [], []>} : vector<2x96xf32>, vector<96x128xf32>, vector<2x128xf32> -> vector<2x128xf32>
    %217 = vector.broadcast %99 : vector<1x128xf32> to vector<2x128xf32>
    %218 = arith.addf %216, %217 : vector<2x128xf32>
    %219 = vector.extract_strided_slice %218 {offsets = [0, 0], sizes = [2, 32], strides = [1, 1]} : vector<2x128xf32> to vector<2x32xf32>
    %220 = arith.negf %219 : vector<2x32xf32>
    %221 = math.exp %220 : vector<2x32xf32>
    %cst_74 = arith.constant 1.000000e+00 : f32
    %222 = vector.broadcast %cst_74 : f32 to vector<2x32xf32>
    %223 = arith.addf %222, %221 : vector<2x32xf32>
    %224 = arith.divf %222, %223 : vector<2x32xf32>
    %225 = vector.extract_strided_slice %218 {offsets = [0, 32], sizes = [2, 32], strides = [1, 1]} : vector<2x128xf32> to vector<2x32xf32>
    %226 = arith.negf %225 : vector<2x32xf32>
    %227 = math.exp %226 : vector<2x32xf32>
    %cst_75 = arith.constant 1.000000e+00 : f32
    %228 = vector.broadcast %cst_75 : f32 to vector<2x32xf32>
    %229 = arith.addf %228, %227 : vector<2x32xf32>
    %230 = arith.divf %228, %229 : vector<2x32xf32>
    %231 = vector.extract_strided_slice %218 {offsets = [0, 64], sizes = [2, 32], strides = [1, 1]} : vector<2x128xf32> to vector<2x32xf32>
    %232 = math.tanh %231 : vector<2x32xf32>
    %233 = vector.extract_strided_slice %218 {offsets = [0, 96], sizes = [2, 32], strides = [1, 1]} : vector<2x128xf32> to vector<2x32xf32>
    %234 = arith.negf %233 : vector<2x32xf32>
    %235 = math.exp %234 : vector<2x32xf32>
    %cst_76 = arith.constant 1.000000e+00 : f32
    %236 = vector.broadcast %cst_76 : f32 to vector<2x32xf32>
    %237 = arith.addf %236, %235 : vector<2x32xf32>
    %238 = arith.divf %236, %237 : vector<2x32xf32>
    %239 = arith.mulf %230, %185 : vector<2x32xf32>
    %240 = arith.mulf %224, %232 : vector<2x32xf32>
    %241 = arith.addf %239, %240 : vector<2x32xf32>
    %242 = math.tanh %241 : vector<2x32xf32>
    %243 = arith.mulf %238, %242 : vector<2x32xf32>
    %244 = vector.shape_cast %243 : vector<2x32xf32> to vector<2x1x32xf32>
    %245 = vector.broadcast %244 : vector<2x1x32xf32> to vector<2x8x32xf32>
    %246 = arith.mulf %96, %245 : vector<2x8x32xf32>
    %cst_77 = arith.constant dense<0.000000e+00> : vector<2x8xf32>
    %247 = vector.multi_reduction <add>, %246, %cst_77 [2] : vector<2x8x32xf32> to vector<2x8xf32>
    %248 = vector.shape_cast %247 : vector<2x8xf32> to vector<2x8x1xf32>
    %cst_78 = arith.constant 1.000000e+00 : f32
    %249 = vector.broadcast %cst_78 : f32 to vector<2x8x1xf32>
    %250 = arith.subf %97, %249 : vector<2x8x1xf32>
    %cst_79 = arith.constant 1.000000e+09 : f32
    %251 = vector.broadcast %cst_79 : f32 to vector<2x8x1xf32>
    %252 = arith.mulf %250, %251 : vector<2x8x1xf32>
    %253 = arith.addf %248, %252 : vector<2x8x1xf32>
    %cst_80 = arith.constant dense<0xFF800000> : vector<2x1xf32>
    %254 = vector.multi_reduction <maximumf>, %253, %cst_80 [1] : vector<2x8x1xf32> to vector<2x1xf32>
    %255 = vector.shape_cast %254 : vector<2x1xf32> to vector<2x1x1xf32>
    %256 = vector.broadcast %255 : vector<2x1x1xf32> to vector<2x8x1xf32>
    %257 = arith.subf %253, %256 : vector<2x8x1xf32>
    %258 = math.exp %257 : vector<2x8x1xf32>
    %259 = arith.mulf %258, %97 : vector<2x8x1xf32>
    %cst_81 = arith.constant dense<0.000000e+00> : vector<2x1xf32>
    %260 = vector.multi_reduction <add>, %259, %cst_81 [1] : vector<2x8x1xf32> to vector<2x1xf32>
    %261 = vector.shape_cast %260 : vector<2x1xf32> to vector<2x1x1xf32>
    %cst_82 = arith.constant 9.99999971E-10 : f32
    %262 = vector.broadcast %cst_82 : f32 to vector<2x1x1xf32>
    %263 = arith.addf %261, %262 : vector<2x1x1xf32>
    %264 = tpu.reciprocal %263 {approx = true} : vector<2x1x1xf32> -> vector<2x1x1xf32>
    %265 = vector.broadcast %264 : vector<2x1x1xf32> to vector<2x8x1xf32>
    %266 = arith.mulf %259, %265 : vector<2x8x1xf32>
    %267 = vector.broadcast %266 : vector<2x8x1xf32> to vector<2x8x32xf32>
    %268 = arith.mulf %267, %96 : vector<2x8x32xf32>
    %cst_83 = arith.constant dense<0.000000e+00> : vector<2x32xf32>
    %269 = vector.multi_reduction <add>, %268, %cst_83 [1] : vector<2x8x32xf32> to vector<2x32xf32>
    %270 = tpu.concatenate %243, %269 in 1 : vector<2x32xf32>, vector<2x32xf32> -> vector<2x64xf32>
    %c0_84 = arith.constant 0 : index
    %c0_85 = arith.constant 0 : index
    %271 = vector.load %arg16[%c0_84, %c0_85] : memref<64x12xf32, #tpu.memory_space<vmem>>, vector<64x12xf32>
    %cst_86 = arith.constant dense<0.000000e+00> : vector<2x12xf32>
    %272 = tpu.matmul %270, %271, %cst_86 {dimension_numbers = #tpu.dot_dimension_numbers<[1], [0], [0], [1], [0, 0, 1, 1], [], []>} : vector<2x64xf32>, vector<64x12xf32>, vector<2x12xf32> -> vector<2x12xf32>
    %c0_87 = arith.constant 0 : index
    %c0_88 = arith.constant 0 : index
    %273 = vector.load %arg17[%c0_87, %c0_88] : memref<1x12xf32, #tpu.memory_space<vmem>>, vector<1x12xf32>
    %274 = vector.broadcast %273 : vector<1x12xf32> to vector<2x12xf32>
    %275 = arith.addf %272, %274 : vector<2x12xf32>
    %c0_89 = arith.constant 0 : index
    %c0_90 = arith.constant 0 : index
    %276 = vector.load %arg18[%c0_89, %c0_90] : memref<2x12xf32, #tpu.memory_space<vmem>>, vector<2x12xf32>
    tpu.vector_store %arg18[%c0_89, %c0_90], %275 {strides = array<i32>} : memref<2x12xf32, #tpu.memory_space<vmem>>, vector<2x12xf32>,
    return
  }
}

</mosaic_0001>

<llo_original>
// kernel: tile.14
$region0: #{tile.14}
  %s0 = inlined_call_operand.vmem [shape: f32[3,16,8,16], index: 0, kind: input, shape index: {}]
  %s1 = inlined_call_operand.vmem [shape: f32[3,16,128], index: 1, kind: output, shape index: {}]
  %v2 = vld [vmem:[%s0] ss:$8 sm:$0xf]
  %v3 = vld [vmem:[%s0] ss:$8 sm:$0xf0]
  %vm4 = vcmask 1047556
  %v5 = vsel %vm4, %v3, %v2
  %vm6 = vcmask 130048
  %7 = vst.msk [vmem:[%s1] sm:$0xff] %vm6, %v5
  %s8 = scalar_lea.vmem %s0, 64
  %v9 = vld [vmem:[%s8] ss:$8 sm:$0xf]
  %s10 = scalar_lea.vmem %s0, 64
  %v11 = vld [vmem:[%s10] ss:$8 sm:$0xf0]
  %vm12 = vcmask 1047556
  %v13 = vsel %vm12, %v11, %v9
  %vm14 = vcmask 130048
  %s15 = scalar_lea.vmem %s1, 8
  %16 = vst.msk [vmem:[%s15] sm:$0xff] %vm14, %v13
  %s17 = scalar_lea.vmem %s0, 128
  %v18 = vld [vmem:[%s17] ss:$8 sm:$0xf]
  %s19 = scalar_lea.vmem %s0, 128
  %v20 = vld [vmem:[%s19] ss:$8 sm:$0xf0]
  %vm21 = vcmask 1047556
  %v22 = vsel %vm21, %v20, %v18
  %vm23 = vcmask 130048
  %s24 = scalar_lea.vmem %s1, 16
  %25 = vst.msk [vmem:[%s24] sm:$0xff] %vm23, %v22
  %s26 = scalar_lea.vmem %s0, 192
  %v27 = vld [vmem:[%s26] ss:$8 sm:$0xf]
  %s28 = scalar_lea.vmem %s0, 192
  %v29 = vld [vmem:[%s28] ss:$8 sm:$0xf0]
  %vm30 = vcmask 1047556
  %v31 = vsel %vm30, %v29, %v27
  %vm32 = vcmask 130048
  %s33 = scalar_lea.vmem %s1, 24
  %34 = vst.msk [vmem:[%s33] sm:$0xff] %vm32, %v31
  %s35 = scalar_lea.vmem %s0, 256
  %v36 = vld [vmem:[%s35] ss:$8 sm:$0xf]
  %s37 = scalar_lea.vmem %s0, 256
  %v38 = vld [vmem:[%s37] ss:$8 sm:$0xf0]
  %vm39 = vcmask 1047556
  %v40 = vsel %vm39, %v38, %v36
  %vm41 = vcmask 130048
  %s42 = scalar_lea.vmem %s1, 32
  %43 = vst.msk [vmem:[%s42] sm:$0xff] %vm41, %v40
  %s44 = scalar_lea.vmem %s0, 320
  %v45 = vld [vmem:[%s44] ss:$8 sm:$0xf]
  %s46 = scalar_lea.vmem %s0, 320
  %v47 = vld [vmem:[%s46] ss:$8 sm:$0xf0]
  %vm48 = vcmask 1047556
  %v49 = vsel %vm48, %v47, %v45
  %vm50 = vcmask 130048
  %s51 = scalar_lea.vmem %s1, 40
  %52 = vst.msk [vmem:[%s51] sm:$0xff] %vm50, %v49
  %s53 = scalar_lea.vmem %s0, 7
  %v54 = vld [vmem:[%s53] ss:$8 sm:$0xf]
  %s55 = scalar_lea.vmem %s0, 7
  %v56 = vld [vmem:[%s55] ss:$8 sm:$0xf0]
  %vm57 = vcmask 1047556
  %v58 = vsel %vm57, %v56, %v54
  %59 = vrot.lane.b32.xlu0 %v58, 112
  %v60 = vpop.permute.xlu0 %59
  %vm61 = vcmask 1048448
  %62 = vst.msk [vmem:[%s1] sm:$0xff] %vm61, %v60
  %s63 = scalar_lea.vmem %s0, 263
  %v64 = vld [vmem:[%s63] ss:$8 sm:$0xf]
  %s65 = scalar_lea.vmem %s0, 263
  %v66 = vld [vmem:[%s65] ss:$8 sm:$0xf0]
  %vm67 = vcmask 1047556
  %v68 = vsel %vm67, %v66, %v64
  %69 = vrot.lane.b32.xlu0 %v68, 112
  %v70 = vpop.permute.xlu0 %69
  %vm71 = vcmask 1048448
  %s72 = scalar_lea.vmem %s1, 32
  %73 = vst.msk [vmem:[%s72] sm:$0xff] %vm71, %v70
  %s74 = scalar_lea.vmem %s0, 71
  %v75 = vld [vmem:[%s74] ss:$8 sm:$0xf]
  %s76 = scalar_lea.vmem %s0, 71
  %v77 = vld [vmem:[%s76] ss:$8 sm:$0xf0]
  %vm78 = vcmask 1047556
  %v79 = vsel %vm78, %v77, %v75
  %80 = vrot.lane.b32.xlu0 %v79, 112
  %v81 = vpop.permute.xlu0 %80
  %vm82 = vcmask 1048448
  %s83 = scalar_lea.vmem %s1, 8
  %84 = vst.msk [vmem:[%s83] sm:$0xff] %vm82, %v81
  %s85 = scalar_lea.vmem %s0, 327
  %v86 = vld [vmem:[%s85] ss:$8 sm:$0xf]
  %s87 = scalar_lea.vmem %s0, 327
  %v88 = vld [vmem:[%s87] ss:$8 sm:$0xf0]
  %vm89 = vcmask 1047556
  %v90 = vsel %vm89, %v88, %v86
  %91 = vrot.lane.b32.xlu0 %v90, 112
  %v92 = vpop.permute.xlu0 %91
  %vm93 = vcmask 1048448
  %s94 = scalar_lea.vmem %s1, 40
  %95 = vst.msk [vmem:[%s94] sm:$0xff] %vm93, %v92
  %s96 = scalar_lea.vmem %s0, 135
  %v97 = vld [vmem:[%s96] ss:$8 sm:$0xf]
  %s98 = scalar_lea.vmem %s0, 135
  %v99 = vld [vmem:[%s98] ss:$8 sm:$0xf0]
  %vm100 = vcmask 1047556
  %v101 = vsel %vm100, %v99, %v97
  %102 = vrot.lane.b32.xlu0 %v101, 112
  %v103 = vpop.permute.xlu0 %102
  %vm104 = vcmask 1048448
  %s105 = scalar_lea.vmem %s1, 16
  %106 = vst.msk [vmem:[%s105] sm:$0xff] %vm104, %v103
  %s107 = scalar_lea.vmem %s0, 199
  %v108 = vld [vmem:[%s107] ss:$8 sm:$0xf]
  %s109 = scalar_lea.vmem %s0, 199
  %v110 = vld [vmem:[%s109] ss:$8 sm:$0xf0]
  %vm111 = vcmask 1047556
  %v112 = vsel %vm111, %v110, %v108
  %113 = vrot.lane.b32.xlu0 %v112, 112
  %v114 = vpop.permute.xlu0 %113
  %vm115 = vcmask 1048448
  %s116 = scalar_lea.vmem %s1, 24
  %117 = vst.msk [vmem:[%s116] sm:$0xff] %vm115, %v114
  %s118 = scalar_lea.vmem %s0, 6
  %v119 = vld [vmem:[%s118] ss:$8 sm:$0xf]
  %s120 = scalar_lea.vmem %s0, 6
  %v121 = vld [vmem:[%s120] ss:$8 sm:$0xf0]
  %vm122 = vcmask 1047556
  %v123 = vsel %vm122, %v121, %v119
  %124 = vrot.lane.b32.xlu0 %v123, 96
  %v125 = vpop.permute.xlu0 %124
  %vm126 = vcmask 917248
  %127 = vst.msk [vmem:[%s1] sm:$0xff] %vm126, %v125
  %s128 = scalar_lea.vmem %s0, 262
  %v129 = vld [vmem:[%s128] ss:$8 sm:$0xf]
  %s130 = scalar_lea.vmem %s0, 262
  %v131 = vld [vmem:[%s130] ss:$8 sm:$0xf0]
  %vm132 = vcmask 1047556
  %v133 = vsel %vm132, %v131, %v129
  %134 = vrot.lane.b32.xlu0 %v133, 96
  %v135 = vpop.permute.xlu0 %134
  %vm136 = vcmask 917248
  %s137 = scalar_lea.vmem %s1, 32
  %138 = vst.msk [vmem:[%s137] sm:$0xff] %vm136, %v135
  %s139 = scalar_lea.vmem %s0, 70
  %v140 = vld [vmem:[%s139] ss:$8 sm:$0xf]
  %s141 = scalar_lea.vmem %s0, 70
  %v142 = vld [vmem:[%s141] ss:$8 sm:$0xf0]
  %vm143 = vcmask 1047556
  %v144 = vsel %vm143, %v142, %v140
  %145 = vrot.lane.b32.xlu0 %v144, 96
  %v146 = vpop.permute.xlu0 %145
  %vm147 = vcmask 917248
  %s148 = scalar_lea.vmem %s1, 8
  %149 = vst.msk [vmem:[%s148] sm:$0xff] %vm147, %v146
  %s150 = scalar_lea.vmem %s0, 326
  %v151 = vld [vmem:[%s150] ss:$8 sm:$0xf]
  %s152 = scalar_lea.vmem %s0, 326
  %v153 = vld [vmem:[%s152] ss:$8 sm:$0xf0]
  %vm154 = vcmask 1047556
  %v155 = vsel %vm154, %v153, %v151
  %156 = vrot.lane.b32.xlu0 %v155, 96
  %v157 = vpop.permute.xlu0 %156
  %vm158 = vcmask 917248
  %s159 = scalar_lea.vmem %s1, 40
  %160 = vst.msk [vmem:[%s159] sm:$0xff] %vm158, %v157
  %s161 = scalar_lea.vmem %s0, 134
  %v162 = vld [vmem:[%s161] ss:$8 sm:$0xf]
  %s163 = scalar_lea.vmem %s0, 134
  %v164 = vld [vmem:[%s163] ss:$8 sm:$0xf0]
  %vm165 = vcmask 1047556
  %v166 = vsel %vm165, %v164, %v162
  %167 = vrot.lane.b32.xlu0 %v166, 96
  %v168 = vpop.permute.xlu0 %167
  %vm169 = vcmask 917248
  %s170 = scalar_lea.vmem %s1, 16
  %171 = vst.msk [vmem:[%s170] sm:$0xff] %vm169, %v168
  %s172 = scalar_lea.vmem %s0, 198
  %v173 = vld [vmem:[%s172] ss:$8 sm:$0xf]
  %s174 = scalar_lea.vmem %s0, 198
  %v175 = vld [vmem:[%s174] ss:$8 sm:$0xf0]
  %vm176 = vcmask 1047556
  %v177 = vsel %vm176, %v175, %v173
  %178 = vrot.lane.b32.xlu0 %v177, 96
  %v179 = vpop.permute.xlu0 %178
  %vm180 = vcmask 917248
  %s181 = scalar_lea.vmem %s1, 24
  %182 = vst.msk [vmem:[%s181] sm:$0xff] %vm180, %v179
  %s183 = scalar_lea.vmem %s0, 5
  %v184 = vld [vmem:[%s183] ss:$8 sm:$0xf]
  %s185 = scalar_lea.vmem %s0, 5
  %v186 = vld [vmem:[%s185] ss:$8 sm:$0xf0]
  %vm187 = vcmask 1047556
  %v188 = vsel %vm187, %v186, %v184
  %189 = vrot.lane.b32.xlu0 %v188, 80
  %v190 = vpop.permute.xlu0 %189
  %vm191 = vcmask 786048
  %192 = vst.msk [vmem:[%s1] sm:$0xff] %vm191, %v190
  %s193 = scalar_lea.vmem %s0, 261
  %v194 = vld [vmem:[%s193] ss:$8 sm:$0xf]
  %s195 = scalar_lea.vmem %s0, 261
  %v196 = vld [vmem:[%s195] ss:$8 sm:$0xf0]
  %vm197 = vcmask 1047556
  %v198 = vsel %vm197, %v196, %v194
  %199 = vrot.lane.b32.xlu0 %v198, 80
  %v200 = vpop.permute.xlu0 %199
  %vm201 = vcmask 786048
  %s202 = scalar_lea.vmem %s1, 32
  %203 = vst.msk [vmem:[%s202] sm:$0xff] %vm201, %v200
  %s204 = scalar_lea.vmem %s0, 69
  %v205 = vld [vmem:[%s204] ss:$8 sm:$0xf]
  %s206 = scalar_lea.vmem %s0, 69
  %v207 = vld [vmem:[%s206] ss:$8 sm:$0xf0]
  %vm208 = vcmask 1047556
  %v209 = vsel %vm208, %v207, %v205
  %210 = vrot.lane.b32.xlu0 %v209, 80
  %v211 = vpop.permute.xlu0 %210
  %vm212 = vcmask 786048
  %s213 = scalar_lea.vmem %s1, 8
  %214 = vst.msk [vmem:[%s213] sm:$0xff] %vm212, %v211
  %s215 = scalar_lea.vmem %s0, 325
  %v216 = vld [vmem:[%s215] ss:$8 sm:$0xf]
  %s217 = scalar_lea.vmem %s0, 325
  %v218 = vld [vmem:[%s217] ss:$8 sm:$0xf0]
  %vm219 = vcmask 1047556
  %v220 = vsel %vm219, %v218, %v216
  %221 = vrot.lane.b32.xlu0 %v220, 80
  %v222 = vpop.permute.xlu0 %221
  %vm223 = vcmask 786048
  %s224 = scalar_lea.vmem %s1, 40
  %225 = vst.msk [vmem:[%s224] sm:$0xff] %vm223, %v222
  %s226 = scalar_lea.vmem %s0, 133
  %v227 = vld [vmem:[%s226] ss:$8 sm:$0xf]
  %s228 = scalar_lea.vmem %s0, 133
  %v229 = vld [vmem:[%s228] ss:$8 sm:$0xf0]
  %vm230 = vcmask 1047556
  %v231 = vsel %vm230, %v229, %v227
  %232 = vrot.lane.b32.xlu0 %v231, 80
  %v233 = vpop.permute.xlu0 %232
  %vm234 = vcmask 786048
  %s235 = scalar_lea.vmem %s1, 16
  %236 = vst.msk [vmem:[%s235] sm:$0xff] %vm234, %v233
  %s237 = scalar_lea.vmem %s0, 197
  %v238 = vld [vmem:[%s237] ss:$8 sm:$0xf]
  %s239 = scalar_lea.vmem %s0, 197
  %v240 = vld [vmem:[%s239] ss:$8 sm:$0xf0]
  %vm241 = vcmask 1047556
  %v242 = vsel %vm241, %v240, %v238
  %243 = vrot.lane.b32.xlu0 %v242, 80
  %v244 = vpop.permute.xlu0 %243
  %vm245 = vcmask 786048
  %s246 = scalar_lea.vmem %s1, 24
  %247 = vst.msk [vmem:[%s246] sm:$0xff] %vm245, %v244
  %s248 = scalar_lea.vmem %s0, 4
  %v249 = vld [vmem:[%s248] ss:$8 sm:$0xf]
  %s250 = scalar_lea.vmem %s0, 4
  %v251 = vld [vmem:[%s250] ss:$8 sm:$0xf0]
  %vm252 = vcmask 1047556
  %v253 = vsel %vm252, %v251, %v249
  %254 = vrot.lane.b32.xlu0 %v253, 64
  %v255 = vpop.permute.xlu0 %254
  %vm256 = vcmask 654848
  %257 = vst.msk [vmem:[%s1] sm:$0xff] %vm256, %v255
  %s258 = scalar_lea.vmem %s0, 260
  %v259 = vld [vmem:[%s258] ss:$8 sm:$0xf]
  %s260 = scalar_lea.vmem %s0, 260
  %v261 = vld [vmem:[%s260] ss:$8 sm:$0xf0]
  %vm262 = vcmask 1047556
  %v263 = vsel %vm262, %v261, %v259
  %264 = vrot.lane.b32.xlu0 %v263, 64
  %v265 = vpop.permute.xlu0 %264
  %vm266 = vcmask 654848
  %s267 = scalar_lea.vmem %s1, 32
  %268 = vst.msk [vmem:[%s267] sm:$0xff] %vm266, %v265
  %s269 = scalar_lea.vmem %s0, 68
  %v270 = vld [vmem:[%s269] ss:$8 sm:$0xf]
  %s271 = scalar_lea.vmem %s0, 68
  %v272 = vld [vmem:[%s271] ss:$8 sm:$0xf0]
  %vm273 = vcmask 1047556
  %v274 = vsel %vm273, %v272, %v270
  %275 = vrot.lane.b32.xlu0 %v274, 64
  %v276 = vpop.permute.xlu0 %275
  %vm277 = vcmask 654848
  %s278 = scalar_lea.vmem %s1, 8
  %279 = vst.msk [vmem:[%s278] sm:$0xff] %vm277, %v276
  %s280 = scalar_lea.vmem %s0, 324
  %v281 = vld [vmem:[%s280] ss:$8 sm:$0xf]
  %s282 = scalar_lea.vmem %s0, 324
  %v283 = vld [vmem:[%s282] ss:$8 sm:$0xf0]
  %vm284 = vcmask 1047556
  %v285 = vsel %vm284, %v283, %v281
  %286 = vrot.lane.b32.xlu0 %v285, 64
  %v287 = vpop.permute.xlu0 %286
  %vm288 = vcmask 654848
  %s289 = scalar_lea.vmem %s1, 40
  %290 = vst.msk [vmem:[%s289] sm:$0xff] %vm288, %v287
  %s291 = scalar_lea.vmem %s0, 132
  %v292 = vld [vmem:[%s291] ss:$8 sm:$0xf]
  %s293 = scalar_lea.vmem %s0, 132
  %v294 = vld [vmem:[%s293] ss:$8 sm:$0xf0]
  %vm295 = vcmask 1047556
  %v296 = vsel %vm295, %v294, %v292
  %297 = vrot.lane.b32.xlu0 %v296, 64
  %v298 = vpop.permute.xlu0 %297
  %vm299 = vcmask 654848
  %s300 = scalar_lea.vmem %s1, 16
  %301 = vst.msk [vmem:[%s300] sm:$0xff] %vm299, %v298
  %s302 = scalar_lea.vmem %s0, 196
  %v303 = vld [vmem:[%s302] ss:$8 sm:$0xf]
  %s304 = scalar_lea.vmem %s0, 196
  %v305 = vld [vmem:[%s304] ss:$8 sm:$0xf0]
  %vm306 = vcmask 1047556
  %v307 = vsel %vm306, %v305, %v303
  %308 = vrot.lane.b32.xlu0 %v307, 64
  %v309 = vpop.permute.xlu0 %308
  %vm310 = vcmask 654848
  %s311 = scalar_lea.vmem %s1, 24
  %312 = vst.msk [vmem:[%s311] sm:$0xff] %vm310, %v309
  %s313 = scalar_lea.vmem %s0, 3
  %v314 = vld [vmem:[%s313] ss:$8 sm:$0xf]
  %s315 = scalar_lea.vmem %s0, 3
  %v316 = vld [vmem:[%s315] ss:$8 sm:$0xf0]
  %vm317 = vcmask 1047556
  %v318 = vsel %vm317, %v316, %v314
  %319 = vrot.lane.b32.xlu0 %v318, 48
  %v320 = vpop.permute.xlu0 %319
  %vm321 = vcmask 523648
  %322 = vst.msk [vmem:[%s1] sm:$0xff] %vm321, %v320
  %s323 = scalar_lea.vmem %s0, 259
  %v324 = vld [vmem:[%s323] ss:$8 sm:$0xf]
  %s325 = scalar_lea.vmem %s0, 259
  %v326 = vld [vmem:[%s325] ss:$8 sm:$0xf0]
  %vm327 = vcmask 1047556
  %v328 = vsel %vm327, %v326, %v324
  %329 = vrot.lane.b32.xlu0 %v328, 48
  %v330 = vpop.permute.xlu0 %329
  %vm331 = vcmask 523648
  %s332 = scalar_lea.vmem %s1, 32
  %333 = vst.msk [vmem:[%s332] sm:$0xff] %vm331, %v330
  %s334 = scalar_lea.vmem %s0, 67
  %v335 = vld [vmem:[%s334] ss:$8 sm:$0xf]
  %s336 = scalar_lea.vmem %s0, 67
  %v337 = vld [vmem:[%s336] ss:$8 sm:$0xf0]
  %vm338 = vcmask 1047556
  %v339 = vsel %vm338, %v337, %v335
  %340 = vrot.lane.b32.xlu0 %v339, 48
  %v341 = vpop.permute.xlu0 %340
  %vm342 = vcmask 523648
  %s343 = scalar_lea.vmem %s1, 8
  %344 = vst.msk [vmem:[%s343] sm:$0xff] %vm342, %v341
  %s345 = scalar_lea.vmem %s0, 323
  %v346 = vld [vmem:[%s345] ss:$8 sm:$0xf]
  %s347 = scalar_lea.vmem %s0, 323
  %v348 = vld [vmem:[%s347] ss:$8 sm:$0xf0]
  %vm349 = vcmask 1047556
  %v350 = vsel %vm349, %v348, %v346
  %351 = vrot.lane.b32.xlu0 %v350, 48
  %v352 = vpop.permute.xlu0 %351
  %vm353 = vcmask 523648
  %s354 = scalar_lea.vmem %s1, 40
  %355 = vst.msk [vmem:[%s354] sm:$0xff] %vm353, %v352
  %s356 = scalar_lea.vmem %s0, 131
  %v357 = vld [vmem:[%s356] ss:$8 sm:$0xf]
  %s358 = scalar_lea.vmem %s0, 131
  %v359 = vld [vmem:[%s358] ss:$8 sm:$0xf0]
  %vm360 = vcmask 1047556
  %v361 = vsel %vm360, %v359, %v357
  %362 = vrot.lane.b32.xlu0 %v361, 48
  %v363 = vpop.permute.xlu0 %362
  %vm364 = vcmask 523648
  %s365 = scalar_lea.vmem %s1, 16
  %366 = vst.msk [vmem:[%s365] sm:$0xff] %vm364, %v363
  %s367 = scalar_lea.vmem %s0, 195
  %v368 = vld [vmem:[%s367] ss:$8 sm:$0xf]
  %s369 = scalar_lea.vmem %s0, 195
  %v370 = vld [vmem:[%s369] ss:$8 sm:$0xf0]
  %vm371 = vcmask 1047556
  %v372 = vsel %vm371, %v370, %v368
  %373 = vrot.lane.b32.xlu0 %v372, 48
  %v374 = vpop.permute.xlu0 %373
  %vm375 = vcmask 523648
  %s376 = scalar_lea.vmem %s1, 24
  %377 = vst.msk [vmem:[%s376] sm:$0xff] %vm375, %v374
  %s378 = scalar_lea.vmem %s0, 2
  %v379 = vld [vmem:[%s378] ss:$8 sm:$0xf]
  %s380 = scalar_lea.vmem %s0, 2
  %v381 = vld [vmem:[%s380] ss:$8 sm:$0xf0]
  %vm382 = vcmask 1047556
  %v383 = vsel %vm382, %v381, %v379
  %384 = vrot.lane.b32.xlu0 %v383, 32
  %v385 = vpop.permute.xlu0 %384
  %vm386 = vcmask 392448
  %387 = vst.msk [vmem:[%s1] sm:$0xff] %vm386, %v385
  %s388 = scalar_lea.vmem %s0, 258
  %v389 = vld [vmem:[%s388] ss:$8 sm:$0xf]
  %s390 = scalar_lea.vmem %s0, 258
  %v391 = vld [vmem:[%s390] ss:$8 sm:$0xf0]
  %vm392 = vcmask 1047556
  %v393 = vsel %vm392, %v391, %v389
  %394 = vrot.lane.b32.xlu0 %v393, 32
  %v395 = vpop.permute.xlu0 %394
  %vm396 = vcmask 392448
  %s397 = scalar_lea.vmem %s1, 32
  %398 = vst.msk [vmem:[%s397] sm:$0xff] %vm396, %v395
  %s399 = scalar_lea.vmem %s0, 66
  %v400 = vld [vmem:[%s399] ss:$8 sm:$0xf]
  %s401 = scalar_lea.vmem %s0, 66
  %v402 = vld [vmem:[%s401] ss:$8 sm:$0xf0]
  %vm403 = vcmask 1047556
  %v404 = vsel %vm403, %v402, %v400
  %405 = vrot.lane.b32.xlu0 %v404, 32
  %v406 = vpop.permute.xlu0 %405
  %vm407 = vcmask 392448
  %s408 = scalar_lea.vmem %s1, 8
  %409 = vst.msk [vmem:[%s408] sm:$0xff] %vm407, %v406
  %s410 = scalar_lea.vmem %s0, 322
  %v411 = vld [vmem:[%s410] ss:$8 sm:$0xf]
  %s412 = scalar_lea.vmem %s0, 322
  %v413 = vld [vmem:[%s412] ss:$8 sm:$0xf0]
  %vm414 = vcmask 1047556
  %v415 = vsel %vm414, %v413, %v411
  %416 = vrot.lane.b32.xlu0 %v415, 32
  %v417 = vpop.permute.xlu0 %416
  %vm418 = vcmask 392448
  %s419 = scalar_lea.vmem %s1, 40
  %420 = vst.msk [vmem:[%s419] sm:$0xff] %vm418, %v417
  %s421 = scalar_lea.vmem %s0, 130
  %v422 = vld [vmem:[%s421] ss:$8 sm:$0xf]
  %s423 = scalar_lea.vmem %s0, 130
  %v424 = vld [vmem:[%s423] ss:$8 sm:$0xf0]
  %vm425 = vcmask 1047556
  %v426 = vsel %vm425, %v424, %v422
  %427 = vrot.lane.b32.xlu0 %v426, 32
  %v428 = vpop.permute.xlu0 %427
  %vm429 = vcmask 392448
  %s430 = scalar_lea.vmem %s1, 16
  %431 = vst.msk [vmem:[%s430] sm:$0xff] %vm429, %v428
  %s432 = scalar_lea.vmem %s0, 194
  %v433 = vld [vmem:[%s432] ss:$8 sm:$0xf]
  %s434 = scalar_lea.vmem %s0, 194
  %v435 = vld [vmem:[%s434] ss:$8 sm:$0xf0]
  %vm436 = vcmask 1047556
  %v437 = vsel %vm436, %v435, %v433
  %438 = vrot.lane.b32.xlu0 %v437, 32
  %v439 = vpop.permute.xlu0 %438
  %vm440 = vcmask 392448
  %s441 = scalar_lea.vmem %s1, 24
  %442 = vst.msk [vmem:[%s441] sm:$0xff] %vm440, %v439
  %s443 = scalar_lea.vmem %s0, 1
  %v444 = vld [vmem:[%s443] ss:$8 sm:$0xf]
  %s445 = scalar_lea.vmem %s0, 1
  %v446 = vld [vmem:[%s445] ss:$8 sm:$0xf0]
  %vm447 = vcmask 1047556
  %v448 = vsel %vm447, %v446, %v444
  %449 = vrot.lane.b32.xlu0 %v448, 16
  %v450 = vpop.permute.xlu0 %449
  %vm451 = vcmask 261248
  %452 = vst.msk [vmem:[%s1] sm:$0xff] %vm451, %v450
  %s453 = scalar_lea.vmem %s0, 257
  %v454 = vld [vmem:[%s453] ss:$8 sm:$0xf]
  %s455 = scalar_lea.vmem %s0, 257
  %v456 = vld [vmem:[%s455] ss:$8 sm:$0xf0]
  %vm457 = vcmask 1047556
  %v458 = vsel %vm457, %v456, %v454
  %459 = vrot.lane.b32.xlu0 %v458, 16
  %v460 = vpop.permute.xlu0 %459
  %vm461 = vcmask 261248
  %s462 = scalar_lea.vmem %s1, 32
  %463 = vst.msk [vmem:[%s462] sm:$0xff] %vm461, %v460
  %s464 = scalar_lea.vmem %s0, 65
  %v465 = vld [vmem:[%s464] ss:$8 sm:$0xf]
  %s466 = scalar_lea.vmem %s0, 65
  %v467 = vld [vmem:[%s466] ss:$8 sm:$0xf0]
  %vm468 = vcmask 1047556
  %v469 = vsel %vm468, %v467, %v465
  %470 = vrot.lane.b32.xlu0 %v469, 16
  %v471 = vpop.permute.xlu0 %470
  %vm472 = vcmask 261248
  %s473 = scalar_lea.vmem %s1, 8
  %474 = vst.msk [vmem:[%s473] sm:$0xff] %vm472, %v471
  %s475 = scalar_lea.vmem %s0, 321
  %v476 = vld [vmem:[%s475] ss:$8 sm:$0xf]
  %s477 = scalar_lea.vmem %s0, 321
  %v478 = vld [vmem:[%s477] ss:$8 sm:$0xf0]
  %vm479 = vcmask 1047556
  %v480 = vsel %vm479, %v478, %v476
  %481 = vrot.lane.b32.xlu0 %v480, 16
  %v482 = vpop.permute.xlu0 %481
  %vm483 = vcmask 261248
  %s484 = scalar_lea.vmem %s1, 40
  %485 = vst.msk [vmem:[%s484] sm:$0xff] %vm483, %v482
  %s486 = scalar_lea.vmem %s0, 129
  %v487 = vld [vmem:[%s486] ss:$8 sm:$0xf]
  %s488 = scalar_lea.vmem %s0, 129
  %v489 = vld [vmem:[%s488] ss:$8 sm:$0xf0]
  %vm490 = vcmask 1047556
  %v491 = vsel %vm490, %v489, %v487
  %492 = vrot.lane.b32.xlu0 %v491, 16
  %v493 = vpop.permute.xlu0 %492
  %vm494 = vcmask 261248
  %s495 = scalar_lea.vmem %s1, 16
  %496 = vst.msk [vmem:[%s495] sm:$0xff] %vm494, %v493
  %s497 = scalar_lea.vmem %s0, 193
  %v498 = vld [vmem:[%s497] ss:$8 sm:$0xf]
  %s499 = scalar_lea.vmem %s0, 193
  %v500 = vld [vmem:[%s499] ss:$8 sm:$0xf0]
  %vm501 = vcmask 1047556
  %v502 = vsel %vm501, %v500, %v498
  %503 = vrot.lane.b32.xlu0 %v502, 16
  %v504 = vpop.permute.xlu0 %503
  %vm505 = vcmask 261248
  %s506 = scalar_lea.vmem %s1, 24
  %507 = vst.msk [vmem:[%s506] sm:$0xff] %vm505, %v504

// kernel: squeeze.25
$region0: #{squeeze.25}
  %s0 = inlined_call_operand.vmem [shape: f32[16,8,16], index: 0, kind: input, shape index: {}]
  %s1 = inlined_call_operand.vmem [shape: f32[16,128], index: 1, kind: output, shape index: {}]
  %v2 = vld [vmem:[%s0] ss:$8 sm:$0xf]
  %v3 = vld [vmem:[%s0] ss:$8 sm:$0xf0]
  %vm4 = vcmask 1047556
  %v5 = vsel %vm4, %v3, %v2
  %vm6 = vcmask 130048
  %7 = vst.msk [vmem:[%s1] sm:$0xff] %vm6, %v5
  %s8 = scalar_lea.vmem %s0, 64
  %v9 = vld [vmem:[%s8] ss:$8 sm:$0xf]
  %s10 = scalar_lea.vmem %s0, 64
  %v11 = vld [vmem:[%s10] ss:$8 sm:$0xf0]
  %vm12 = vcmask 1047556
  %v13 = vsel %vm12, %v11, %v9
  %vm14 = vcmask 130048
  %s15 = scalar_lea.vmem %s1, 8
  %16 = vst.msk [vmem:[%s15] sm:$0xff] %vm14, %v13
  %s17 = scalar_lea.vmem %s0, 7
  %v18 = vld [vmem:[%s17] ss:$8 sm:$0xf]
  %s19 = scalar_lea.vmem %s0, 7
  %v20 = vld [vmem:[%s19] ss:$8 sm:$0xf0]
  %vm21 = vcmask 1047556
  %v22 = vsel %vm21, %v20, %v18
  %23 = vrot.lane.b32.xlu0 %v22, 112
  %v24 = vpop.permute.xlu0 %23
  %vm25 = vcmask 1048448
  %26 = vst.msk [vmem:[%s1] sm:$0xff] %vm25, %v24
  %s27 = scalar_lea.vmem %s0, 71
  %v28 = vld [vmem:[%s27] ss:$8 sm:$0xf]
  %s29 = scalar_lea.vmem %s0, 71
  %v30 = vld [vmem:[%s29] ss:$8 sm:$0xf0]
  %vm31 = vcmask 1047556
  %v32 = vsel %vm31, %v30, %v28
  %33 = vrot.lane.b32.xlu0 %v32, 112
  %v34 = vpop.permute.xlu0 %33
  %vm35 = vcmask 1048448
  %s36 = scalar_lea.vmem %s1, 8
  %37 = vst.msk [vmem:[%s36] sm:$0xff] %vm35, %v34
  %s38 = scalar_lea.vmem %s0, 6
  %v39 = vld [vmem:[%s38] ss:$8 sm:$0xf]
  %s40 = scalar_lea.vmem %s0, 6
  %v41 = vld [vmem:[%s40] ss:$8 sm:$0xf0]
  %vm42 = vcmask 1047556
  %v43 = vsel %vm42, %v41, %v39
  %44 = vrot.lane.b32.xlu0 %v43, 96
  %v45 = vpop.permute.xlu0 %44
  %vm46 = vcmask 917248
  %47 = vst.msk [vmem:[%s1] sm:$0xff] %vm46, %v45
  %s48 = scalar_lea.vmem %s0, 70
  %v49 = vld [vmem:[%s48] ss:$8 sm:$0xf]
  %s50 = scalar_lea.vmem %s0, 70
  %v51 = vld [vmem:[%s50] ss:$8 sm:$0xf0]
  %vm52 = vcmask 1047556
  %v53 = vsel %vm52, %v51, %v49
  %54 = vrot.lane.b32.xlu0 %v53, 96
  %v55 = vpop.permute.xlu0 %54
  %vm56 = vcmask 917248
  %s57 = scalar_lea.vmem %s1, 8
  %58 = vst.msk [vmem:[%s57] sm:$0xff] %vm56, %v55
  %s59 = scalar_lea.vmem %s0, 5
  %v60 = vld [vmem:[%s59] ss:$8 sm:$0xf]
  %s61 = scalar_lea.vmem %s0, 5
  %v62 = vld [vmem:[%s61] ss:$8 sm:$0xf0]
  %vm63 = vcmask 1047556
  %v64 = vsel %vm63, %v62, %v60
  %65 = vrot.lane.b32.xlu0 %v64, 80
  %v66 = vpop.permute.xlu0 %65
  %vm67 = vcmask 786048
  %68 = vst.msk [vmem:[%s1] sm:$0xff] %vm67, %v66
  %s69 = scalar_lea.vmem %s0, 69
  %v70 = vld [vmem:[%s69] ss:$8 sm:$0xf]
  %s71 = scalar_lea.vmem %s0, 69
  %v72 = vld [vmem:[%s71] ss:$8 sm:$0xf0]
  %vm73 = vcmask 1047556
  %v74 = vsel %vm73, %v72, %v70
  %75 = vrot.lane.b32.xlu0 %v74, 80
  %v76 = vpop.permute.xlu0 %75
  %vm77 = vcmask 786048
  %s78 = scalar_lea.vmem %s1, 8
  %79 = vst.msk [vmem:[%s78] sm:$0xff] %vm77, %v76
  %s80 = scalar_lea.vmem %s0, 4
  %v81 = vld [vmem:[%s80] ss:$8 sm:$0xf]
  %s82 = scalar_lea.vmem %s0, 4
  %v83 = vld [vmem:[%s82] ss:$8 sm:$0xf0]
  %vm84 = vcmask 1047556
  %v85 = vsel %vm84, %v83, %v81
  %86 = vrot.lane.b32.xlu0 %v85, 64
  %v87 = vpop.permute.xlu0 %86
  %vm88 = vcmask 654848
  %89 = vst.msk [vmem:[%s1] sm:$0xff] %vm88, %v87
  %s90 = scalar_lea.vmem %s0, 68
  %v91 = vld [vmem:[%s90] ss:$8 sm:$0xf]
  %s92 = scalar_lea.vmem %s0, 68
  %v93 = vld [vmem:[%s92] ss:$8 sm:$0xf0]
  %vm94 = vcmask 1047556
  %v95 = vsel %vm94, %v93, %v91
  %96 = vrot.lane.b32.xlu0 %v95, 64
  %v97 = vpop.permute.xlu0 %96
  %vm98 = vcmask 654848
  %s99 = scalar_lea.vmem %s1, 8
  %100 = vst.msk [vmem:[%s99] sm:$0xff] %vm98, %v97
  %s101 = scalar_lea.vmem %s0, 3
  %v102 = vld [vmem:[%s101] ss:$8 sm:$0xf]
  %s103 = scalar_lea.vmem %s0, 3
  %v104 = vld [vmem:[%s103] ss:$8 sm:$0xf0]
  %vm105 = vcmask 1047556
  %v106 = vsel %vm105, %v104, %v102
  %107 = vrot.lane.b32.xlu0 %v106, 48
  %v108 = vpop.permute.xlu0 %107
  %vm109 = vcmask 523648
  %110 = vst.msk [vmem:[%s1] sm:$0xff] %vm109, %v108
  %s111 = scalar_lea.vmem %s0, 67
  %v112 = vld [vmem:[%s111] ss:$8 sm:$0xf]
  %s113 = scalar_lea.vmem %s0, 67
  %v114 = vld [vmem:[%s113] ss:$8 sm:$0xf0]
  %vm115 = vcmask 1047556
  %v116 = vsel %vm115, %v114, %v112
  %117 = vrot.lane.b32.xlu0 %v116, 48
  %v118 = vpop.permute.xlu0 %117
  %vm119 = vcmask 523648
  %s120 = scalar_lea.vmem %s1, 8
  %121 = vst.msk [vmem:[%s120] sm:$0xff] %vm119, %v118
  %s122 = scalar_lea.vmem %s0, 2
  %v123 = vld [vmem:[%s122] ss:$8 sm:$0xf]
  %s124 = scalar_lea.vmem %s0, 2
  %v125 = vld [vmem:[%s124] ss:$8 sm:$0xf0]
  %vm126 = vcmask 1047556
  %v127 = vsel %vm126, %v125, %v123
  %128 = vrot.lane.b32.xlu0 %v127, 32
  %v129 = vpop.permute.xlu0 %128
  %vm130 = vcmask 392448
  %131 = vst.msk [vmem:[%s1] sm:$0xff] %vm130, %v129
  %s132 = scalar_lea.vmem %s0, 66
  %v133 = vld [vmem:[%s132] ss:$8 sm:$0xf]
  %s134 = scalar_lea.vmem %s0, 66
  %v135 = vld [vmem:[%s134] ss:$8 sm:$0xf0]
  %vm136 = vcmask 1047556
  %v137 = vsel %vm136, %v135, %v133
  %138 = vrot.lane.b32.xlu0 %v137, 32
  %v139 = vpop.permute.xlu0 %138
  %vm140 = vcmask 392448
  %s141 = scalar_lea.vmem %s1, 8
  %142 = vst.msk [vmem:[%s141] sm:$0xff] %vm140, %v139
  %s143 = scalar_lea.vmem %s0, 1
  %v144 = vld [vmem:[%s143] ss:$8 sm:$0xf]
  %s145 = scalar_lea.vmem %s0, 1
  %v146 = vld [vmem:[%s145] ss:$8 sm:$0xf0]
  %vm147 = vcmask 1047556
  %v148 = vsel %vm147, %v146, %v144
  %149 = vrot.lane.b32.xlu0 %v148, 16
  %v150 = vpop.permute.xlu0 %149
  %vm151 = vcmask 261248
  %152 = vst.msk [vmem:[%s1] sm:$0xff] %vm151, %v150
  %s153 = scalar_lea.vmem %s0, 65
  %v154 = vld [vmem:[%s153] ss:$8 sm:$0xf]
  %s155 = scalar_lea.vmem %s0, 65
  %v156 = vld [vmem:[%s155] ss:$8 sm:$0xf0]
  %vm157 = vcmask 1047556
  %v158 = vsel %vm157, %v156, %v154
  %159 = vrot.lane.b32.xlu0 %v158, 16
  %v160 = vpop.permute.xlu0 %159
  %vm161 = vcmask 261248
  %s162 = scalar_lea.vmem %s1, 8
  %163 = vst.msk [vmem:[%s162] sm:$0xff] %vm161, %v160

// kernel: tile.18
$region0: #{tile.18}
  #allocation0 [shape = 's32[1]{0}', space=sflag, size = 0x4, scoped, tag = 'scoped memory for tile.18']
  %s0 = inlined_call_operand.vmem [shape: f32[16,16], index: 0, kind: input, shape index: {}]
  %s1 = inlined_call_operand.vmem [shape: f32[8,16,8,16], index: 1, kind: output, shape index: {}]
  // Predicated region
  $region2: #{tile.18} parent=0 // pred_check
    _
  $region3: #{tile.18} parent=0 // pred_check_branch
    %3 = sbr.rel (0) target = $region5
  $region4: #{tile.18} parent=0 // pred_region
    _
  $region5: #{tile.18} parent=0 // pred_fallthru
    _
  %v4 = vld [vmem:[%s0] ss:$0 sm:$0xff]
  %5 = vst [vmem:[%s1] sm:$0xff] %v4
  %s6 = scalar_lea.vmem %s1, 128
  %7 = vst [vmem:[%s6] sm:$0xff] %v4
  %s8 = scalar_lea.vmem %s1, 256
  %9 = vst [vmem:[%s8] sm:$0xff] %v4
  %s10 = scalar_lea.vmem %s1, 384
  %11 = vst [vmem:[%s10] sm:$0xff] %v4
  %s12 = scalar_lea.vmem %s1, 512
  %13 = vst [vmem:[%s12] sm:$0xff] %v4
  %s14 = scalar_lea.vmem %s1, 640
  %15 = vst [vmem:[%s14] sm:$0xff] %v4
  %s16 = scalar_lea.vmem %s1, 768
  %17 = vst [vmem:[%s16] sm:$0xff] %v4
  %s18 = scalar_lea.vmem %s1, 896
  %19 = vst [vmem:[%s18] sm:$0xff] %v4
  %s20 = scalar_lea.vmem %s0, 1
  %v21 = vld [vmem:[%s20] ss:$0 sm:$0xff]
  %s22 = scalar_lea.vmem %s1, 8
  %23 = vst [vmem:[%s22] sm:$0xff] %v21
  %s24 = scalar_lea.vmem %s1, 136
  %25 = vst [vmem:[%s24] sm:$0xff] %v21
  %s26 = scalar_lea.vmem %s1, 264
  %27 = vst [vmem:[%s26] sm:$0xff] %v21
  %s28 = scalar_lea.vmem %s1, 392
  %29 = vst [vmem:[%s28] sm:$0xff] %v21
  %s30 = scalar_lea.vmem %s1, 520
  %31 = vst [vmem:[%s30] sm:$0xff] %v21
  %s32 = scalar_lea.vmem %s1, 648
  %33 = vst [vmem:[%s32] sm:$0xff] %v21
  %s34 = scalar_lea.vmem %s1, 776
  %35 = vst [vmem:[%s34] sm:$0xff] %v21
  %s36 = scalar_lea.vmem %s1, 904
  %37 = vst [vmem:[%s36] sm:$0xff] %v21
  %s38 = scalar_lea.vmem %s0, 2
  %v39 = vld [vmem:[%s38] ss:$0 sm:$0xff]
  %s40 = scalar_lea.vmem %s1, 16
  %41 = vst [vmem:[%s40] sm:$0xff] %v39
  %s42 = scalar_lea.vmem %s1, 144
  %43 = vst [vmem:[%s42] sm:$0xff] %v39
  %s44 = scalar_lea.vmem %s1, 272
  %45 = vst [vmem:[%s44] sm:$0xff] %v39
  %s46 = scalar_lea.vmem %s1, 400
  %47 = vst [vmem:[%s46] sm:$0xff] %v39
  %s48 = scalar_lea.vmem %s1, 528
  %49 = vst [vmem:[%s48] sm:$0xff] %v39
  %s50 = scalar_lea.vmem %s1, 656
  %51 = vst [vmem:[%s50] sm:$0xff] %v39
  %s52 = scalar_lea.vmem %s1, 784
  %53 = vst [vmem:[%s52] sm:$0xff] %v39
  %s54 = scalar_lea.vmem %s1, 912
  %55 = vst [vmem:[%s54] sm:$0xff] %v39
  %s56 = scalar_lea.vmem %s0, 3
  %v57 = vld [vmem:[%s56] ss:$0 sm:$0xff]
  %s58 = scalar_lea.vmem %s1, 24
  %59 = vst [vmem:[%s58] sm:$0xff] %v57
  %s60 = scalar_lea.vmem %s1, 152
  %61 = vst [vmem:[%s60] sm:$0xff] %v57
  %s62 = scalar_lea.vmem %s1, 280
  %63 = vst [vmem:[%s62] sm:$0xff] %v57
  %s64 = scalar_lea.vmem %s1, 408
  %65 = vst [vmem:[%s64] sm:$0xff] %v57
  %s66 = scalar_lea.vmem %s1, 536
  %67 = vst [vmem:[%s66] sm:$0xff] %v57
  %s68 = scalar_lea.vmem %s1, 664
  %69 = vst [vmem:[%s68] sm:$0xff] %v57
  %s70 = scalar_lea.vmem %s1, 792
  %71 = vst [vmem:[%s70] sm:$0xff] %v57
  %s72 = scalar_lea.vmem %s1, 920
  %73 = vst [vmem:[%s72] sm:$0xff] %v57
  %s74 = scalar_lea.vmem %s0, 4
  %v75 = vld [vmem:[%s74] ss:$0 sm:$0xff]
  %s76 = scalar_lea.vmem %s1, 32
  %77 = vst [vmem:[%s76] sm:$0xff] %v75
  %s78 = scalar_lea.vmem %s1, 160
  %79 = vst [vmem:[%s78] sm:$0xff] %v75
  %s80 = scalar_lea.vmem %s1, 288
  %81 = vst [vmem:[%s80] sm:$0xff] %v75
  %s82 = scalar_lea.vmem %s1, 416
  %83 = vst [vmem:[%s82] sm:$0xff] %v75
  %s84 = scalar_lea.vmem %s1, 544
  %85 = vst [vmem:[%s84] sm:$0xff] %v75
  %s86 = scalar_lea.vmem %s1, 672
  %87 = vst [vmem:[%s86] sm:$0xff] %v75
  %s88 = scalar_lea.vmem %s1, 800
  %89 = vst [vmem:[%s88] sm:$0xff] %v75
  %s90 = scalar_lea.vmem %s1, 928
  %91 = vst [vmem:[%s90] sm:$0xff] %v75
  %s92 = scalar_lea.vmem %s0, 5
  %v93 = vld [vmem:[%s92] ss:$0 sm:$0xff]
  %s94 = scalar_lea.vmem %s1, 40
  %95 = vst [vmem:[%s94] sm:$0xff] %v93
  %s96 = scalar_lea.vmem %s1, 168
  %97 = vst [vmem:[%s96] sm:$0xff] %v93
  %s98 = scalar_lea.vmem %s1, 296
  %99 = vst [vmem:[%s98] sm:$0xff] %v93
  %s100 = scalar_lea.vmem %s1, 424
  %101 = vst [vmem:[%s100] sm:$0xff] %v93
  %s102 = scalar_lea.vmem %s1, 552
  %103 = vst [vmem:[%s102] sm:$0xff] %v93
  %s104 = scalar_lea.vmem %s1, 680
  %105 = vst [vmem:[%s104] sm:$0xff] %v93
  %s106 = scalar_lea.vmem %s1, 808
  %107 = vst [vmem:[%s106] sm:$0xff] %v93
  %s108 = scalar_lea.vmem %s1, 936
  %109 = vst [vmem:[%s108] sm:$0xff] %v93
  %s110 = scalar_lea.vmem %s0, 6
  %v111 = vld [vmem:[%s110] ss:$0 sm:$0xff]
  %s112 = scalar_lea.vmem %s1, 48
  %113 = vst [vmem:[%s112] sm:$0xff] %v111
  %s114 = scalar_lea.vmem %s1, 176
  %115 = vst [vmem:[%s114] sm:$0xff] %v111
  %s116 = scalar_lea.vmem %s1, 304
  %117 = vst [vmem:[%s116] sm:$0xff] %v111
  %s118 = scalar_lea.vmem %s1, 432
  %119 = vst [vmem:[%s118] sm:$0xff] %v111
  %s120 = scalar_lea.vmem %s1, 560
  %121 = vst [vmem:[%s120] sm:$0xff] %v111
  %s122 = scalar_lea.vmem %s1, 688
  %123 = vst [vmem:[%s122] sm:$0xff] %v111
  %s124 = scalar_lea.vmem %s1, 816
  %125 = vst [vmem:[%s124] sm:$0xff] %v111
  %s126 = scalar_lea.vmem %s1, 944
  %127 = vst [vmem:[%s126] sm:$0xff] %v111
  %s128 = scalar_lea.vmem %s0, 7
  %v129 = vld [vmem:[%s128] ss:$0 sm:$0xff]
  %s130 = scalar_lea.vmem %s1, 56
  %131 = vst [vmem:[%s130] sm:$0xff] %v129
  %s132 = scalar_lea.vmem %s1, 184
  %133 = vst [vmem:[%s132] sm:$0xff] %v129
  %s134 = scalar_lea.vmem %s1, 312
  %135 = vst [vmem:[%s134] sm:$0xff] %v129
  %s136 = scalar_lea.vmem %s1, 440
  %137 = vst [vmem:[%s136] sm:$0xff] %v129
  %s138 = scalar_lea.vmem %s1, 568
  %139 = vst [vmem:[%s138] sm:$0xff] %v129
  %s140 = scalar_lea.vmem %s1, 696
  %141 = vst [vmem:[%s140] sm:$0xff] %v129
  %s142 = scalar_lea.vmem %s1, 824
  %143 = vst [vmem:[%s142] sm:$0xff] %v129
  %s144 = scalar_lea.vmem %s1, 952
  %145 = vst [vmem:[%s144] sm:$0xff] %v129
  %s146 = scalar_lea.vmem %s0, 8
  %v147 = vld [vmem:[%s146] ss:$0 sm:$0xff]
  %s148 = scalar_lea.vmem %s1, 64
  %149 = vst [vmem:[%s148] sm:$0xff] %v147
  %s150 = scalar_lea.vmem %s1, 192
  %151 = vst [vmem:[%s150] sm:$0xff] %v147
  %s152 = scalar_lea.vmem %s1, 320
  %153 = vst [vmem:[%s152] sm:$0xff] %v147
  %s154 = scalar_lea.vmem %s1, 448
  %155 = vst [vmem:[%s154] sm:$0xff] %v147
  %s156 = scalar_lea.vmem %s1, 576
  %157 = vst [vmem:[%s156] sm:$0xff] %v147
  %s158 = scalar_lea.vmem %s1, 704
  %159 = vst [vmem:[%s158] sm:$0xff] %v147
  %s160 = scalar_lea.vmem %s1, 832
  %161 = vst [vmem:[%s160] sm:$0xff] %v147
  %s162 = scalar_lea.vmem %s1, 960
  %163 = vst [vmem:[%s162] sm:$0xff] %v147
  %s164 = scalar_lea.vmem %s0, 8
  %s165 = scalar_lea.vmem %s164, 1
  %v166 = vld [vmem:[%s165] ss:$0 sm:$0xff]
  %s167 = scalar_lea.vmem %s1, 72
  %168 = vst [vmem:[%s167] sm:$0xff] %v166
  %s169 = scalar_lea.vmem %s1, 200
  %170 = vst [vmem:[%s169] sm:$0xff] %v166
  %s171 = scalar_lea.vmem %s1, 328
  %172 = vst [vmem:[%s171] sm:$0xff] %v166
  %s173 = scalar_lea.vmem %s1, 456
  %174 = vst [vmem:[%s173] sm:$0xff] %v166
  %s175 = scalar_lea.vmem %s1, 584
  %176 = vst [vmem:[%s175] sm:$0xff] %v166
  %s177 = scalar_lea.vmem %s1, 712
  %178 = vst [vmem:[%s177] sm:$0xff] %v166
  %s179 = scalar_lea.vmem %s1, 840
  %180 = vst [vmem:[%s179] sm:$0xff] %v166
  %s181 = scalar_lea.vmem %s1, 968
  %182 = vst [vmem:[%s181] sm:$0xff] %v166
  %s183 = scalar_lea.vmem %s0, 8
  %s184 = scalar_lea.vmem %s183, 2
  %v185 = vld [vmem:[%s184] ss:$0 sm:$0xff]
  %s186 = scalar_lea.vmem %s1, 80
  %187 = vst [vmem:[%s186] sm:$0xff] %v185
  %s188 = scalar_lea.vmem %s1, 208
  %189 = vst [vmem:[%s188] sm:$0xff] %v185
  %s190 = scalar_lea.vmem %s1, 336
  %191 = vst [vmem:[%s190] sm:$0xff] %v185
  %s192 = scalar_lea.vmem %s1, 464
  %193 = vst [vmem:[%s192] sm:$0xff] %v185
  %s194 = scalar_lea.vmem %s1, 592
  %195 = vst [vmem:[%s194] sm:$0xff] %v185
  %s196 = scalar_lea.vmem %s1, 720
  %197 = vst [vmem:[%s196] sm:$0xff] %v185
  %s198 = scalar_lea.vmem %s1, 848
  %199 = vst [vmem:[%s198] sm:$0xff] %v185
  %s200 = scalar_lea.vmem %s1, 976
  %201 = vst [vmem:[%s200] sm:$0xff] %v185
  %s202 = scalar_lea.vmem %s0, 8
  %s203 = scalar_lea.vmem %s202, 3
  %v204 = vld [vmem:[%s203] ss:$0 sm:$0xff]
  %s205 = scalar_lea.vmem %s1, 88
  %206 = vst [vmem:[%s205] sm:$0xff] %v204
  %s207 = scalar_lea.vmem %s1, 216
  %208 = vst [vmem:[%s207] sm:$0xff] %v204
  %s209 = scalar_lea.vmem %s1, 344
  %210 = vst [vmem:[%s209] sm:$0xff] %v204
  %s211 = scalar_lea.vmem %s1, 472
  %212 = vst [vmem:[%s211] sm:$0xff] %v204
  %s213 = scalar_lea.vmem %s1, 600
  %214 = vst [vmem:[%s213] sm:$0xff] %v204
  %s215 = scalar_lea.vmem %s1, 728
  %216 = vst [vmem:[%s215] sm:$0xff] %v204
  %s217 = scalar_lea.vmem %s1, 856
  %218 = vst [vmem:[%s217] sm:$0xff] %v204
  %s219 = scalar_lea.vmem %s1, 984
  %220 = vst [vmem:[%s219] sm:$0xff] %v204
  %s221 = scalar_lea.vmem %s0, 8
  %s222 = scalar_lea.vmem %s221, 4
  %v223 = vld [vmem:[%s222] ss:$0 sm:$0xff]
  %s224 = scalar_lea.vmem %s1, 96
  %225 = vst [vmem:[%s224] sm:$0xff] %v223
  %s226 = scalar_lea.vmem %s1, 224
  %227 = vst [vmem:[%s226] sm:$0xff] %v223
  %s228 = scalar_lea.vmem %s1, 352
  %229 = vst [vmem:[%s228] sm:$0xff] %v223
  %s230 = scalar_lea.vmem %s1, 480
  %231 = vst [vmem:[%s230] sm:$0xff] %v223
  %s232 = scalar_lea.vmem %s1, 608
  %233 = vst [vmem:[%s232] sm:$0xff] %v223
  %s234 = scalar_lea.vmem %s1, 736
  %235 = vst [vmem:[%s234] sm:$0xff] %v223
  %s236 = scalar_lea.vmem %s1, 864
  %237 = vst [vmem:[%s236] sm:$0xff] %v223
  %s238 = scalar_lea.vmem %s1, 992
  %239 = vst [vmem:[%s238] sm:$0xff] %v223
  %s240 = scalar_lea.vmem %s0, 8
  %s241 = scalar_lea.vmem %s240, 5
  %v242 = vld [vmem:[%s241] ss:$0 sm:$0xff]
  %s243 = scalar_lea.vmem %s1, 104
  %244 = vst [vmem:[%s243] sm:$0xff] %v242
  %s245 = scalar_lea.vmem %s1, 232
  %246 = vst [vmem:[%s245] sm:$0xff] %v242
  %s247 = scalar_lea.vmem %s1, 360
  %248 = vst [vmem:[%s247] sm:$0xff] %v242
  %s249 = scalar_lea.vmem %s1, 488
  %250 = vst [vmem:[%s249] sm:$0xff] %v242
  %s251 = scalar_lea.vmem %s1, 616
  %252 = vst [vmem:[%s251] sm:$0xff] %v242
  %s253 = scalar_lea.vmem %s1, 744
  %254 = vst [vmem:[%s253] sm:$0xff] %v242
  %s255 = scalar_lea.vmem %s1, 872
  %256 = vst [vmem:[%s255] sm:$0xff] %v242
  %s257 = scalar_lea.vmem %s1, 1000
  %258 = vst [vmem:[%s257] sm:$0xff] %v242
  %s259 = scalar_lea.vmem %s0, 8
  %s260 = scalar_lea.vmem %s259, 6
  %v261 = vld [vmem:[%s260] ss:$0 sm:$0xff]
  %s262 = scalar_lea.vmem %s1, 112
  %263 = vst [vmem:[%s262] sm:$0xff] %v261
  %s264 = scalar_lea.vmem %s1, 240
  %265 = vst [vmem:[%s264] sm:$0xff] %v261
  %s266 = scalar_lea.vmem %s1, 368
  %267 = vst [vmem:[%s266] sm:$0xff] %v261
  %s268 = scalar_lea.vmem %s1, 496
  %269 = vst [vmem:[%s268] sm:$0xff] %v261
  %s270 = scalar_lea.vmem %s1, 624
  %271 = vst [vmem:[%s270] sm:$0xff] %v261
  %s272 = scalar_lea.vmem %s1, 752
  %273 = vst [vmem:[%s272] sm:$0xff] %v261
  %s274 = scalar_lea.vmem %s1, 880
  %275 = vst [vmem:[%s274] sm:$0xff] %v261
  %s276 = scalar_lea.vmem %s1, 1008
  %277 = vst [vmem:[%s276] sm:$0xff] %v261
  %s278 = scalar_lea.vmem %s0, 8
  %s279 = scalar_lea.vmem %s278, 7
  %v280 = vld [vmem:[%s279] ss:$0 sm:$0xff]
  %s281 = scalar_lea.vmem %s1, 120
  %282 = vst [vmem:[%s281] sm:$0xff] %v280
  %s283 = scalar_lea.vmem %s1, 248
  %284 = vst [vmem:[%s283] sm:$0xff] %v280
  %s285 = scalar_lea.vmem %s1, 376
  %286 = vst [vmem:[%s285] sm:$0xff] %v280
  %s287 = scalar_lea.vmem %s1, 504
  %288 = vst [vmem:[%s287] sm:$0xff] %v280
  %s289 = scalar_lea.vmem %s1, 632
  %290 = vst [vmem:[%s289] sm:$0xff] %v280
  %s291 = scalar_lea.vmem %s1, 760
  %292 = vst [vmem:[%s291] sm:$0xff] %v280
  %s293 = scalar_lea.vmem %s1, 888
  %294 = vst [vmem:[%s293] sm:$0xff] %v280
  %s295 = scalar_lea.vmem %s1, 1016
  %296 = vst [vmem:[%s295] sm:$0xff] %v280

// kernel: tile.19
$region0: #{tile.19}
  %s0 = inlined_call_operand.vmem [shape: f32[8,16,8,16], index: 0, kind: input, shape index: {}]
  %s1 = inlined_call_operand.vmem [shape: f32[128,128], index: 1, kind: output, shape index: {}]
  %v2 = vld [vmem:[%s0] ss:$8 sm:$0xf]
  %v3 = vld [vmem:[%s0] ss:$8 sm:$0xf0]
  %vm4 = vcmask 1047556
  %v5 = vsel %vm4, %v3, %v2
  %vm6 = vcmask 130048
  %7 = vst.msk [vmem:[%s1] sm:$0xff] %vm6, %v5
  %s8 = scalar_lea.vmem %s0, 64
  %v9 = vld [vmem:[%s8] ss:$8 sm:$0xf]
  %s10 = scalar_lea.vmem %s0, 64
  %v11 = vld [vmem:[%s10] ss:$8 sm:$0xf0]
  %vm12 = vcmask 1047556
  %v13 = vsel %vm12, %v11, %v9
  %vm14 = vcmask 130048
  %s15 = scalar_lea.vmem %s1, 8
  %16 = vst.msk [vmem:[%s15] sm:$0xff] %vm14, %v13
  %s17 = scalar_lea.vmem %s0, 128
  %v18 = vld [vmem:[%s17] ss:$8 sm:$0xf]
  %s19 = scalar_lea.vmem %s0, 128
  %v20 = vld [vmem:[%s19] ss:$8 sm:$0xf0]
  %vm21 = vcmask 1047556
  %v22 = vsel %vm21, %v20, %v18
  %vm23 = vcmask 130048
  %s24 = scalar_lea.vmem %s1, 16
  %25 = vst.msk [vmem:[%s24] sm:$0xff] %vm23, %v22
  %s26 = scalar_lea.vmem %s0, 192
  %v27 = vld [vmem:[%s26] ss:$8 sm:$0xf]
  %s28 = scalar_lea.vmem %s0, 192
  %v29 = vld [vmem:[%s28] ss:$8 sm:$0xf0]
  %vm30 = vcmask 1047556
  %v31 = vsel %vm30, %v29, %v27
  %vm32 = vcmask 130048
  %s33 = scalar_lea.vmem %s1, 24
  %34 = vst.msk [vmem:[%s33] sm:$0xff] %vm32, %v31
  %s35 = scalar_lea.vmem %s0, 256
  %v36 = vld [vmem:[%s35] ss:$8 sm:$0xf]
  %s37 = scalar_lea.vmem %s0, 256
  %v38 = vld [vmem:[%s37] ss:$8 sm:$0xf0]
  %vm39 = vcmask 1047556
  %v40 = vsel %vm39, %v38, %v36
  %vm41 = vcmask 130048
  %s42 = scalar_lea.vmem %s1, 32
  %43 = vst.msk [vmem:[%s42] sm:$0xff] %vm41, %v40
  %s44 = scalar_lea.vmem %s0, 320
  %v45 = vld [vmem:[%s44] ss:$8 sm:$0xf]
  %s46 = scalar_lea.vmem %s0, 320
  %v47 = vld [vmem:[%s46] ss:$8 sm:$0xf0]
  %vm48 = vcmask 1047556
  %v49 = vsel %vm48, %v47, %v45
  %vm50 = vcmask 130048
  %s51 = scalar_lea.vmem %s1, 40
  %52 = vst.msk [vmem:[%s51] sm:$0xff] %vm50, %v49
  %s53 = scalar_lea.vmem %s0, 384
  %v54 = vld [vmem:[%s53] ss:$8 sm:$0xf]
  %s55 = scalar_lea.vmem %s0, 384
  %v56 = vld [vmem:[%s55] ss:$8 sm:$0xf0]
  %vm57 = vcmask 1047556
  %v58 = vsel %vm57, %v56, %v54
  %vm59 = vcmask 130048
  %s60 = scalar_lea.vmem %s1, 48
  %61 = vst.msk [vmem:[%s60] sm:$0xff] %vm59, %v58
  %s62 = scalar_lea.vmem %s0, 448
  %v63 = vld [vmem:[%s62] ss:$8 sm:$0xf]
  %s64 = scalar_lea.vmem %s0, 448
  %v65 = vld [vmem:[%s64] ss:$8 sm:$0xf0]
  %vm66 = vcmask 1047556
  %v67 = vsel %vm66, %v65, %v63
  %vm68 = vcmask 130048
  %s69 = scalar_lea.vmem %s1, 56
  %70 = vst.msk [vmem:[%s69] sm:$0xff] %vm68, %v67
  %s71 = scalar_lea.vmem %s0, 512
  %v72 = vld [vmem:[%s71] ss:$8 sm:$0xf]
  %s73 = scalar_lea.vmem %s0, 512
  %v74 = vld [vmem:[%s73] ss:$8 sm:$0xf0]
  %vm75 = vcmask 1047556
  %v76 = vsel %vm75, %v74, %v72
  %vm77 = vcmask 130048
  %s78 = scalar_lea.vmem %s1, 64
  %79 = vst.msk [vmem:[%s78] sm:$0xff] %vm77, %v76
  %s80 = scalar_lea.vmem %s0, 576
  %v81 = vld [vmem:[%s80] ss:$8 sm:$0xf]
  %s82 = scalar_lea.vmem %s0, 576
  %v83 = vld [vmem:[%s82] ss:$8 sm:$0xf0]
  %vm84 = vcmask 1047556
  %v85 = vsel %vm84, %v83, %v81
  %vm86 = vcmask 130048
  %s87 = scalar_lea.vmem %s1, 72
  %88 = vst.msk [vmem:[%s87] sm:$0xff] %vm86, %v85
  %s89 = scalar_lea.vmem %s0, 640
  %v90 = vld [vmem:[%s89] ss:$8 sm:$0xf]
  %s91 = scalar_lea.vmem %s0, 640
  %v92 = vld [vmem:[%s91] ss:$8 sm:$0xf0]
  %vm93 = vcmask 1047556
  %v94 = vsel %vm93, %v92, %v90
  %vm95 = vcmask 130048
  %s96 = scalar_lea.vmem %s1, 80
  %97 = vst.msk [vmem:[%s96] sm:$0xff] %vm95, %v94
  %s98 = scalar_lea.vmem %s0, 704
  %v99 = vld [vmem:[%s98] ss:$8 sm:$0xf]
  %s100 = scalar_lea.vmem %s0, 704
  %v101 = vld [vmem:[%s100] ss:$8 sm:$0xf0]
  %vm102 = vcmask 1047556
  %v103 = vsel %vm102, %v101, %v99
  %vm104 = vcmask 130048
  %s105 = scalar_lea.vmem %s1, 88
  %106 = vst.msk [vmem:[%s105] sm:$0xff] %vm104, %v103
  %s107 = scalar_lea.vmem %s0, 768
  %v108 = vld [vmem:[%s107] ss:$8 sm:$0xf]
  %s109 = scalar_lea.vmem %s0, 768
  %v110 = vld [vmem:[%s109] ss:$8 sm:$0xf0]
  %vm111 = vcmask 1047556
  %v112 = vsel %vm111, %v110, %v108
  %vm113 = vcmask 130048
  %s114 = scalar_lea.vmem %s1, 96
  %115 = vst.msk [vmem:[%s114] sm:$0xff] %vm113, %v112
  %s116 = scalar_lea.vmem %s0, 832
  %v117 = vld [vmem:[%s116] ss:$8 sm:$0xf]
  %s118 = scalar_lea.vmem %s0, 832
  %v119 = vld [vmem:[%s118] ss:$8 sm:$0xf0]
  %vm120 = vcmask 1047556
  %v121 = vsel %vm120, %v119, %v117
  %vm122 = vcmask 130048
  %s123 = scalar_lea.vmem %s1, 104
  %124 = vst.msk [vmem:[%s123] sm:$0xff] %vm122, %v121
  %s125 = scalar_lea.vmem %s0, 896
  %v126 = vld [vmem:[%s125] ss:$8 sm:$0xf]
  %s127 = scalar_lea.vmem %s0, 896
  %v128 = vld [vmem:[%s127] ss:$8 sm:$0xf0]
  %vm129 = vcmask 1047556
  %v130 = vsel %vm129, %v128, %v126
  %vm131 = vcmask 130048
  %s132 = scalar_lea.vmem %s1, 112
  %133 = vst.msk [vmem:[%s132] sm:$0xff] %vm131, %v130
  %s134 = scalar_lea.vmem %s0, 960
  %v135 = vld [vmem:[%s134] ss:$8 sm:$0xf]
  %s136 = scalar_lea.vmem %s0, 960
  %v137 = vld [vmem:[%s136] ss:$8 sm:$0xf0]
  %vm138 = vcmask 1047556
  %v139 = vsel %vm138, %v137, %v135
  %vm140 = vcmask 130048
  %s141 = scalar_lea.vmem %s1, 120
  %142 = vst.msk [vmem:[%s141] sm:$0xff] %vm140, %v139
  %s143 = scalar_lea.vmem %s0, 7
  %v144 = vld [vmem:[%s143] ss:$8 sm:$0xf]
  %s145 = scalar_lea.vmem %s0, 7
  %v146 = vld [vmem:[%s145] ss:$8 sm:$0xf0]
  %vm147 = vcmask 1047556
  %v148 = vsel %vm147, %v146, %v144
  %149 = vrot.lane.b32.xlu0 %v148, 112
  %v150 = vpop.permute.xlu0 %149
  %vm151 = vcmask 1048448
  %152 = vst.msk [vmem:[%s1] sm:$0xff] %vm151, %v150
  %s153 = scalar_lea.vmem %s0, 263
  %v154 = vld [vmem:[%s153] ss:$8 sm:$0xf]
  %s155 = scalar_lea.vmem %s0, 263
  %v156 = vld [vmem:[%s155] ss:$8 sm:$0xf0]
  %vm157 = vcmask 1047556
  %v158 = vsel %vm157, %v156, %v154
  %159 = vrot.lane.b32.xlu0 %v158, 112
  %v160 = vpop.permute.xlu0 %159
  %vm161 = vcmask 1048448
  %s162 = scalar_lea.vmem %s1, 32
  %163 = vst.msk [vmem:[%s162] sm:$0xff] %vm161, %v160
  %s164 = scalar_lea.vmem %s0, 519
  %v165 = vld [vmem:[%s164] ss:$8 sm:$0xf]
  %s166 = scalar_lea.vmem %s0, 519
  %v167 = vld [vmem:[%s166] ss:$8 sm:$0xf0]
  %vm168 = vcmask 1047556
  %v169 = vsel %vm168, %v167, %v165
  %170 = vrot.lane.b32.xlu0 %v169, 112
  %v171 = vpop.permute.xlu0 %170
  %vm172 = vcmask 1048448
  %s173 = scalar_lea.vmem %s1, 64
  %174 = vst.msk [vmem:[%s173] sm:$0xff] %vm172, %v171
  %s175 = scalar_lea.vmem %s0, 775
  %v176 = vld [vmem:[%s175] ss:$8 sm:$0xf]
  %s177 = scalar_lea.vmem %s0, 775
  %v178 = vld [vmem:[%s177] ss:$8 sm:$0xf0]
  %vm179 = vcmask 1047556
  %v180 = vsel %vm179, %v178, %v176
  %181 = vrot.lane.b32.xlu0 %v180, 112
  %v182 = vpop.permute.xlu0 %181
  %vm183 = vcmask 1048448
  %s184 = scalar_lea.vmem %s1, 96
  %185 = vst.msk [vmem:[%s184] sm:$0xff] %vm183, %v182
  %s186 = scalar_lea.vmem %s0, 71
  %v187 = vld [vmem:[%s186] ss:$8 sm:$0xf]
  %s188 = scalar_lea.vmem %s0, 71
  %v189 = vld [vmem:[%s188] ss:$8 sm:$0xf0]
  %vm190 = vcmask 1047556
  %v191 = vsel %vm190, %v189, %v187
  %192 = vrot.lane.b32.xlu0 %v191, 112
  %v193 = vpop.permute.xlu0 %192
  %vm194 = vcmask 1048448
  %s195 = scalar_lea.vmem %s1, 8
  %196 = vst.msk [vmem:[%s195] sm:$0xff] %vm194, %v193
  %s197 = scalar_lea.vmem %s0, 327
  %v198 = vld [vmem:[%s197] ss:$8 sm:$0xf]
  %s199 = scalar_lea.vmem %s0, 327
  %v200 = vld [vmem:[%s199] ss:$8 sm:$0xf0]
  %vm201 = vcmask 1047556
  %v202 = vsel %vm201, %v200, %v198
  %203 = vrot.lane.b32.xlu0 %v202, 112
  %v204 = vpop.permute.xlu0 %203
  %vm205 = vcmask 1048448
  %s206 = scalar_lea.vmem %s1, 40
  %207 = vst.msk [vmem:[%s206] sm:$0xff] %vm205, %v204
  %s208 = scalar_lea.vmem %s0, 583
  %v209 = vld [vmem:[%s208] ss:$8 sm:$0xf]
  %s210 = scalar_lea.vmem %s0, 583
  %v211 = vld [vmem:[%s210] ss:$8 sm:$0xf0]
  %vm212 = vcmask 1047556
  %v213 = vsel %vm212, %v211, %v209
  %214 = vrot.lane.b32.xlu0 %v213, 112
  %v215 = vpop.permute.xlu0 %214
  %vm216 = vcmask 1048448
  %s217 = scalar_lea.vmem %s1, 72
  %218 = vst.msk [vmem:[%s217] sm:$0xff] %vm216, %v215
  %s219 = scalar_lea.vmem %s0, 839
  %v220 = vld [vmem:[%s219] ss:$8 sm:$0xf]
  %s221 = scalar_lea.vmem %s0, 839
  %v222 = vld [vmem:[%s221] ss:$8 sm:$0xf0]
  %vm223 = vcmask 1047556
  %v224 = vsel %vm223, %v222, %v220
  %225 = vrot.lane.b32.xlu0 %v224, 112
  %v226 = vpop.permute.xlu0 %225
  %vm227 = vcmask 1048448
  %s228 = scalar_lea.vmem %s1, 104
  %229 = vst.msk [vmem:[%s228] sm:$0xff] %vm227, %v226
  %s230 = scalar_lea.vmem %s0, 135
  %v231 = vld [vmem:[%s230] ss:$8 sm:$0xf]
  %s232 = scalar_lea.vmem %s0, 135
  %v233 = vld [vmem:[%s232] ss:$8 sm:$0xf0]
  %vm234 = vcmask 1047556
  %v235 = vsel %vm234, %v233, %v231
  %236 = vrot.lane.b32.xlu0 %v235, 112
  %v237 = vpop.permute.xlu0 %236
  %vm238 = vcmask 1048448
  %s239 = scalar_lea.vmem %s1, 16
  %240 = vst.msk [vmem:[%s239] sm:$0xff] %vm238, %v237
  %s241 = scalar_lea.vmem %s0, 391
  %v242 = vld [vmem:[%s241] ss:$8 sm:$0xf]
  %s243 = scalar_lea.vmem %s0, 391
  %v244 = vld [vmem:[%s243] ss:$8 sm:$0xf0]
  %vm245 = vcmask 1047556
  %v246 = vsel %vm245, %v244, %v242
  %247 = vrot.lane.b32.xlu0 %v246, 112
  %v248 = vpop.permute.xlu0 %247
  %vm249 = vcmask 1048448
  %s250 = scalar_lea.vmem %s1, 48
  %251 = vst.msk [vmem:[%s250] sm:$0xff] %vm249, %v248
  %s252 = scalar_lea.vmem %s0, 647
  %v253 = vld [vmem:[%s252] ss:$8 sm:$0xf]
  %s254 = scalar_lea.vmem %s0, 647
  %v255 = vld [vmem:[%s254] ss:$8 sm:$0xf0]
  %vm256 = vcmask 1047556
  %v257 = vsel %vm256, %v255, %v253
  %258 = vrot.lane.b32.xlu0 %v257, 112
  %v259 = vpop.permute.xlu0 %258
  %vm260 = vcmask 1048448
  %s261 = scalar_lea.vmem %s1, 80
  %262 = vst.msk [vmem:[%s261] sm:$0xff] %vm260, %v259
  %s263 = scalar_lea.vmem %s0, 903
  %v264 = vld [vmem:[%s263] ss:$8 sm:$0xf]
  %s265 = scalar_lea.vmem %s0, 903
  %v266 = vld [vmem:[%s265] ss:$8 sm:$0xf0]
  %vm267 = vcmask 1047556
  %v268 = vsel %vm267, %v266, %v264
  %269 = vrot.lane.b32.xlu0 %v268, 112
  %v270 = vpop.permute.xlu0 %269
  %vm271 = vcmask 1048448
  %s272 = scalar_lea.vmem %s1, 112
  %273 = vst.msk [vmem:[%s272] sm:$0xff] %vm271, %v270
  %s274 = scalar_lea.vmem %s0, 199
  %v275 = vld [vmem:[%s274] ss:$8 sm:$0xf]
  %s276 = scalar_lea.vmem %s0, 199
  %v277 = vld [vmem:[%s276] ss:$8 sm:$0xf0]
  %vm278 = vcmask 1047556
  %v279 = vsel %vm278, %v277, %v275
  %280 = vrot.lane.b32.xlu0 %v279, 112
  %v281 = vpop.permute.xlu0 %280
  %vm282 = vcmask 1048448
  %s283 = scalar_lea.vmem %s1, 24
  %284 = vst.msk [vmem:[%s283] sm:$0xff] %vm282, %v281
  %s285 = scalar_lea.vmem %s0, 455
  %v286 = vld [vmem:[%s285] ss:$8 sm:$0xf]
  %s287 = scalar_lea.vmem %s0, 455
  %v288 = vld [vmem:[%s287] ss:$8 sm:$0xf0]
  %vm289 = vcmask 1047556
  %v290 = vsel %vm289, %v288, %v286
  %291 = vrot.lane.b32.xlu0 %v290, 112
  %v292 = vpop.permute.xlu0 %291
  %vm293 = vcmask 1048448
  %s294 = scalar_lea.vmem %s1, 56
  %295 = vst.msk [vmem:[%s294] sm:$0xff] %vm293, %v292
  %s296 = scalar_lea.vmem %s0, 711
  %v297 = vld [vmem:[%s296] ss:$8 sm:$0xf]
  %s298 = scalar_lea.vmem %s0, 711
  %v299 = vld [vmem:[%s298] ss:$8 sm:$0xf0]
  %vm300 = vcmask 1047556
  %v301 = vsel %vm300, %v299, %v297
  %302 = vrot.lane.b32.xlu0 %v301, 112
  %v303 = vpop.permute.xlu0 %302
  %vm304 = vcmask 1048448
  %s305 = scalar_lea.vmem %s1, 88
  %306 = vst.msk [vmem:[%s305] sm:$0xff] %vm304, %v303
  %s307 = scalar_lea.vmem %s0, 967
  %v308 = vld [vmem:[%s307] ss:$8 sm:$0xf]
  %s309 = scalar_lea.vmem %s0, 967
  %v310 = vld [vmem:[%s309] ss:$8 sm:$0xf0]
  %vm311 = vcmask 1047556
  %v312 = vsel %vm311, %v310, %v308
  %313 = vrot.lane.b32.xlu0 %v312, 112
  %v314 = vpop.permute.xlu0 %313
  %vm315 = vcmask 1048448
  %s316 = scalar_lea.vmem %s1, 120
  %317 = vst.msk [vmem:[%s316] sm:$0xff] %vm315, %v314
  %s318 = scalar_lea.vmem %s0, 6
  %v319 = vld [vmem:[%s318] ss:$8 sm:$0xf]
  %s320 = scalar_lea.vmem %s0, 6
  %v321 = vld [vmem:[%s320] ss:$8 sm:$0xf0]
  %vm322 = vcmask 1047556
  %v323 = vsel %vm322, %v321, %v319
  %324 = vrot.lane.b32.xlu0 %v323, 96
  %v325 = vpop.permute.xlu0 %324
  %vm326 = vcmask 917248
  %327 = vst.msk [vmem:[%s1] sm:$0xff] %vm326, %v325
  %s328 = scalar_lea.vmem %s0, 262
  %v329 = vld [vmem:[%s328] ss:$8 sm:$0xf]
  %s330 = scalar_lea.vmem %s0, 262
  %v331 = vld [vmem:[%s330] ss:$8 sm:$0xf0]
  %vm332 = vcmask 1047556
  %v333 = vsel %vm332, %v331, %v329
  %334 = vrot.lane.b32.xlu0 %v333, 96
  %v335 = vpop.permute.xlu0 %334
  %vm336 = vcmask 917248
  %s337 = scalar_lea.vmem %s1, 32
  %338 = vst.msk [vmem:[%s337] sm:$0xff] %vm336, %v335
  %s339 = scalar_lea.vmem %s0, 518
  %v340 = vld [vmem:[%s339] ss:$8 sm:$0xf]
  %s341 = scalar_lea.vmem %s0, 518
  %v342 = vld [vmem:[%s341] ss:$8 sm:$0xf0]
  %vm343 = vcmask 1047556
  %v344 = vsel %vm343, %v342, %v340
  %345 = vrot.lane.b32.xlu0 %v344, 96
  %v346 = vpop.permute.xlu0 %345
  %vm347 = vcmask 917248
  %s348 = scalar_lea.vmem %s1, 64
  %349 = vst.msk [vmem:[%s348] sm:$0xff] %vm347, %v346
  %s350 = scalar_lea.vmem %s0, 774
  %v351 = vld [vmem:[%s350] ss:$8 sm:$0xf]
  %s352 = scalar_lea.vmem %s0, 774
  %v353 = vld [vmem:[%s352] ss:$8 sm:$0xf0]
  %vm354 = vcmask 1047556
  %v355 = vsel %vm354, %v353, %v351
  %356 = vrot.lane.b32.xlu0 %v355, 96
  %v357 = vpop.permute.xlu0 %356
  %vm358 = vcmask 917248
  %s359 = scalar_lea.vmem %s1, 96
  %360 = vst.msk [vmem:[%s359] sm:$0xff] %vm358, %v357
  %s361 = scalar_lea.vmem %s0, 70
  %v362 = vld [vmem:[%s361] ss:$8 sm:$0xf]
  %s363 = scalar_lea.vmem %s0, 70
  %v364 = vld [vmem:[%s363] ss:$8 sm:$0xf0]
  %vm365 = vcmask 1047556
  %v366 = vsel %vm365, %v364, %v362
  %367 = vrot.lane.b32.xlu0 %v366, 96
  %v368 = vpop.permute.xlu0 %367
  %vm369 = vcmask 917248
  %s370 = scalar_lea.vmem %s1, 8
  %371 = vst.msk [vmem:[%s370] sm:$0xff] %vm369, %v368
  %s372 = scalar_lea.vmem %s0, 326
  %v373 = vld [vmem:[%s372] ss:$8 sm:$0xf]
  %s374 = scalar_lea.vmem %s0, 326
  %v375 = vld [vmem:[%s374] ss:$8 sm:$0xf0]
  %vm376 = vcmask 1047556
  %v377 = vsel %vm376, %v375, %v373
  %378 = vrot.lane.b32.xlu0 %v377, 96
  %v379 = vpop.permute.xlu0 %378
  %vm380 = vcmask 917248
  %s381 = scalar_lea.vmem %s1, 40
  %382 = vst.msk [vmem:[%s381] sm:$0xff] %vm380, %v379
  %s383 = scalar_lea.vmem %s0, 582
  %v384 = vld [vmem:[%s383] ss:$8 sm:$0xf]
  %s385 = scalar_lea.vmem %s0, 582
  %v386 = vld [vmem:[%s385] ss:$8 sm:$0xf0]
  %vm387 = vcmask 1047556
  %v388 = vsel %vm387, %v386, %v384
  %389 = vrot.lane.b32.xlu0 %v388, 96
  %v390 = vpop.permute.xlu0 %389
  %vm391 = vcmask 917248
  %s392 = scalar_lea.vmem %s1, 72
  %393 = vst.msk [vmem:[%s392] sm:$0xff] %vm391, %v390
  %s394 = scalar_lea.vmem %s0, 838
  %v395 = vld [vmem:[%s394] ss:$8 sm:$0xf]
  %s396 = scalar_lea.vmem %s0, 838
  %v397 = vld [vmem:[%s396] ss:$8 sm:$0xf0]
  %vm398 = vcmask 1047556
  %v399 = vsel %vm398, %v397, %v395
  %400 = vrot.lane.b32.xlu0 %v399, 96
  %v401 = vpop.permute.xlu0 %400
  %vm402 = vcmask 917248
  %s403 = scalar_lea.vmem %s1, 104
  %404 = vst.msk [vmem:[%s403] sm:$0xff] %vm402, %v401
  %s405 = scalar_lea.vmem %s0, 134
  %v406 = vld [vmem:[%s405] ss:$8 sm:$0xf]
  %s407 = scalar_lea.vmem %s0, 134
  %v408 = vld [vmem:[%s407] ss:$8 sm:$0xf0]
  %vm409 = vcmask 1047556
  %v410 = vsel %vm409, %v408, %v406
  %411 = vrot.lane.b32.xlu0 %v410, 96
  %v412 = vpop.permute.xlu0 %411
  %vm413 = vcmask 917248
  %s414 = scalar_lea.vmem %s1, 16
  %415 = vst.msk [vmem:[%s414] sm:$0xff] %vm413, %v412
  %s416 = scalar_lea.vmem %s0, 390
  %v417 = vld [vmem:[%s416] ss:$8 sm:$0xf]
  %s418 = scalar_lea.vmem %s0, 390
  %v419 = vld [vmem:[%s418] ss:$8 sm:$0xf0]
  %vm420 = vcmask 1047556
  %v421 = vsel %vm420, %v419, %v417
  %422 = vrot.lane.b32.xlu0 %v421, 96
  %v423 = vpop.permute.xlu0 %422
  %vm424 = vcmask 917248
  %s425 = scalar_lea.vmem %s1, 48
  %426 = vst.msk [vmem:[%s425] sm:$0xff] %vm424, %v423
  %s427 = scalar_lea.vmem %s0, 646
  %v428 = vld [vmem:[%s427] ss:$8 sm:$0xf]
  %s429 = scalar_lea.vmem %s0, 646
  %v430 = vld [vmem:[%s429] ss:$8 sm:$0xf0]
  %vm431 = vcmask 1047556
  %v432 = vsel %vm431, %v430, %v428
  %433 = vrot.lane.b32.xlu0 %v432, 96
  %v434 = vpop.permute.xlu0 %433
  %vm435 = vcmask 917248
  %s436 = scalar_lea.vmem %s1, 80
  %437 = vst.msk [vmem:[%s436] sm:$0xff] %vm435, %v434
  %s438 = scalar_lea.vmem %s0, 902
  %v439 = vld [vmem:[%s438] ss:$8 sm:$0xf]
  %s440 = scalar_lea.vmem %s0, 902
  %v441 = vld [vmem:[%s440] ss:$8 sm:$0xf0]
  %vm442 = vcmask 1047556
  %v443 = vsel %vm442, %v441, %v439
  %444 = vrot.lane.b32.xlu0 %v443, 96
  %v445 = vpop.permute.xlu0 %444
  %vm446 = vcmask 917248
  %s447 = scalar_lea.vmem %s1, 112
  %448 = vst.msk [vmem:[%s447] sm:$0xff] %vm446, %v445
  %s449 = scalar_lea.vmem %s0, 198
  %v450 = vld [vmem:[%s449] ss:$8 sm:$0xf]
  %s451 = scalar_lea.vmem %s0, 198
  %v452 = vld [vmem:[%s451] ss:$8 sm:$0xf0]
  %vm453 = vcmask 1047556
  %v454 = vsel %vm453, %v452, %v450
  %455 = vrot.lane.b32.xlu0 %v454, 96
  %v456 = vpop.permute.xlu0 %455
  %vm457 = vcmask 917248
  %s458 = scalar_lea.vmem %s1, 24
  %459 = vst.msk [vmem:[%s458] sm:$0xff] %vm457, %v456
  %s460 = scalar_lea.vmem %s0, 454
  %v461 = vld [vmem:[%s460] ss:$8 sm:$0xf]
  %s462 = scalar_lea.vmem %s0, 454
  %v463 = vld [vmem:[%s462] ss:$8 sm:$0xf0]
  %vm464 = vcmask 1047556
  %v465 = vsel %vm464, %v463, %v461
  %466 = vrot.lane.b32.xlu0 %v465, 96
  %v467 = vpop.permute.xlu0 %466
  %vm468 = vcmask 917248
  %s469 = scalar_lea.vmem %s1, 56
  %470 = vst.msk [vmem:[%s469] sm:$0xff] %vm468, %v467
  %s471 = scalar_lea.vmem %s0, 710
  %v472 = vld [vmem:[%s471] ss:$8 sm:$0xf]
  %s473 = scalar_lea.vmem %s0, 710
  %v474 = vld [vmem:[%s473] ss:$8 sm:$0xf0]
  %vm475 = vcmask 1047556
  %v476 = vsel %vm475, %v474, %v472
  %477 = vrot.lane.b32.xlu0 %v476, 96
  %v478 = vpop.permute.xlu0 %477
  %vm479 = vcmask 917248
  %s480 = scalar_lea.vmem %s1, 88
  %481 = vst.msk [vmem:[%s480] sm:$0xff] %vm479, %v478
  %s482 = scalar_lea.vmem %s0, 966
  %v483 = vld [vmem:[%s482] ss:$8 sm:$0xf]
  %s484 = scalar_lea.vmem %s0, 966
  %v485 = vld [vmem:[%s484] ss:$8 sm:$0xf0]
  %vm486 = vcmask 1047556
  %v487 = vsel %vm486, %v485, %v483
  %488 = vrot.lane.b32.xlu0 %v487, 96
  %v489 = vpop.permute.xlu0 %488
  %vm490 = vcmask 917248
  %s491 = scalar_lea.vmem %s1, 120
  %492 = vst.msk [vmem:[%s491] sm:$0xff] %vm490, %v489
  %s493 = scalar_lea.vmem %s0, 5
  %v494 = vld [vmem:[%s493] ss:$8 sm:$0xf]
  %s495 = scalar_lea.vmem %s0, 5
  %v496 = vld [vmem:[%s495] ss:$8 sm:$0xf0]
  %vm497 = vcmask 1047556
  %v498 = vsel %vm497, %v496, %v494
  %499 = vrot.lane.b32.xlu0 %v498, 80
  %v500 = vpop.permute.xlu0 %499
  %vm501 = vcmask 786048
  %502 = vst.msk [vmem:[%s1] sm:$0xff] %vm501, %v500
  %s503 = scalar_lea.vmem %s0, 261
  %v504 = vld [vmem:[%s503] ss:$8 sm:$0xf]
  %s505 = scalar_lea.vmem %s0, 261
  %v506 = vld [vmem:[%s505] ss:$8 sm:$0xf0]
  %vm507 = vcmask 1047556
  %v508 = vsel %vm507, %v506, %v504
  %509 = vrot.lane.b32.xlu0 %v508, 80
  %v510 = vpop.permute.xlu0 %509
  %vm511 = vcmask 786048
  %s512 = scalar_lea.vmem %s1, 32
  %513 = vst.msk [vmem:[%s512] sm:$0xff] %vm511, %v510
  %s514 = scalar_lea.vmem %s0, 517
  %v515 = vld [vmem:[%s514] ss:$8 sm:$0xf]
  %s516 = scalar_lea.vmem %s0, 517
  %v517 = vld [vmem:[%s516] ss:$8 sm:$0xf0]
  %vm518 = vcmask 1047556
  %v519 = vsel %vm518, %v517, %v515
  %520 = vrot.lane.b32.xlu0 %v519, 80
  %v521 = vpop.permute.xlu0 %520
  %vm522 = vcmask 786048
  %s523 = scalar_lea.vmem %s1, 64
  %524 = vst.msk [vmem:[%s523] sm:$0xff] %vm522, %v521
  %s525 = scalar_lea.vmem %s0, 773
  %v526 = vld [vmem:[%s525] ss:$8 sm:$0xf]
  %s527 = scalar_lea.vmem %s0, 773
  %v528 = vld [vmem:[%s527] ss:$8 sm:$0xf0]
  %vm529 = vcmask 1047556
  %v530 = vsel %vm529, %v528, %v526
  %531 = vrot.lane.b32.xlu0 %v530, 80
  %v532 = vpop.permute.xlu0 %531
  %vm533 = vcmask 786048
  %s534 = scalar_lea.vmem %s1, 96
  %535 = vst.msk [vmem:[%s534] sm:$0xff] %vm533, %v532
  %s536 = scalar_lea.vmem %s0, 69
  %v537 = vld [vmem:[%s536] ss:$8 sm:$0xf]
  %s538 = scalar_lea.vmem %s0, 69
  %v539 = vld [vmem:[%s538] ss:$8 sm:$0xf0]
  %vm540 = vcmask 1047556
  %v541 = vsel %vm540, %v539, %v537
  %542 = vrot.lane.b32.xlu0 %v541, 80
  %v543 = vpop.permute.xlu0 %542
  %vm544 = vcmask 786048
  %s545 = scalar_lea.vmem %s1, 8
  %546 = vst.msk [vmem:[%s545] sm:$0xff] %vm544, %v543
  %s547 = scalar_lea.vmem %s0, 325
  %v548 = vld [vmem:[%s547] ss:$8 sm:$0xf]
  %s549 = scalar_lea.vmem %s0, 325
  %v550 = vld [vmem:[%s549] ss:$8 sm:$0xf0]
  %vm551 = vcmask 1047556
  %v552 = vsel %vm551, %v550, %v548
  %553 = vrot.lane.b32.xlu0 %v552, 80
  %v554 = vpop.permute.xlu0 %553
  %vm555 = vcmask 786048
  %s556 = scalar_lea.vmem %s1, 40
  %557 = vst.msk [vmem:[%s556] sm:$0xff] %vm555, %v554
  %s558 = scalar_lea.vmem %s0, 581
  %v559 = vld [vmem:[%s558] ss:$8 sm:$0xf]
  %s560 = scalar_lea.vmem %s0, 581
  %v561 = vld [vmem:[%s560] ss:$8 sm:$0xf0]
  %vm562 = vcmask 1047556
  %v563 = vsel %vm562, %v561, %v559
  %564 = vrot.lane.b32.xlu0 %v563, 80
  %v565 = vpop.permute.xlu0 %564
  %vm566 = vcmask 786048
  %s567 = scalar_lea.vmem %s1, 72
  %568 = vst.msk [vmem:[%s567] sm:$0xff] %vm566, %v565
  %s569 = scalar_lea.vmem %s0, 837
  %v570 = vld [vmem:[%s569] ss:$8 sm:$0xf]
  %s571 = scalar_lea.vmem %s0, 837
  %v572 = vld [vmem:[%s571] ss:$8 sm:$0xf0]
  %vm573 = vcmask 1047556
  %v574 = vsel %vm573, %v572, %v570
  %575 = vrot.lane.b32.xlu0 %v574, 80
  %v576 = vpop.permute.xlu0 %575
  %vm577 = vcmask 786048
  %s578 = scalar_lea.vmem %s1, 104
  %579 = vst.msk [vmem:[%s578] sm:$0xff] %vm577, %v576
  %s580 = scalar_lea.vmem %s0, 133
  %v581 = vld [vmem:[%s580] ss:$8 sm:$0xf]
  %s582 = scalar_lea.vmem %s0, 133
  %v583 = vld [vmem:[%s582] ss:$8 sm:$0xf0]
  %vm584 = vcmask 1047556
  %v585 = vsel %vm584, %v583, %v581
  %586 = vrot.lane.b32.xlu0 %v585, 80
  %v587 = vpop.permute.xlu0 %586
  %vm588 = vcmask 786048
  %s589 = scalar_lea.vmem %s1, 16
  %590 = vst.msk [vmem:[%s589] sm:$0xff] %vm588, %v587
  %s591 = scalar_lea.vmem %s0, 389
  %v592 = vld [vmem:[%s591] ss:$8 sm:$0xf]
  %s593 = scalar_lea.vmem %s0, 389
  %v594 = vld [vmem:[%s593] ss:$8 sm:$0xf0]
  %vm595 = vcmask 1047556
  %v596 = vsel %vm595, %v594, %v592
  %597 = vrot.lane.b32.xlu0 %v596, 80
  %v598 = vpop.permute.xlu0 %597
  %vm599 = vcmask 786048
  %s600 = scalar_lea.vmem %s1, 48
  %601 = vst.msk [vmem:[%s600] sm:$0xff] %vm599, %v598
  %s602 = scalar_lea.vmem %s0, 645
  %v603 = vld [vmem:[%s602] ss:$8 sm:$0xf]
  %s604 = scalar_lea.vmem %s0, 645
  %v605 = vld [vmem:[%s604] ss:$8 sm:$0xf0]
  %vm606 = vcmask 1047556
  %v607 = vsel %vm606, %v605, %v603
  %608 = vrot.lane.b32.xlu0 %v607, 80
  %v609 = vpop.permute.xlu0 %608
  %vm610 = vcmask 786048
  %s611 = scalar_lea.vmem %s1, 80
  %612 = vst.msk [vmem:[%s611] sm:$0xff] %vm610, %v609
  %s613 = scalar_lea.vmem %s0, 901
  %v614 = vld [vmem:[%s613] ss:$8 sm:$0xf]
  %s615 = scalar_lea.vmem %s0, 901
  %v616 = vld [vmem:[%s615] ss:$8 sm:$0xf0]
  %vm617 = vcmask 1047556
  %v618 = vsel %vm617, %v616, %v614
  %619 = vrot.lane.b32.xlu0 %v618, 80
  %v620 = vpop.permute.xlu0 %619
  %vm621 = vcmask 786048
  %s622 = scalar_lea.vmem %s1, 112
  %623 = vst.msk [vmem:[%s622] sm:$0xff] %vm621, %v620
  %s624 = scalar_lea.vmem %s0, 197
  %v625 = vld [vmem:[%s624] ss:$8 sm:$0xf]
  %s626 = scalar_lea.vmem %s0, 197
  %v627 = vld [vmem:[%s626] ss:$8 sm:$0xf0]
  %vm628 = vcmask 1047556
  %v629 = vsel %vm628, %v627, %v625
  %630 = vrot.lane.b32.xlu0 %v629, 80
  %v631 = vpop.permute.xlu0 %630
  %vm632 = vcmask 786048
  %s633 = scalar_lea.vmem %s1, 24
  %634 = vst.msk [vmem:[%s633] sm:$0xff] %vm632, %v631
  %s635 = scalar_lea.vmem %s0, 453
  %v636 = vld [vmem:[%s635] ss:$8 sm:$0xf]
  %s637 = scalar_lea.vmem %s0, 453
  %v638 = vld [vmem:[%s637] ss:$8 sm:$0xf0]
  %vm639 = vcmask 1047556
  %v640 = vsel %vm639, %v638, %v636
  %641 = vrot.lane.b32.xlu0 %v640, 80
  %v642 = vpop.permute.xlu0 %641
  %vm643 = vcmask 786048
  %s644 = scalar_lea.vmem %s1, 56
  %645 = vst.msk [vmem:[%s644] sm:$0xff] %vm643, %v642
  %s646 = scalar_lea.vmem %s0, 709
  %v647 = vld [vmem:[%s646] ss:$8 sm:$0xf]
  %s648 = scalar_lea.vmem %s0, 709
  %v649 = vld [vmem:[%s648] ss:$8 sm:$0xf0]
  %vm650 = vcmask 1047556
  %v651 = vsel %vm650, %v649, %v647
  %652 = vrot.lane.b32.xlu0 %v651, 80
  %v653 = vpop.permute.xlu0 %652
  %vm654 = vcmask 786048
  %s655 = scalar_lea.vmem %s1, 88
  %656 = vst.msk [vmem:[%s655] sm:$0xff] %vm654, %v653
  %s657 = scalar_lea.vmem %s0, 965
  %v658 = vld [vmem:[%s657] ss:$8 sm:$0xf]
  %s659 = scalar_lea.vmem %s0, 965
  %v660 = vld [vmem:[%s659] ss:$8 sm:$0xf0]
  %vm661 = vcmask 1047556
  %v662 = vsel %vm661, %v660, %v658
  %663 = vrot.lane.b32.xlu0 %v662, 80
  %v664 = vpop.permute.xlu0 %663
  %vm665 = vcmask 786048
  %s666 = scalar_lea.vmem %s1, 120
  %667 = vst.msk [vmem:[%s666] sm:$0xff] %vm665, %v664
  %s668 = scalar_lea.vmem %s0, 4
  %v669 = vld [vmem:[%s668] ss:$8 sm:$0xf]
  %s670 = scalar_lea.vmem %s0, 4
  %v671 = vld [vmem:[%s670] ss:$8 sm:$0xf0]
  %vm672 = vcmask 1047556
  %v673 = vsel %vm672, %v671, %v669
  %674 = vrot.lane.b32.xlu0 %v673, 64
  %v675 = vpop.permute.xlu0 %674
  %vm676 = vcmask 654848
  %677 = vst.msk [vmem:[%s1] sm:$0xff] %vm676, %v675
  %s678 = scalar_lea.vmem %s0, 260
  %v679 = vld [vmem:[%s678] ss:$8 sm:$0xf]
  %s680 = scalar_lea.vmem %s0, 260
  %v681 = vld [vmem:[%s680] ss:$8 sm:$0xf0]
  %vm682 = vcmask 1047556
  %v683 = vsel %vm682, %v681, %v679
  %684 = vrot.lane.b32.xlu0 %v683, 64
  %v685 = vpop.permute.xlu0 %684
  %vm686 = vcmask 654848
  %s687 = scalar_lea.vmem %s1, 32
  %688 = vst.msk [vmem:[%s687] sm:$0xff] %vm686, %v685
  %s689 = scalar_lea.vmem %s0, 516
  %v690 = vld [vmem:[%s689] ss:$8 sm:$0xf]
  %s691 = scalar_lea.vmem %s0, 516
  %v692 = vld [vmem:[%s691] ss:$8 sm:$0xf0]
  %vm693 = vcmask 1047556
  %v694 = vsel %vm693, %v692, %v690
  %695 = vrot.lane.b32.xlu0 %v694, 64
  %v696 = vpop.permute.xlu0 %695
  %vm697 = vcmask 654848
  %s698 = scalar_lea.vmem %s1, 64
  %699 = vst.msk [vmem:[%s698] sm:$0xff] %vm697, %v696
  %s700 = scalar_lea.vmem %s0, 772
  %v701 = vld [vmem:[%s700] ss:$8 sm:$0xf]
  %s702 = scalar_lea.vmem %s0, 772
  %v703 = vld [vmem:[%s702] ss:$8 sm:$0xf0]
  %vm704 = vcmask 1047556
  %v705 = vsel %vm704, %v703, %v701
  %706 = vrot.lane.b32.xlu0 %v705, 64
  %v707 = vpop.permute.xlu0 %706
  %vm708 = vcmask 654848
  %s709 = scalar_lea.vmem %s1, 96
  %710 = vst.msk [vmem:[%s709] sm:$0xff] %vm708, %v707
  %s711 = scalar_lea.vmem %s0, 68
  %v712 = vld [vmem:[%s711] ss:$8 sm:$0xf]
  %s713 = scalar_lea.vmem %s0, 68
  %v714 = vld [vmem:[%s713] ss:$8 sm:$0xf0]
  %vm715 = vcmask 1047556
  %v716 = vsel %vm715, %v714, %v712
  %717 = vrot.lane.b32.xlu0 %v716, 64
  %v718 = vpop.permute.xlu0 %717
  %vm719 = vcmask 654848
  %s720 = scalar_lea.vmem %s1, 8
  %721 = vst.msk [vmem:[%s720] sm:$0xff] %vm719, %v718
  %s722 = scalar_lea.vmem %s0, 324
  %v723 = vld [vmem:[%s722] ss:$8 sm:$0xf]
  %s724 = scalar_lea.vmem %s0, 324
  %v725 = vld [vmem:[%s724] ss:$8 sm:$0xf0]
  %vm726 = vcmask 1047556
  %v727 = vsel %vm726, %v725, %v723
  %728 = vrot.lane.b32.xlu0 %v727, 64
  %v729 = vpop.permute.xlu0 %728
  %vm730 = vcmask 654848
  %s731 = scalar_lea.vmem %s1, 40
  %732 = vst.msk [vmem:[%s731] sm:$0xff] %vm730, %v729
  %s733 = scalar_lea.vmem %s0, 580
  %v734 = vld [vmem:[%s733] ss:$8 sm:$0xf]
  %s735 = scalar_lea.vmem %s0, 580
  %v736 = vld [vmem:[%s735] ss:$8 sm:$0xf0]
  %vm737 = vcmask 1047556
  %v738 = vsel %vm737, %v736, %v734
  %739 = vrot.lane.b32.xlu0 %v738, 64
  %v740 = vpop.permute.xlu0 %739
  %vm741 = vcmask 654848
  %s742 = scalar_lea.vmem %s1, 72
  %743 = vst.msk [vmem:[%s742] sm:$0xff] %vm741, %v740
  %s744 = scalar_lea.vmem %s0, 836
  %v745 = vld [vmem:[%s744] ss:$8 sm:$0xf]
  %s746 = scalar_lea.vmem %s0, 836
  %v747 = vld [vmem:[%s746] ss:$8 sm:$0xf0]
  %vm748 = vcmask 1047556
  %v749 = vsel %vm748, %v747, %v745
  %750 = vrot.lane.b32.xlu0 %v749, 64
  %v751 = vpop.permute.xlu0 %750
  %vm752 = vcmask 654848
  %s753 = scalar_lea.vmem %s1, 104
  %754 = vst.msk [vmem:[%s753] sm:$0xff] %vm752, %v751
  %s755 = scalar_lea.vmem %s0, 132
  %v756 = vld [vmem:[%s755] ss:$8 sm:$0xf]
  %s757 = scalar_lea.vmem %s0, 132
  %v758 = vld [vmem:[%s757] ss:$8 sm:$0xf0]
  %vm759 = vcmask 1047556
  %v760 = vsel %vm759, %v758, %v756
  %761 = vrot.lane.b32.xlu0 %v760, 64
  %v762 = vpop.permute.xlu0 %761
  %vm763 = vcmask 654848
  %s764 = scalar_lea.vmem %s1, 16
  %765 = vst.msk [vmem:[%s764] sm:$0xff] %vm763, %v762
  %s766 = scalar_lea.vmem %s0, 388
  %v767 = vld [vmem:[%s766] ss:$8 sm:$0xf]
  %s768 = scalar_lea.vmem %s0, 388
  %v769 = vld [vmem:[%s768] ss:$8 sm:$0xf0]
  %vm770 = vcmask 1047556
  %v771 = vsel %vm770, %v769, %v767
  %772 = vrot.lane.b32.xlu0 %v771, 64
  %v773 = vpop.permute.xlu0 %772
  %vm774 = vcmask 654848
  %s775 = scalar_lea.vmem %s1, 48
  %776 = vst.msk [vmem:[%s775] sm:$0xff] %vm774, %v773
  %s777 = scalar_lea.vmem %s0, 644
  %v778 = vld [vmem:[%s777] ss:$8 sm:$0xf]
  %s779 = scalar_lea.vmem %s0, 644
  %v780 = vld [vmem:[%s779] ss:$8 sm:$0xf0]
  %vm781 = vcmask 1047556
  %v782 = vsel %vm781, %v780, %v778
  %783 = vrot.lane.b32.xlu0 %v782, 64
  %v784 = vpop.permute.xlu0 %783
  %vm785 = vcmask 654848
  %s786 = scalar_lea.vmem %s1, 80
  %787 = vst.msk [vmem:[%s786] sm:$0xff] %vm785, %v784
  %s788 = scalar_lea.vmem %s0, 900
  %v789 = vld [vmem:[%s788] ss:$8 sm:$0xf]
  %s790 = scalar_lea.vmem %s0, 900
  %v791 = vld [vmem:[%s790] ss:$8 sm:$0xf0]
  %vm792 = vcmask 1047556
  %v793 = vsel %vm792, %v791, %v789
  %794 = vrot.lane.b32.xlu0 %v793, 64
  %v795 = vpop.permute.xlu0 %794
  %vm796 = vcmask 654848
  %s797 = scalar_lea.vmem %s1, 112
  %798 = vst.msk [vmem:[%s797] sm:$0xff] %vm796, %v795
  %s799 = scalar_lea.vmem %s0, 196
  %v800 = vld [vmem:[%s799] ss:$8 sm:$0xf]
  %s801 = scalar_lea.vmem %s0, 196
  %v802 = vld [vmem:[%s801] ss:$8 sm:$0xf0]
  %vm803 = vcmask 1047556
  %v804 = vsel %vm803, %v802, %v800
  %805 = vrot.lane.b32.xlu0 %v804, 64
  %v806 = vpop.permute.xlu0 %805
  %vm807 = vcmask 654848
  %s808 = scalar_lea.vmem %s1, 24
  %809 = vst.msk [vmem:[%s808] sm:$0xff] %vm807, %v806
  %s810 = scalar_lea.vmem %s0, 452
  %v811 = vld [vmem:[%s810] ss:$8 sm:$0xf]
  %s812 = scalar_lea.vmem %s0, 452
  %v813 = vld [vmem:[%s812] ss:$8 sm:$0xf0]
  %vm814 = vcmask 1047556
  %v815 = vsel %vm814, %v813, %v811
  %816 = vrot.lane.b32.xlu0 %v815, 64
  %v817 = vpop.permute.xlu0 %816
  %vm818 = vcmask 654848
  %s819 = scalar_lea.vmem %s1, 56
  %820 = vst.msk [vmem:[%s819] sm:$0xff] %vm818, %v817
  %s821 = scalar_lea.vmem %s0, 708
  %v822 = vld [vmem:[%s821] ss:$8 sm:$0xf]
  %s823 = scalar_lea.vmem %s0, 708
  %v824 = vld [vmem:[%s823] ss:$8 sm:$0xf0]
  %vm825 = vcmask 1047556
  %v826 = vsel %vm825, %v824, %v822
  %827 = vrot.lane.b32.xlu0 %v826, 64
  %v828 = vpop.permute.xlu0 %827
  %vm829 = vcmask 654848
  %s830 = scalar_lea.vmem %s1, 88
  %831 = vst.msk [vmem:[%s830] sm:$0xff] %vm829, %v828
  %s832 = scalar_lea.vmem %s0, 964
  %v833 = vld [vmem:[%s832] ss:$8 sm:$0xf]
  %s834 = scalar_lea.vmem %s0, 964
  %v835 = vld [vmem:[%s834] ss:$8 sm:$0xf0]
  %vm836 = vcmask 1047556
  %v837 = vsel %vm836, %v835, %v833
  %838 = vrot.lane.b32.xlu0 %v837, 64
  %v839 = vpop.permute.xlu0 %838
  %vm840 = vcmask 654848
  %s841 = scalar_lea.vmem %s1, 120
  %842 = vst.msk [vmem:[%s841] sm:$0xff] %vm840, %v839
  %s843 = scalar_lea.vmem %s0, 3
  %v844 = vld [vmem:[%s843] ss:$8 sm:$0xf]
  %s845 = scalar_lea.vmem %s0, 3
  %v846 = vld [vmem:[%s845] ss:$8 sm:$0xf0]
  %vm847 = vcmask 1047556
  %v848 = vsel %vm847, %v846, %v844
  %849 = vrot.lane.b32.xlu0 %v848, 48
  %v850 = vpop.permute.xlu0 %849
  %vm851 = vcmask 523648
  %852 = vst.msk [vmem:[%s1] sm:$0xff] %vm851, %v850
  %s853 = scalar_lea.vmem %s0, 259
  %v854 = vld [vmem:[%s853] ss:$8 sm:$0xf]
  %s855 = scalar_lea.vmem %s0, 259
  %v856 = vld [vmem:[%s855] ss:$8 sm:$0xf0]
  %vm857 = vcmask 1047556
  %v858 = vsel %vm857, %v856, %v854
  %859 = vrot.lane.b32.xlu0 %v858, 48
  %v860 = vpop.permute.xlu0 %859
  %vm861 = vcmask 523648
  %s862 = scalar_lea.vmem %s1, 32
  %863 = vst.msk [vmem:[%s862] sm:$0xff] %vm861, %v860
  %s864 = scalar_lea.vmem %s0, 515
  %v865 = vld [vmem:[%s864] ss:$8 sm:$0xf]
  %s866 = scalar_lea.vmem %s0, 515
  %v867 = vld [vmem:[%s866] ss:$8 sm:$0xf0]
  %vm868 = vcmask 1047556
  %v869 = vsel %vm868, %v867, %v865
  %870 = vrot.lane.b32.xlu0 %v869, 48
  %v871 = vpop.permute.xlu0 %870
  %vm872 = vcmask 523648
  %s873 = scalar_lea.vmem %s1, 64
  %874 = vst.msk [vmem:[%s873] sm:$0xff] %vm872, %v871
  %s875 = scalar_lea.vmem %s0, 771
  %v876 = vld [vmem:[%s875] ss:$8 sm:$0xf]
  %s877 = scalar_lea.vmem %s0, 771
  %v878 = vld [vmem:[%s877] ss:$8 sm:$0xf0]
  %vm879 = vcmask 1047556
  %v880 = vsel %vm879, %v878, %v876
  %881 = vrot.lane.b32.xlu0 %v880, 48
  %v882 = vpop.permute.xlu0 %881
  %vm883 = vcmask 523648
  %s884 = scalar_lea.vmem %s1, 96
  %885 = vst.msk [vmem:[%s884] sm:$0xff] %vm883, %v882
  %s886 = scalar_lea.vmem %s0, 67
  %v887 = vld [vmem:[%s886] ss:$8 sm:$0xf]
  %s888 = scalar_lea.vmem %s0, 67
  %v889 = vld [vmem:[%s888] ss:$8 sm:$0xf0]
  %vm890 = vcmask 1047556
  %v891 = vsel %vm890, %v889, %v887
  %892 = vrot.lane.b32.xlu0 %v891, 48
  %v893 = vpop.permute.xlu0 %892
  %vm894 = vcmask 523648
  %s895 = scalar_lea.vmem %s1, 8
  %896 = vst.msk [vmem:[%s895] sm:$0xff] %vm894, %v893
  %s897 = scalar_lea.vmem %s0, 323
  %v898 = vld [vmem:[%s897] ss:$8 sm:$0xf]
  %s899 = scalar_lea.vmem %s0, 323
  %v900 = vld [vmem:[%s899] ss:$8 sm:$0xf0]
  %vm901 = vcmask 1047556
  %v902 = vsel %vm901, %v900, %v898
  %903 = vrot.lane.b32.xlu0 %v902, 48
  %v904 = vpop.permute.xlu0 %903
  %vm905 = vcmask 523648
  %s906 = scalar_lea.vmem %s1, 40
  %907 = vst.msk [vmem:[%s906] sm:$0xff] %vm905, %v904
  %s908 = scalar_lea.vmem %s0, 579
  %v909 = vld [vmem:[%s908] ss:$8 sm:$0xf]
  %s910 = scalar_lea.vmem %s0, 579
  %v911 = vld [vmem:[%s910] ss:$8 sm:$0xf0]
  %vm912 = vcmask 1047556
  %v913 = vsel %vm912, %v911, %v909
  %914 = vrot.lane.b32.xlu0 %v913, 48
  %v915 = vpop.permute.xlu0 %914
  %vm916 = vcmask 523648
  %s917 = scalar_lea.vmem %s1, 72
  %918 = vst.msk [vmem:[%s917] sm:$0xff] %vm916, %v915
  %s919 = scalar_lea.vmem %s0, 835
  %v920 = vld [vmem:[%s919] ss:$8 sm:$0xf]
  %s921 = scalar_lea.vmem %s0, 835
  %v922 = vld [vmem:[%s921] ss:$8 sm:$0xf0]
  %vm923 = vcmask 1047556
  %v924 = vsel %vm923, %v922, %v920
  %925 = vrot.lane.b32.xlu0 %v924, 48
  %v926 = vpop.permute.xlu0 %925
  %vm927 = vcmask 523648
  %s928 = scalar_lea.vmem %s1, 104
  %929 = vst.msk [vmem:[%s928] sm:$0xff] %vm927, %v926
  %s930 = scalar_lea.vmem %s0, 131
  %v931 = vld [vmem:[%s930] ss:$8 sm:$0xf]
  %s932 = scalar_lea.vmem %s0, 131
  %v933 = vld [vmem:[%s932] ss:$8 sm:$0xf0]
  %vm934 = vcmask 1047556
  %v935 = vsel %vm934, %v933, %v931
  %936 = vrot.lane.b32.xlu0 %v935, 48
  %v937 = vpop.permute.xlu0 %936
  %vm938 = vcmask 523648
  %s939 = scalar_lea.vmem %s1, 16
  %940 = vst.msk [vmem:[%s939] sm:$0xff] %vm938, %v937
  %s941 = scalar_lea.vmem %s0, 387
  %v942 = vld [vmem:[%s941] ss:$8 sm:$0xf]
  %s943 = scalar_lea.vmem %s0, 387
  %v944 = vld [vmem:[%s943] ss:$8 sm:$0xf0]
  %vm945 = vcmask 1047556
  %v946 = vsel %vm945, %v944, %v942
  %947 = vrot.lane.b32.xlu0 %v946, 48
  %v948 = vpop.permute.xlu0 %947
  %vm949 = vcmask 523648
  %s950 = scalar_lea.vmem %s1, 48
  %951 = vst.msk [vmem:[%s950] sm:$0xff] %vm949, %v948
  %s952 = scalar_lea.vmem %s0, 643
  %v953 = vld [vmem:[%s952] ss:$8 sm:$0xf]
  %s954 = scalar_lea.vmem %s0, 643
  %v955 = vld [vmem:[%s954] ss:$8 sm:$0xf0]
  %vm956 = vcmask 1047556
  %v957 = vsel %vm956, %v955, %v953
  %958 = vrot.lane.b32.xlu0 %v957, 48
  %v959 = vpop.permute.xlu0 %958
  %vm960 = vcmask 523648
  %s961 = scalar_lea.vmem %s1, 80
  %962 = vst.msk [vmem:[%s961] sm:$0xff] %vm960, %v959
  %s963 = scalar_lea.vmem %s0, 899
  %v964 = vld [vmem:[%s963] ss:$8 sm:$0xf]
  %s965 = scalar_lea.vmem %s0, 899
  %v966 = vld [vmem:[%s965] ss:$8 sm:$0xf0]
  %vm967 = vcmask 1047556
  %v968 = vsel %vm967, %v966, %v964
  %969 = vrot.lane.b32.xlu0 %v968, 48
  %v970 = vpop.permute.xlu0 %969
  %vm971 = vcmask 523648
  %s972 = scalar_lea.vmem %s1, 112
  %973 = vst.msk [vmem:[%s972] sm:$0xff] %vm971, %v970
  %s974 = scalar_lea.vmem %s0, 195
  %v975 = vld [vmem:[%s974] ss:$8 sm:$0xf]
  %s976 = scalar_lea.vmem %s0, 195
  %v977 = vld [vmem:[%s976] ss:$8 sm:$0xf0]
  %vm978 = vcmask 1047556
  %v979 = vsel %vm978, %v977, %v975
  %980 = vrot.lane.b32.xlu0 %v979, 48
  %v981 = vpop.permute.xlu0 %980
  %vm982 = vcmask 523648
  %s983 = scalar_lea.vmem %s1, 24
  %984 = vst.msk [vmem:[%s983] sm:$0xff] %vm982, %v981
  %s985 = scalar_lea.vmem %s0, 451
  %v986 = vld [vmem:[%s985] ss:$8 sm:$0xf]
  %s987 = scalar_lea.vmem %s0, 451
  %v988 = vld [vmem:[%s987] ss:$8 sm:$0xf0]
  %vm989 = vcmask 1047556
  %v990 = vsel %vm989, %v988, %v986
  %991 = vrot.lane.b32.xlu0 %v990, 48
  %v992 = vpop.permute.xlu0 %991
  %vm993 = vcmask 523648
  %s994 = scalar_lea.vmem %s1, 56
  %995 = vst.msk [vmem:[%s994] sm:$0xff] %vm993, %v992
  %s996 = scalar_lea.vmem %s0, 707
  %v997 = vld [vmem:[%s996] ss:$8 sm:$0xf]
  %s998 = scalar_lea.vmem %s0, 707
  %v999 = vld [vmem:[%s998] ss:$8 sm:$0xf0]
  %vm1000 = vcmask 1047556
  %v1001 = vsel %vm1000, %v999, %v997
  %1002 = vrot.lane.b32.xlu0 %v1001, 48
  %v1003 = vpop.permute.xlu0 %1002
  %vm1004 = vcmask 523648
  %s1005 = scalar_lea.vmem %s1, 88
  %1006 = vst.msk [vmem:[%s1005] sm:$0xff] %vm1004, %v1003
  %s1007 = scalar_lea.vmem %s0, 963
  %v1008 = vld [vmem:[%s1007] ss:$8 sm:$0xf]
  %s1009 = scalar_lea.vmem %s0, 963
  %v1010 = vld [vmem:[%s1009] ss:$8 sm:$0xf0]
  %vm1011 = vcmask 1047556
  %v1012 = vsel %vm1011, %v1010, %v1008
  %1013 = vrot.lane.b32.xlu0 %v1012, 48
  %v1014 = vpop.permute.xlu0 %1013
  %vm1015 = vcmask 523648
  %s1016 = scalar_lea.vmem %s1, 120
  %1017 = vst.msk [vmem:[%s1016] sm:$0xff] %vm1015, %v1014
  %s1018 = scalar_lea.vmem %s0, 2
  %v1019 = vld [vmem:[%s1018] ss:$8 sm:$0xf]
  %s1020 = scalar_lea.vmem %s0, 2
  %v1021 = vld [vmem:[%s1020] ss:$8 sm:$0xf0]
  %vm1022 = vcmask 1047556
  %v1023 = vsel %vm1022, %v1021, %v1019
  %1024 = vrot.lane.b32.xlu0 %v1023, 32
  %v1025 = vpop.permute.xlu0 %1024
  %vm1026 = vcmask 392448
  %1027 = vst.msk [vmem:[%s1] sm:$0xff] %vm1026, %v1025
  %s1028 = scalar_lea.vmem %s0, 258
  %v1029 = vld [vmem:[%s1028] ss:$8 sm:$0xf]
  %s1030 = scalar_lea.vmem %s0, 258
  %v1031 = vld [vmem:[%s1030] ss:$8 sm:$0xf0]
  %vm1032 = vcmask 1047556
  %v1033 = vsel %vm1032, %v1031, %v1029
  %1034 = vrot.lane.b32.xlu0 %v1033, 32
  %v1035 = vpop.permute.xlu0 %1034
  %vm1036 = vcmask 392448
  %s1037 = scalar_lea.vmem %s1, 32
  %1038 = vst.msk [vmem:[%s1037] sm:$0xff] %vm1036, %v1035
  %s1039 = scalar_lea.vmem %s0, 514
  %v1040 = vld [vmem:[%s1039] ss:$8 sm:$0xf]
  %s1041 = scalar_lea.vmem %s0, 514
  %v1042 = vld [vmem:[%s1041] ss:$8 sm:$0xf0]
  %vm1043 = vcmask 1047556
  %v1044 = vsel %vm1043, %v1042, %v1040
  %1045 = vrot.lane.b32.xlu0 %v1044, 32
  %v1046 = vpop.permute.xlu0 %1045
  %vm1047 = vcmask 392448
  %s1048 = scalar_lea.vmem %s1, 64
  %1049 = vst.msk [vmem:[%s1048] sm:$0xff] %vm1047, %v1046
  %s1050 = scalar_lea.vmem %s0, 770
  %v1051 = vld [vmem:[%s1050] ss:$8 sm:$0xf]
  %s1052 = scalar_lea.vmem %s0, 770
  %v1053 = vld [vmem:[%s1052] ss:$8 sm:$0xf0]
  %vm1054 = vcmask 1047556
  %v1055 = vsel %vm1054, %v1053, %v1051
  %1056 = vrot.lane.b32.xlu0 %v1055, 32
  %v1057 = vpop.permute.xlu0 %1056
  %vm1058 = vcmask 392448
  %s1059 = scalar_lea.vmem %s1, 96
  %1060 = vst.msk [vmem:[%s1059] sm:$0xff] %vm1058, %v1057
  %s1061 = scalar_lea.vmem %s0, 66
  %v1062 = vld [vmem:[%s1061] ss:$8 sm:$0xf]
  %s1063 = scalar_lea.vmem %s0, 66
  %v1064 = vld [vmem:[%s1063] ss:$8 sm:$0xf0]
  %vm1065 = vcmask 1047556
  %v1066 = vsel %vm1065, %v1064, %v1062
  %1067 = vrot.lane.b32.xlu0 %v1066, 32
  %v1068 = vpop.permute.xlu0 %1067
  %vm1069 = vcmask 392448
  %s1070 = scalar_lea.vmem %s1, 8
  %1071 = vst.msk [vmem:[%s1070] sm:$0xff] %vm1069, %v1068
  %s1072 = scalar_lea.vmem %s0, 322
  %v1073 = vld [vmem:[%s1072] ss:$8 sm:$0xf]
  %s1074 = scalar_lea.vmem %s0, 322
  %v1075 = vld [vmem:[%s1074] ss:$8 sm:$0xf0]
  %vm1076 = vcmask 1047556
  %v1077 = vsel %vm1076, %v1075, %v1073
  %1078 = vrot.lane.b32.xlu0 %v1077, 32
  %v1079 = vpop.permute.xlu0 %1078
  %vm1080 = vcmask 392448
  %s1081 = scalar_lea.vmem %s1, 40
  %1082 = vst.msk [vmem:[%s1081] sm:$0xff] %vm1080, %v1079
  %s1083 = scalar_lea.vmem %s0, 578
  %v1084 = vld [vmem:[%s1083] ss:$8 sm:$0xf]
  %s1085 = scalar_lea.vmem %s0, 578
  %v1086 = vld [vmem:[%s1085] ss:$8 sm:$0xf0]
  %vm1087 = vcmask 1047556
  %v1088 = vsel %vm1087, %v1086, %v1084
  %1089 = vrot.lane.b32.xlu0 %v1088, 32
  %v1090 = vpop.permute.xlu0 %1089
  %vm1091 = vcmask 392448
  %s1092 = scalar_lea.vmem %s1, 72
  %1093 = vst.msk [vmem:[%s1092] sm:$0xff] %vm1091, %v1090
  %s1094 = scalar_lea.vmem %s0, 834
  %v1095 = vld [vmem:[%s1094] ss:$8 sm:$0xf]
  %s1096 = scalar_lea.vmem %s0, 834
  %v1097 = vld [vmem:[%s1096] ss:$8 sm:$0xf0]
  %vm1098 = vcmask 1047556
  %v1099 = vsel %vm1098, %v1097, %v1095
  %1100 = vrot.lane.b32.xlu0 %v1099, 32
  %v1101 = vpop.permute.xlu0 %1100
  %vm1102 = vcmask 392448
  %s1103 = scalar_lea.vmem %s1, 104
  %1104 = vst.msk [vmem:[%s1103] sm:$0xff] %vm1102, %v1101
  %s1105 = scalar_lea.vmem %s0, 130
  %v1106 = vld [vmem:[%s1105] ss:$8 sm:$0xf]
  %s1107 = scalar_lea.vmem %s0, 130
  %v1108 = vld [vmem:[%s1107] ss:$8 sm:$0xf0]
  %vm1109 = vcmask 1047556
  %v1110 = vsel %vm1109, %v1108, %v1106
  %1111 = vrot.lane.b32.xlu0 %v1110, 32
  %v1112 = vpop.permute.xlu0 %1111
  %vm1113 = vcmask 392448
  %s1114 = scalar_lea.vmem %s1, 16
  %1115 = vst.msk [vmem:[%s1114] sm:$0xff] %vm1113, %v1112
  %s1116 = scalar_lea.vmem %s0, 386
  %v1117 = vld [vmem:[%s1116] ss:$8 sm:$0xf]
  %s1118 = scalar_lea.vmem %s0, 386
  %v1119 = vld [vmem:[%s1118] ss:$8 sm:$0xf0]
  %vm1120 = vcmask 1047556
  %v1121 = vsel %vm1120, %v1119, %v1117
  %1122 = vrot.lane.b32.xlu0 %v1121, 32
  %v1123 = vpop.permute.xlu0 %1122
  %vm1124 = vcmask 392448
  %s1125 = scalar_lea.vmem %s1, 48
  %1126 = vst.msk [vmem:[%s1125] sm:$0xff] %vm1124, %v1123
  %s1127 = scalar_lea.vmem %s0, 642
  %v1128 = vld [vmem:[%s1127] ss:$8 sm:$0xf]
  %s1129 = scalar_lea.vmem %s0, 642
  %v1130 = vld [vmem:[%s1129] ss:$8 sm:$0xf0]
  %vm1131 = vcmask 1047556
  %v1132 = vsel %vm1131, %v1130, %v1128
  %1133 = vrot.lane.b32.xlu0 %v1132, 32
  %v1134 = vpop.permute.xlu0 %1133
  %vm1135 = vcmask 392448
  %s1136 = scalar_lea.vmem %s1, 80
  %1137 = vst.msk [vmem:[%s1136] sm:$0xff] %vm1135, %v1134
  %s1138 = scalar_lea.vmem %s0, 898
  %v1139 = vld [vmem:[%s1138] ss:$8 sm:$0xf]
  %s1140 = scalar_lea.vmem %s0, 898
  %v1141 = vld [vmem:[%s1140] ss:$8 sm:$0xf0]
  %vm1142 = vcmask 1047556
  %v1143 = vsel %vm1142, %v1141, %v1139
  %1144 = vrot.lane.b32.xlu0 %v1143, 32
  %v1145 = vpop.permute.xlu0 %1144
  %vm1146 = vcmask 392448
  %s1147 = scalar_lea.vmem %s1, 112
  %1148 = vst.msk [vmem:[%s1147] sm:$0xff] %vm1146, %v1145
  %s1149 = scalar_lea.vmem %s0, 194
  %v1150 = vld [vmem:[%s1149] ss:$8 sm:$0xf]
  %s1151 = scalar_lea.vmem %s0, 194
  %v1152 = vld [vmem:[%s1151] ss:$8 sm:$0xf0]
  %vm1153 = vcmask 1047556
  %v1154 = vsel %vm1153, %v1152, %v1150
  %1155 = vrot.lane.b32.xlu0 %v1154, 32
  %v1156 = vpop.permute.xlu0 %1155
  %vm1157 = vcmask 392448
  %s1158 = scalar_lea.vmem %s1, 24
  %1159 = vst.msk [vmem:[%s1158] sm:$0xff] %vm1157, %v1156
  %s1160 = scalar_lea.vmem %s0, 450
  %v1161 = vld [vmem:[%s1160] ss:$8 sm:$0xf]
  %s1162 = scalar_lea.vmem %s0, 450
  %v1163 = vld [vmem:[%s1162] ss:$8 sm:$0xf0]
  %vm1164 = vcmask 1047556
  %v1165 = vsel %vm1164, %v1163, %v1161
  %1166 = vrot.lane.b32.xlu0 %v1165, 32
  %v1167 = vpop.permute.xlu0 %1166
  %vm1168 = vcmask 392448
  %s1169 = scalar_lea.vmem %s1, 56
  %1170 = vst.msk [vmem:[%s1169] sm:$0xff] %vm1168, %v1167
  %s1171 = scalar_lea.vmem %s0, 706
  %v1172 = vld [vmem:[%s1171] ss:$8 sm:$0xf]
  %s1173 = scalar_lea.vmem %s0, 706
  %v1174 = vld [vmem:[%s1173] ss:$8 sm:$0xf0]
  %vm1175 = vcmask 1047556
  %v1176 = vsel %vm1175, %v1174, %v1172
  %1177 = vrot.lane.b32.xlu0 %v1176, 32
  %v1178 = vpop.permute.xlu0 %1177
  %vm1179 = vcmask 392448
  %s1180 = scalar_lea.vmem %s1, 88
  %1181 = vst.msk [vmem:[%s1180] sm:$0xff] %vm1179, %v1178
  %s1182 = scalar_lea.vmem %s0, 962
  %v1183 = vld [vmem:[%s1182] ss:$8 sm:$0xf]
  %s1184 = scalar_lea.vmem %s0, 962
  %v1185 = vld [vmem:[%s1184] ss:$8 sm:$0xf0]
  %vm1186 = vcmask 1047556
  %v1187 = vsel %vm1186, %v1185, %v1183
  %1188 = vrot.lane.b32.xlu0 %v1187, 32
  %v1189 = vpop.permute.xlu0 %1188
  %vm1190 = vcmask 392448
  %s1191 = scalar_lea.vmem %s1, 120
  %1192 = vst.msk [vmem:[%s1191] sm:$0xff] %vm1190, %v1189
  %s1193 = scalar_lea.vmem %s0, 1
  %v1194 = vld [vmem:[%s1193] ss:$8 sm:$0xf]
  %s1195 = scalar_lea.vmem %s0, 1
  %v1196 = vld [vmem:[%s1195] ss:$8 sm:$0xf0]
  %vm1197 = vcmask 1047556
  %v1198 = vsel %vm1197, %v1196, %v1194
  %1199 = vrot.lane.b32.xlu0 %v1198, 16
  %v1200 = vpop.permute.xlu0 %1199
  %vm1201 = vcmask 261248
  %1202 = vst.msk [vmem:[%s1] sm:$0xff] %vm1201, %v1200
  %s1203 = scalar_lea.vmem %s0, 257
  %v1204 = vld [vmem:[%s1203] ss:$8 sm:$0xf]
  %s1205 = scalar_lea.vmem %s0, 257
  %v1206 = vld [vmem:[%s1205] ss:$8 sm:$0xf0]
  %vm1207 = vcmask 1047556
  %v1208 = vsel %vm1207, %v1206, %v1204
  %1209 = vrot.lane.b32.xlu0 %v1208, 16
  %v1210 = vpop.permute.xlu0 %1209
  %vm1211 = vcmask 261248
  %s1212 = scalar_lea.vmem %s1, 32
  %1213 = vst.msk [vmem:[%s1212] sm:$0xff] %vm1211, %v1210
  %s1214 = scalar_lea.vmem %s0, 513
  %v1215 = vld [vmem:[%s1214] ss:$8 sm:$0xf]
  %s1216 = scalar_lea.vmem %s0, 513
  %v1217 = vld [vmem:[%s1216] ss:$8 sm:$0xf0]
  %vm1218 = vcmask 1047556
  %v1219 = vsel %vm1218, %v1217, %v1215
  %1220 = vrot.lane.b32.xlu0 %v1219, 16
  %v1221 = vpop.permute.xlu0 %1220
  %vm1222 = vcmask 261248
  %s1223 = scalar_lea.vmem %s1, 64
  %1224 = vst.msk [vmem:[%s1223] sm:$0xff] %vm1222, %v1221
  %s1225 = scalar_lea.vmem %s0, 769
  %v1226 = vld [vmem:[%s1225] ss:$8 sm:$0xf]
  %s1227 = scalar_lea.vmem %s0, 769
  %v1228 = vld [vmem:[%s1227] ss:$8 sm:$0xf0]
  %vm1229 = vcmask 1047556
  %v1230 = vsel %vm1229, %v1228, %v1226
  %1231 = vrot.lane.b32.xlu0 %v1230, 16
  %v1232 = vpop.permute.xlu0 %1231
  %vm1233 = vcmask 261248
  %s1234 = scalar_lea.vmem %s1, 96
  %1235 = vst.msk [vmem:[%s1234] sm:$0xff] %vm1233, %v1232
  %s1236 = scalar_lea.vmem %s0, 65
  %v1237 = vld [vmem:[%s1236] ss:$8 sm:$0xf]
  %s1238 = scalar_lea.vmem %s0, 65
  %v1239 = vld [vmem:[%s1238] ss:$8 sm:$0xf0]
  %vm1240 = vcmask 1047556
  %v1241 = vsel %vm1240, %v1239, %v1237
  %1242 = vrot.lane.b32.xlu0 %v1241, 16
  %v1243 = vpop.permute.xlu0 %1242
  %vm1244 = vcmask 261248
  %s1245 = scalar_lea.vmem %s1, 8
  %1246 = vst.msk [vmem:[%s1245] sm:$0xff] %vm1244, %v1243
  %s1247 = scalar_lea.vmem %s0, 321
  %v1248 = vld [vmem:[%s1247] ss:$8 sm:$0xf]
  %s1249 = scalar_lea.vmem %s0, 321
  %v1250 = vld [vmem:[%s1249] ss:$8 sm:$0xf0]
  %vm1251 = vcmask 1047556
  %v1252 = vsel %vm1251, %v1250, %v1248
  %1253 = vrot.lane.b32.xlu0 %v1252, 16
  %v1254 = vpop.permute.xlu0 %1253
  %vm1255 = vcmask 261248
  %s1256 = scalar_lea.vmem %s1, 40
  %1257 = vst.msk [vmem:[%s1256] sm:$0xff] %vm1255, %v1254
  %s1258 = scalar_lea.vmem %s0, 577
  %v1259 = vld [vmem:[%s1258] ss:$8 sm:$0xf]
  %s1260 = scalar_lea.vmem %s0, 577
  %v1261 = vld [vmem:[%s1260] ss:$8 sm:$0xf0]
  %vm1262 = vcmask 1047556
  %v1263 = vsel %vm1262, %v1261, %v1259
  %1264 = vrot.lane.b32.xlu0 %v1263, 16
  %v1265 = vpop.permute.xlu0 %1264
  %vm1266 = vcmask 261248
  %s1267 = scalar_lea.vmem %s1, 72
  %1268 = vst.msk [vmem:[%s1267] sm:$0xff] %vm1266, %v1265
  %s1269 = scalar_lea.vmem %s0, 833
  %v1270 = vld [vmem:[%s1269] ss:$8 sm:$0xf]
  %s1271 = scalar_lea.vmem %s0, 833
  %v1272 = vld [vmem:[%s1271] ss:$8 sm:$0xf0]
  %vm1273 = vcmask 1047556
  %v1274 = vsel %vm1273, %v1272, %v1270
  %1275 = vrot.lane.b32.xlu0 %v1274, 16
  %v1276 = vpop.permute.xlu0 %1275
  %vm1277 = vcmask 261248
  %s1278 = scalar_lea.vmem %s1, 104
  %1279 = vst.msk [vmem:[%s1278] sm:$0xff] %vm1277, %v1276
  %s1280 = scalar_lea.vmem %s0, 129
  %v1281 = vld [vmem:[%s1280] ss:$8 sm:$0xf]
  %s1282 = scalar_lea.vmem %s0, 129
  %v1283 = vld [vmem:[%s1282] ss:$8 sm:$0xf0]
  %vm1284 = vcmask 1047556
  %v1285 = vsel %vm1284, %v1283, %v1281
  %1286 = vrot.lane.b32.xlu0 %v1285, 16
  %v1287 = vpop.permute.xlu0 %1286
  %vm1288 = vcmask 261248
  %s1289 = scalar_lea.vmem %s1, 16
  %1290 = vst.msk [vmem:[%s1289] sm:$0xff] %vm1288, %v1287
  %s1291 = scalar_lea.vmem %s0, 385
  %v1292 = vld [vmem:[%s1291] ss:$8 sm:$0xf]
  %s1293 = scalar_lea.vmem %s0, 385
  %v1294 = vld [vmem:[%s1293] ss:$8 sm:$0xf0]
  %vm1295 = vcmask 1047556
  %v1296 = vsel %vm1295, %v1294, %v1292
  %1297 = vrot.lane.b32.xlu0 %v1296, 16
  %v1298 = vpop.permute.xlu0 %1297
  %vm1299 = vcmask 261248
  %s1300 = scalar_lea.vmem %s1, 48
  %1301 = vst.msk [vmem:[%s1300] sm:$0xff] %vm1299, %v1298
  %s1302 = scalar_lea.vmem %s0, 641
  %v1303 = vld [vmem:[%s1302] ss:$8 sm:$0xf]
  %s1304 = scalar_lea.vmem %s0, 641
  %v1305 = vld [vmem:[%s1304] ss:$8 sm:$0xf0]
  %vm1306 = vcmask 1047556
  %v1307 = vsel %vm1306, %v1305, %v1303
  %1308 = vrot.lane.b32.xlu0 %v1307, 16
  %v1309 = vpop.permute.xlu0 %1308
  %vm1310 = vcmask 261248
  %s1311 = scalar_lea.vmem %s1, 80
  %1312 = vst.msk [vmem:[%s1311] sm:$0xff] %vm1310, %v1309
  %s1313 = scalar_lea.vmem %s0, 897
  %v1314 = vld [vmem:[%s1313] ss:$8 sm:$0xf]
  %s1315 = scalar_lea.vmem %s0, 897
  %v1316 = vld [vmem:[%s1315] ss:$8 sm:$0xf0]
  %vm1317 = vcmask 1047556
  %v1318 = vsel %vm1317, %v1316, %v1314
  %1319 = vrot.lane.b32.xlu0 %v1318, 16
  %v1320 = vpop.permute.xlu0 %1319
  %vm1321 = vcmask 261248
  %s1322 = scalar_lea.vmem %s1, 112
  %1323 = vst.msk [vmem:[%s1322] sm:$0xff] %vm1321, %v1320
  %s1324 = scalar_lea.vmem %s0, 193
  %v1325 = vld [vmem:[%s1324] ss:$8 sm:$0xf]
  %s1326 = scalar_lea.vmem %s0, 193
  %v1327 = vld [vmem:[%s1326] ss:$8 sm:$0xf0]
  %vm1328 = vcmask 1047556
  %v1329 = vsel %vm1328, %v1327, %v1325
  %1330 = vrot.lane.b32.xlu0 %v1329, 16
  %v1331 = vpop.permute.xlu0 %1330
  %vm1332 = vcmask 261248
  %s1333 = scalar_lea.vmem %s1, 24
  %1334 = vst.msk [vmem:[%s1333] sm:$0xff] %vm1332, %v1331
  %s1335 = scalar_lea.vmem %s0, 449
  %v1336 = vld [vmem:[%s1335] ss:$8 sm:$0xf]
  %s1337 = scalar_lea.vmem %s0, 449
  %v1338 = vld [vmem:[%s1337] ss:$8 sm:$0xf0]
  %vm1339 = vcmask 1047556
  %v1340 = vsel %vm1339, %v1338, %v1336
  %1341 = vrot.lane.b32.xlu0 %v1340, 16
  %v1342 = vpop.permute.xlu0 %1341
  %vm1343 = vcmask 261248
  %s1344 = scalar_lea.vmem %s1, 56
  %1345 = vst.msk [vmem:[%s1344] sm:$0xff] %vm1343, %v1342
  %s1346 = scalar_lea.vmem %s0, 705
  %v1347 = vld [vmem:[%s1346] ss:$8 sm:$0xf]
  %s1348 = scalar_lea.vmem %s0, 705
  %v1349 = vld [vmem:[%s1348] ss:$8 sm:$0xf0]
  %vm1350 = vcmask 1047556
  %v1351 = vsel %vm1350, %v1349, %v1347
  %1352 = vrot.lane.b32.xlu0 %v1351, 16
  %v1353 = vpop.permute.xlu0 %1352
  %vm1354 = vcmask 261248
  %s1355 = scalar_lea.vmem %s1, 88
  %1356 = vst.msk [vmem:[%s1355] sm:$0xff] %vm1354, %v1353
  %s1357 = scalar_lea.vmem %s0, 961
  %v1358 = vld [vmem:[%s1357] ss:$8 sm:$0xf]
  %s1359 = scalar_lea.vmem %s0, 961
  %v1360 = vld [vmem:[%s1359] ss:$8 sm:$0xf0]
  %vm1361 = vcmask 1047556
  %v1362 = vsel %vm1361, %v1360, %v1358
  %1363 = vrot.lane.b32.xlu0 %v1362, 16
  %v1364 = vpop.permute.xlu0 %1363
  %vm1365 = vcmask 261248
  %s1366 = scalar_lea.vmem %s1, 120
  %1367 = vst.msk [vmem:[%s1366] sm:$0xff] %vm1365, %v1364

// kernel: mol_graph_forward.1
$region0: #{mol_graph_forward.1}
  #allocation0 [shape = 'u32[]', space=smem, size = 0x4, offset = 0x4, fixed_abs, tag = 'smem constant byte address 0x4 - core index']
  #allocation1 [shape = 'u32[144,128]{1,0:T(1,128)}', space=vmem, size = 0x12000, scoped, tag = 'internal scratch']
  %s0 = inlined_call_operand.vmem [shape: f32[2,8,16], index: 0, kind: input, shape index: {}]
  %s1 = inlined_call_operand.vmem [shape: f32[2,8,1], index: 1, kind: input, shape index: {}]
  %s2 = inlined_call_operand.vmem [shape: f32[128,42], index: 2, kind: input, shape index: {}]
  %s3 = inlined_call_operand.vmem [shape: f32[128,128], index: 3, kind: input, shape index: {}]
  %s4 = inlined_call_operand.vmem [shape: f32[128,1], index: 4, kind: input, shape index: {}]
  %s5 = inlined_call_operand.vmem [shape: f32[42,774], index: 5, kind: input, shape index: {}]
  %s6 = inlined_call_operand.vmem [shape: f32[128,128], index: 6, kind: input, shape index: {}]
  %s7 = inlined_call_operand.vmem [shape: f32[16,144], index: 7, kind: input, shape index: {}]
  %s8 = inlined_call_operand.vmem [shape: f32[3,1,48], index: 8, kind: input, shape index: {}]
  %s9 = inlined_call_operand.vmem [shape: f32[3,16,48], index: 9, kind: input, shape index: {}]
  %s10 = inlined_call_operand.vmem [shape: f32[3,1,48], index: 10, kind: input, shape index: {}]
  %s11 = inlined_call_operand.vmem [shape: f32[1,384], index: 11, kind: input, shape index: {}]
  %s12 = inlined_call_operand.vmem [shape: f32[1,3], index: 12, kind: input, shape index: {}]
  %s13 = inlined_call_operand.vmem [shape: f32[1,3], index: 13, kind: input, shape index: {}]
  %s14 = inlined_call_operand.vmem [shape: f32[96,128], index: 14, kind: input, shape index: {}]
  %s15 = inlined_call_operand.vmem [shape: f32[1,128], index: 15, kind: input, shape index: {}]
  %s16 = inlined_call_operand.vmem [shape: f32[64,12], index: 16, kind: input, shape index: {}]
  %s17 = inlined_call_operand.vmem [shape: f32[1,12], index: 17, kind: input, shape index: {}]
  %s18 = inlined_call_operand.hbm [shape: f32[2,12], index: 18, kind: output, shape index: {}]
  %s19 = sld [smem:[#allocation0]]
  $region82: #{mol_graph_forward.1} parent=0
    _
  %s21 = ssub.s32 1, %s19
  %s22 = scalar_select 0, %s21, %s19
  $region1: #{mol_graph_forward.1} parent=0
    #allocation2 [shape = 'u8[1024]{0}', space=vmem, size = 0x400, scoped, tag = 'output window, operand 0, single buffered']
    #allocation3 [shape = 's32[1]{0}', space=sflag, size = 0x4, scoped, tag = 'scoped memory for mol_graph_forward.1']
    %23 = vsyncpa [#allocation3], 0
    // Predicated region
    $region2: #{mol_graph_forward.1} parent=1 // pred_check
      _
    $region3: #{mol_graph_forward.1} parent=1 // pred_check_branch
      %25 = sbr.rel (0) target = $region5
    $region4: #{mol_graph_forward.1} parent=1 // pred_region
      _
    $region5: #{mol_graph_forward.1} parent=1 // pred_fallthru
      _
    // Predicated region
    $region6: #{mol_graph_forward.1} parent=1 // pred_check
      _
    $region7: #{mol_graph_forward.1} parent=1 // pred_check_branch
      %27 = sbr.rel (0) target = $region9
    $region8: #{mol_graph_forward.1} parent=1 // pred_region
      _
    $region9: #{mol_graph_forward.1} parent=1 // pred_fallthru
      _
    // Predicated region
    $region10: #{mol_graph_forward.1} parent=1 // pred_check
      _
    $region11: #{mol_graph_forward.1} parent=1 // pred_check_branch
      %29 = sbr.rel (0) target = $region13
    $region12: #{mol_graph_forward.1} parent=1 // pred_region
      _
    $region13: #{mol_graph_forward.1} parent=1 // pred_fallthru
      _
    // Predicated region
    $region14: #{mol_graph_forward.1} parent=1 // pred_check
      _
    $region15: #{mol_graph_forward.1} parent=1 // pred_check_branch
      %31 = sbr.rel (0) target = $region17
    $region16: #{mol_graph_forward.1} parent=1 // pred_region
      _
    $region17: #{mol_graph_forward.1} parent=1 // pred_fallthru
      _
    // Predicated region
    $region18: #{mol_graph_forward.1} parent=1 // pred_check
      _
    $region19: #{mol_graph_forward.1} parent=1 // pred_check_branch
      %33 = sbr.rel (0) target = $region21
    $region20: #{mol_graph_forward.1} parent=1 // pred_region
      _
    $region21: #{mol_graph_forward.1} parent=1 // pred_fallthru
      _
    // Predicated region
    $region22: #{mol_graph_forward.1} parent=1 // pred_check
      _
    $region23: #{mol_graph_forward.1} parent=1 // pred_check_branch
      %35 = sbr.rel (0) target = $region25
    $region24: #{mol_graph_forward.1} parent=1 // pred_region
      _
    $region25: #{mol_graph_forward.1} parent=1 // pred_fallthru
      _
    // Predicated region
    $region26: #{mol_graph_forward.1} parent=1 // pred_check
      _
    $region27: #{mol_graph_forward.1} parent=1 // pred_check_branch
      %37 = sbr.rel (0) target = $region29
    $region28: #{mol_graph_forward.1} parent=1 // pred_region
      _
    $region29: #{mol_graph_forward.1} parent=1 // pred_fallthru
      _
    // Predicated region
    $region30: #{mol_graph_forward.1} parent=1 // pred_check
      _
    $region31: #{mol_graph_forward.1} parent=1 // pred_check_branch
      %39 = sbr.rel (0) target = $region33
    $region32: #{mol_graph_forward.1} parent=1 // pred_region
      _
    $region33: #{mol_graph_forward.1} parent=1 // pred_fallthru
      _
    // Predicated region
    $region34: #{mol_graph_forward.1} parent=1 // pred_check
      _
    $region35: #{mol_graph_forward.1} parent=1 // pred_check_branch
      %41 = sbr.rel (0) target = $region37
    $region36: #{mol_graph_forward.1} parent=1 // pred_region
      _
    $region37: #{mol_graph_forward.1} parent=1 // pred_fallthru
      _
    // Predicated region
    $region38: #{mol_graph_forward.1} parent=1 // pred_check
      _
    $region39: #{mol_graph_forward.1} parent=1 // pred_check_branch
      %43 = sbr.rel (0) target = $region41
    $region40: #{mol_graph_forward.1} parent=1 // pred_region
      _
    $region41: #{mol_graph_forward.1} parent=1 // pred_fallthru
      _
    // Predicated region
    $region42: #{mol_graph_forward.1} parent=1 // pred_check
      _
    $region43: #{mol_graph_forward.1} parent=1 // pred_check_branch
      %45 = sbr.rel (0) target = $region45
    $region44: #{mol_graph_forward.1} parent=1 // pred_region
      _
    $region45: #{mol_graph_forward.1} parent=1 // pred_fallthru
      _
    // Predicated region
    $region46: #{mol_graph_forward.1} parent=1 // pred_check
      _
    $region47: #{mol_graph_forward.1} parent=1 // pred_check_branch
      %47 = sbr.rel (0) target = $region49
    $region48: #{mol_graph_forward.1} parent=1 // pred_region
      _
    $region49: #{mol_graph_forward.1} parent=1 // pred_fallthru
      _
    // Predicated region
    $region50: #{mol_graph_forward.1} parent=1 // pred_check
      _
    $region51: #{mol_graph_forward.1} parent=1 // pred_check_branch
      %49 = sbr.rel (0) target = $region53
    $region52: #{mol_graph_forward.1} parent=1 // pred_region
      _
    $region53: #{mol_graph_forward.1} parent=1 // pred_fallthru
      _
    // Predicated region
    $region54: #{mol_graph_forward.1} parent=1 // pred_check
      _
    $region55: #{mol_graph_forward.1} parent=1 // pred_check_branch
      %51 = sbr.rel (0) target = $region57
    $region56: #{mol_graph_forward.1} parent=1 // pred_region
      _
    $region57: #{mol_graph_forward.1} parent=1 // pred_fallthru
      _
    // Predicated region
    $region58: #{mol_graph_forward.1} parent=1 // pred_check
      _
    $region59: #{mol_graph_forward.1} parent=1 // pred_check_branch
      %53 = sbr.rel (0) target = $region61
    $region60: #{mol_graph_forward.1} parent=1 // pred_region
      _
    $region61: #{mol_graph_forward.1} parent=1 // pred_fallthru
      _
    // Predicated region
    $region62: #{mol_graph_forward.1} parent=1 // pred_check
      _
    $region63: #{mol_graph_forward.1} parent=1 // pred_check_branch
      %55 = sbr.rel (0) target = $region65
    $region64: #{mol_graph_forward.1} parent=1 // pred_region
      _
    $region65: #{mol_graph_forward.1} parent=1 // pred_fallthru
      _
    // Predicated region
    $region66: #{mol_graph_forward.1} parent=1 // pred_check
      _
    $region67: #{mol_graph_forward.1} parent=1 // pred_check_branch
      %57 = sbr.rel (0) target = $region69
    $region68: #{mol_graph_forward.1} parent=1 // pred_region
      _
    $region69: #{mol_graph_forward.1} parent=1 // pred_fallthru
      _
    // Predicated region
    $region70: #{mol_graph_forward.1} parent=1 // pred_check
      _
    $region71: #{mol_graph_forward.1} parent=1 // pred_check_branch
      %59 = sbr.rel (0) target = $region73
    $region72: #{mol_graph_forward.1} parent=1 // pred_region
      _
    $region73: #{mol_graph_forward.1} parent=1 // pred_fallthru
      _
    %v60 = vld [vmem:[%s0] sm:$0xff]
    %v61 = vld [vmem:[%s0 + $0x8] sm:$0xff]
    %v62 = vld [vmem:[%s1] sm:$0xff]
    %v63 = vld [vmem:[%s1 + $0x8] sm:$0xff]
    %v64 = vld [vmem:[%s4] sm:$0xff]
    %v65 = vld [vmem:[%s4 + $0x8] sm:$0xff]
    %v66 = vld [vmem:[%s4 + $0x10] sm:$0xff]
    %v67 = vld [vmem:[%s4 + $0x18] sm:$0xff]
    %v68 = vld [vmem:[%s4 + $0x20] sm:$0xff]
    %v69 = vld [vmem:[%s4 + $0x28] sm:$0xff]
    %v70 = vld [vmem:[%s4 + $0x30] sm:$0xff]
    %v71 = vld [vmem:[%s4 + $0x38] sm:$0xff]
    %v72 = vld [vmem:[%s4 + $0x40] sm:$0xff]
    %v73 = vld [vmem:[%s4 + $0x48] sm:$0xff]
    %v74 = vld [vmem:[%s4 + $0x50] sm:$0xff]
    %v75 = vld [vmem:[%s4 + $0x58] sm:$0xff]
    %v76 = vld [vmem:[%s4 + $0x60] sm:$0xff]
    %v77 = vld [vmem:[%s4 + $0x68] sm:$0xff]
    %v78 = vld [vmem:[%s4 + $0x70] sm:$0xff]
    %v79 = vld [vmem:[%s4 + $0x78] sm:$0xff]
    %v80 = vld [vmem:[%s3] sm:$0xff]
    %v81 = vld [vmem:[%s3 + $0x8] sm:$0xff]
    %v82 = vld [vmem:[%s3 + $0x10] sm:$0xff]
    %v83 = vld [vmem:[%s3 + $0x18] sm:$0xff]
    %v84 = vld [vmem:[%s3 + $0x20] sm:$0xff]
    %v85 = vld [vmem:[%s3 + $0x28] sm:$0xff]
    %v86 = vld [vmem:[%s3 + $0x30] sm:$0xff]
    %v87 = vld [vmem:[%s3 + $0x38] sm:$0xff]
    %v88 = vld [vmem:[%s3 + $0x40] sm:$0xff]
    %v89 = vld [vmem:[%s3 + $0x48] sm:$0xff]
    %v90 = vld [vmem:[%s3 + $0x50] sm:$0xff]
    %v91 = vld [vmem:[%s3 + $0x58] sm:$0xff]
    %v92 = vld [vmem:[%s3 + $0x60] sm:$0xff]
    %v93 = vld [vmem:[%s3 + $0x68] sm:$0xff]
    %v94 = vld [vmem:[%s3 + $0x70] sm:$0xff]
    %v95 = vld [vmem:[%s3 + $0x78] sm:$0xff]
    %v96 = vld [vmem:[%s6] sm:$0xff]
    %v97 = vld [vmem:[%s6 + $0x8] sm:$0xff]
    %v98 = vld [vmem:[%s6 + $0x10] sm:$0xff]
    %v99 = vld [vmem:[%s6 + $0x18] sm:$0xff]
    %v100 = vld [vmem:[%s6 + $0x20] sm:$0xff]
    %v101 = vld [vmem:[%s6 + $0x28] sm:$0xff]
    %v102 = vld [vmem:[%s6 + $0x30] sm:$0xff]
    %v103 = vld [vmem:[%s6 + $0x38] sm:$0xff]
    %v104 = vld [vmem:[%s6 + $0x40] sm:$0xff]
    %v105 = vld [vmem:[%s6 + $0x48] sm:$0xff]
    %v106 = vld [vmem:[%s6 + $0x50] sm:$0xff]
    %v107 = vld [vmem:[%s6 + $0x58] sm:$0xff]
    %v108 = vld [vmem:[%s6 + $0x60] sm:$0xff]
    %v109 = vld [vmem:[%s6 + $0x68] sm:$0xff]
    %v110 = vld [vmem:[%s6 + $0x70] sm:$0xff]
    %v111 = vld [vmem:[%s6 + $0x78] sm:$0xff]
    %v112 = vld [vmem:[%s2] sm:$0xff]
    %v113 = vld [vmem:[%s2 + $0x8] sm:$0xff]
    %v114 = vld [vmem:[%s2 + $0x10] sm:$0xff]
    %v115 = vld [vmem:[%s2 + $0x18] sm:$0xff]
    %v116 = vld [vmem:[%s2 + $0x20] sm:$0xff]
    %v117 = vld [vmem:[%s2 + $0x28] sm:$0xff]
    %v118 = vld [vmem:[%s2 + $0x30] sm:$0xff]
    %v119 = vld [vmem:[%s2 + $0x38] sm:$0xff]
    %v120 = vld [vmem:[%s2 + $0x40] sm:$0xff]
    %v121 = vld [vmem:[%s2 + $0x48] sm:$0xff]
    %v122 = vld [vmem:[%s2 + $0x50] sm:$0xff]
    %v123 = vld [vmem:[%s2 + $0x58] sm:$0xff]
    %v124 = vld [vmem:[%s2 + $0x60] sm:$0xff]
    %v125 = vld [vmem:[%s2 + $0x68] sm:$0xff]
    %v126 = vld [vmem:[%s2 + $0x70] sm:$0xff]
    %v127 = vld [vmem:[%s2 + $0x78] sm:$0xff]
    %v128 = vld [vmem:[%s5 + $0x10] sm:$0xff]
    %v129 = vld [vmem:[%s5 + $0x18] sm:$0xff]
    %v130 = vld [vmem:[%s5 + $0x20] sm:$0xff]
    %v131 = vld [vmem:[%s5 + $0x28] sm:$0xff]
    %v132 = vld [vmem:[%s5 + $0x30] sm:$0xff]
    %v133 = vld [vmem:[%s5 + $0x48] sm:$0xff]
    %v134 = vld [vmem:[%s5 + $0x50] sm:$0xff]
    %v135 = vld [vmem:[%s5 + $0x58] sm:$0xff]
    %v136 = vld [vmem:[%s5 + $0x60] sm:$0xff]
    %v137 = vld [vmem:[%s5 + $0x68] sm:$0xff]
    %v138 = vld [vmem:[%s5 + $0x80] sm:$0xff]
    %v139 = vld [vmem:[%s5 + $0x88] sm:$0xff]
    %v140 = vld [vmem:[%s5 + $0x90] sm:$0xff]
    %v141 = vld [vmem:[%s5 + $0x98] sm:$0xff]
    %v142 = vld [vmem:[%s5 + $0xa0] sm:$0xff]
    %v143 = vld [vmem:[%s5 + $0xb8] sm:$0xff]
    %v144 = vld [vmem:[%s5 + $0xc0] sm:$0xff]
    %v145 = vld [vmem:[%s5 + $0xc8] sm:$0xff]
    %v146 = vld [vmem:[%s5 + $0xd0] sm:$0xff]
    %v147 = vld [vmem:[%s5 + $0xd8] sm:$0xff]
    %v148 = vld [vmem:[%s5 + $0xf0] sm:$0xff]
    %v149 = vld [vmem:[%s5 + $0xf8] sm:$0xff]
    %v150 = vld [vmem:[%s5 + $0x100] sm:$0xff]
    %v151 = vld [vmem:[%s5 + $0x108] sm:$0xff]
    %v152 = vld [vmem:[%s5 + $0x110] sm:$0xff]
    %v153 = vld [vmem:[%s5 + $0x128] sm:$0x3]
    %v154 = vld [vmem:[%s5 + $0x130] sm:$0x3]
    %v155 = vld [vmem:[%s5 + $0x138] sm:$0x3]
    %v156 = vld [vmem:[%s5 + $0x140] sm:$0x3]
    %v157 = vld [vmem:[%s5 + $0x148] sm:$0x3]
    %vm158 = vcmask 343040
    %v160 = vsel %vm158, %v112, 0
    %v163 = vsel %vm158, %v113, 0
    %v166 = vsel %vm158, %v114, 0
    %v169 = vsel %vm158, %v115, 0
    %v172 = vsel %vm158, %v116, 0
    %v175 = vsel %vm158, %v117, 0
    %v178 = vsel %vm158, %v118, 0
    %v181 = vsel %vm158, %v119, 0
    %v184 = vsel %vm158, %v120, 0
    %v187 = vsel %vm158, %v121, 0
    %v190 = vsel %vm158, %v122, 0
    %v193 = vsel %vm158, %v123, 0
    %v196 = vsel %vm158, %v124, 0
    %v199 = vsel %vm158, %v125, 0
    %v202 = vsel %vm158, %v126, 0
    %v205 = vsel %vm158, %v127, 0
    %vm207 = vcmask 1041408
    %v209 = vsel %vm207, %v153, 0
    %v212 = vsel %vm207, %v154, 0
    %v215 = vsel %vm207, %v155, 0
    %v218 = vsel %vm207, %v156, 0
    %v221 = vsel %vm207, %v157, 0
    %223 = vmatprep.subr.mxu0 0.0
    %224 = vmatpush1.msra.mxu0 0.0
    %225 = vmatprep.subr.mxu0 0.0
    %226 = vmatpush1.msra.mxu0 0.0
    %227 = vmatprep.subr.mxu0 0.0
    %228 = vmatpush1.msra.mxu0 0.0
    %229 = vmatprep.subr.mxu0 0.0
    %230 = vmatpush1.msra.mxu0 0.0
    %231 = vmatprep.subr.mxu0 0.0
    %232 = vmatpush1.msra.mxu0 0.0
    %233 = vmatprep.subr.mxu0 0.0
    %234 = vmatpush1.msra.mxu0 0.0
    %235 = vmatprep.subr.mxu0 0.0
    %236 = vmatpush1.msra.mxu0 0.0
    %237 = vmatprep.subr.mxu0 0.0
    %238 = vmatpush1.msra.mxu0 0.0
    %239 = vmatprep.subr.mxu0 0.0
    %240 = vmatpush1.msra.mxu0 0.0
    %241 = vmatprep.subr.mxu0 0.0
    %242 = vmatpush1.msra.mxu0 0.0
    %243 = vmatprep.subr.mxu0 %v212
    %244 = vmatpush1.msra.mxu0 %v209
    %245 = vmatprep.subr.mxu0 %v149
    %246 = vmatpush1.msra.mxu0 %v148
    %247 = vmatprep.subr.mxu0 %v144
    %248 = vmatpush1.msra.mxu0 %v143
    %249 = vmatprep.subr.mxu0 %v139
    %250 = vmatpush1.msra.mxu0 %v138
    %251 = vmatprep.subr.mxu0 %v134
    %252 = vmatpush1.msra.mxu0 %v133
    %253 = vmatprep.subr.mxu0 %v129
    %254 = vmatpush1.msra.mxu0 %v128
    %255 = vmatprep.subr.mxu0 0.0
    %256 = vmatpush2.msra.mxu0 0.0
    %257 = vmatprep.subr.mxu0 0.0
    %258 = vmatpush2.msra.mxu0 0.0
    %259 = vmatprep.subr.mxu0 0.0
    %260 = vmatpush2.msra.mxu0 0.0
    %261 = vmatprep.subr.mxu0 0.0
    %262 = vmatpush2.msra.mxu0 0.0
    %263 = vmatprep.subr.mxu0 0.0
    %264 = vmatpush2.msra.mxu0 0.0
    %265 = vmatprep.subr.mxu0 0.0
    %266 = vmatpush2.msra.mxu0 0.0
    %267 = vmatprep.subr.mxu0 0.0
    %268 = vmatpush2.msra.mxu0 0.0
    %269 = vmatprep.subr.mxu0 0.0
    %270 = vmatpush2.msra.mxu0 0.0
    %271 = vmatprep.subr.mxu0 0.0
    %272 = vmatpush2.msra.mxu0 0.0
    %273 = vmatprep.subr.mxu0 0.0
    %274 = vmatpush2.msra.mxu0 0.0
    %275 = vmatprep.subr.mxu0 0.0
    %276 = vmatpush2.msra.mxu0 0.0
    %277 = vmatprep.subr.mxu0 0.0
    %278 = vmatpush2.msra.mxu0 0.0
    %279 = vmatprep.subr.mxu0 0.0
    %280 = vmatpush2.msra.mxu0 0.0
    %281 = vmatprep.subr.mxu0 0.0
    %282 = vmatpush2.msra.mxu0 0.0
    %283 = vmatprep.subr.mxu0 0.0
    %284 = vmatpush2.msra.mxu0 0.0
    %285 = vmatprep.subr.mxu0 0.0
    %286 = vmatpush2.msra.mxu0 0.0
    %287 = vmatprep.mubr.f32.mxu0 0.0
    %288 = vmatmul.mubr.f32.gmra.mxu0 %v160
    %v289 = vpop.f32.mrf.mxu0
    %v290 = vadd.f32 0.0, %v289
    %v291 = vpop.f32.mrf.mxu0
    %292 = vmatprep.mubr.f32.mxu0 0.0
    %293 = vmatmul.mubr.f32.gmra.mxu0 %v163
    %v294 = vpop.f32.mrf.mxu0
    %v295 = vadd.f32 0.0, %v294
    %v296 = vpop.f32.mrf.mxu0
    %297 = vmatprep.mubr.f32.mxu0 0.0
    %298 = vmatmul.mubr.f32.gmra.mxu0 %v166
    %v299 = vpop.f32.mrf.mxu0
    %v300 = vadd.f32 0.0, %v299
    %v301 = vpop.f32.mrf.mxu0
    %302 = vmatprep.mubr.f32.mxu0 0.0
    %303 = vmatmul.mubr.f32.gmra.mxu0 %v169
    %v304 = vpop.f32.mrf.mxu0
    %v305 = vadd.f32 0.0, %v304
    %v306 = vpop.f32.mrf.mxu0
    %307 = vmatprep.mubr.f32.mxu0 0.0
    %308 = vmatmul.mubr.f32.gmra.mxu0 %v172
    %v309 = vpop.f32.mrf.mxu0
    %v310 = vadd.f32 0.0, %v309
    %v311 = vpop.f32.mrf.mxu0
    %312 = vmatprep.mubr.f32.mxu0 0.0
    %313 = vmatmul.mubr.f32.gmra.mxu0 %v175
    %v314 = vpop.f32.mrf.mxu0
    %v315 = vadd.f32 0.0, %v314
    %v316 = vpop.f32.mrf.mxu0
    %317 = vmatprep.mubr.f32.mxu0 0.0
    %318 = vmatmul.mubr.f32.gmra.mxu0 %v178
    %v319 = vpop.f32.mrf.mxu0
    %v320 = vadd.f32 0.0, %v319
    %v321 = vpop.f32.mrf.mxu0
    %322 = vmatprep.mubr.f32.mxu0 0.0
    %323 = vmatmul.mubr.f32.gmra.mxu0 %v181
    %v324 = vpop.f32.mrf.mxu0
    %v325 = vadd.f32 0.0, %v324
    %v326 = vpop.f32.mrf.mxu0
    %327 = vmatprep.mubr.f32.mxu0 0.0
    %328 = vmatmul.mubr.f32.gmra.mxu0 %v184
    %v329 = vpop.f32.mrf.mxu0
    %v330 = vadd.f32 0.0, %v329
    %v331 = vpop.f32.mrf.mxu0
    %332 = vmatprep.mubr.f32.mxu0 0.0
    %333 = vmatmul.mubr.f32.gmra.mxu0 %v187
    %v334 = vpop.f32.mrf.mxu0
    %v335 = vadd.f32 0.0, %v334
    %v336 = vpop.f32.mrf.mxu0
    %337 = vmatprep.mubr.f32.mxu0 0.0
    %338 = vmatmul.mubr.f32.gmra.mxu0 %v190
    %v339 = vpop.f32.mrf.mxu0
    %v340 = vadd.f32 0.0, %v339
    %v341 = vpop.f32.mrf.mxu0
    %342 = vmatprep.mubr.f32.mxu0 0.0
    %343 = vmatmul.mubr.f32.gmra.mxu0 %v193
    %v344 = vpop.f32.mrf.mxu0
    %v345 = vadd.f32 0.0, %v344
    %v346 = vpop.f32.mrf.mxu0
    %347 = vmatprep.mubr.f32.mxu0 0.0
    %348 = vmatmul.mubr.f32.gmra.mxu0 %v196
    %v349 = vpop.f32.mrf.mxu0
    %v350 = vadd.f32 0.0, %v349
    %v351 = vpop.f32.mrf.mxu0
    %352 = vmatprep.mubr.f32.mxu0 0.0
    %353 = vmatmul.mubr.f32.gmra.mxu0 %v199
    %v354 = vpop.f32.mrf.mxu0
    %v355 = vadd.f32 0.0, %v354
    %v356 = vpop.f32.mrf.mxu0
    %357 = vmatprep.mubr.f32.mxu0 0.0
    %358 = vmatmul.mubr.f32.gmra.mxu0 %v202
    %v359 = vpop.f32.mrf.mxu0
    %v360 = vadd.f32 0.0, %v359
    %v361 = vpop.f32.mrf.mxu0
    %362 = vmatprep.mubr.f32.mxu0 0.0
    %363 = vmatmul.mubr.f32.gmra.mxu0 %v205
    %v364 = vpop.f32.mrf.mxu0
    %v365 = vadd.f32 0.0, %v364
    %v366 = vpop.f32.mrf.mxu0
    %367 = vdwg.mxu0
    %368 = vmatprep.subr.mxu0 0.0
    %369 = vmatpush1.msra.mxu0 0.0
    %370 = vmatprep.subr.mxu0 0.0
    %371 = vmatpush1.msra.mxu0 0.0
    %372 = vmatprep.subr.mxu0 0.0
    %373 = vmatpush1.msra.mxu0 0.0
    %374 = vmatprep.subr.mxu0 0.0
    %375 = vmatpush1.msra.mxu0 0.0
    %376 = vmatprep.subr.mxu0 0.0
    %377 = vmatpush1.msra.mxu0 0.0
    %378 = vmatprep.subr.mxu0 0.0
    %379 = vmatpush1.msra.mxu0 0.0
    %380 = vmatprep.subr.mxu0 0.0
    %381 = vmatpush1.msra.mxu0 0.0
    %382 = vmatprep.subr.mxu0 0.0
    %383 = vmatpush1.msra.mxu0 0.0
    %384 = vmatprep.subr.mxu0 0.0
    %385 = vmatpush1.msra.mxu0 0.0
    %386 = vmatprep.subr.mxu0 0.0
    %387 = vmatpush1.msra.mxu0 0.0
    %388 = vmatprep.subr.mxu0 %v218
    %389 = vmatpush1.msra.mxu0 %v215
    %390 = vmatprep.subr.mxu0 %v151
    %391 = vmatpush1.msra.mxu0 %v150
    %392 = vmatprep.subr.mxu0 %v146
    %393 = vmatpush1.msra.mxu0 %v145
    %394 = vmatprep.subr.mxu0 %v141
    %395 = vmatpush1.msra.mxu0 %v140
    %396 = vmatprep.subr.mxu0 %v136
    %397 = vmatpush1.msra.mxu0 %v135
    %398 = vmatprep.subr.mxu0 %v131
    %399 = vmatpush1.msra.mxu0 %v130
    %400 = vmatprep.subr.mxu0 0.0
    %401 = vmatpush2.msra.mxu0 0.0
    %402 = vmatprep.subr.mxu0 0.0
    %403 = vmatpush2.msra.mxu0 0.0
    %404 = vmatprep.subr.mxu0 0.0
    %405 = vmatpush2.msra.mxu0 0.0
    %406 = vmatprep.subr.mxu0 0.0
    %407 = vmatpush2.msra.mxu0 0.0
    %408 = vmatprep.subr.mxu0 0.0
    %409 = vmatpush2.msra.mxu0 0.0
    %410 = vmatprep.subr.mxu0 0.0
    %411 = vmatpush2.msra.mxu0 0.0
    %412 = vmatprep.subr.mxu0 0.0
    %413 = vmatpush2.msra.mxu0 0.0
    %414 = vmatprep.subr.mxu0 0.0
    %415 = vmatpush2.msra.mxu0 0.0
    %416 = vmatprep.subr.mxu0 0.0
    %417 = vmatpush2.msra.mxu0 0.0
    %418 = vmatprep.subr.mxu0 0.0
    %419 = vmatpush2.msra.mxu0 0.0
    %420 = vmatprep.subr.mxu0 0.0
    %421 = vmatpush2.msra.mxu0 0.0
    %422 = vmatprep.subr.mxu0 0.0
    %423 = vmatpush2.msra.mxu0 0.0
    %424 = vmatprep.subr.mxu0 0.0
    %425 = vmatpush2.msra.mxu0 0.0
    %426 = vmatprep.subr.mxu0 0.0
    %427 = vmatpush2.msra.mxu0 0.0
    %428 = vmatprep.subr.mxu0 0.0
    %429 = vmatpush2.msra.mxu0 0.0
    %430 = vmatprep.subr.mxu0 0.0
    %431 = vmatpush2.msra.mxu0 0.0
    %432 = vmatprep.mubr.f32.mxu0 0.0
    %433 = vmatmul.mubr.f32.gmra.mxu0 %v160
    %v434 = vpop.f32.mrf.mxu0
    %v435 = vpop.f32.mrf.mxu0
    %v436 = vadd.f32 0.0, %v435
    %437 = vmatprep.mubr.f32.mxu0 0.0
    %438 = vmatmul.mubr.f32.gmra.mxu0 %v163
    %v439 = vpop.f32.mrf.mxu0
    %v440 = vpop.f32.mrf.mxu0
    %v441 = vadd.f32 0.0, %v440
    %442 = vmatprep.mubr.f32.mxu0 0.0
    %443 = vmatmul.mubr.f32.gmra.mxu0 %v166
    %v444 = vpop.f32.mrf.mxu0
    %v445 = vpop.f32.mrf.mxu0
    %v446 = vadd.f32 0.0, %v445
    %447 = vmatprep.mubr.f32.mxu0 0.0
    %448 = vmatmul.mubr.f32.gmra.mxu0 %v169
    %v449 = vpop.f32.mrf.mxu0
    %v450 = vpop.f32.mrf.mxu0
    %v451 = vadd.f32 0.0, %v450
    %452 = vmatprep.mubr.f32.mxu0 0.0
    %453 = vmatmul.mubr.f32.gmra.mxu0 %v172
    %v454 = vpop.f32.mrf.mxu0
    %v455 = vpop.f32.mrf.mxu0
    %v456 = vadd.f32 0.0, %v455
    %457 = vmatprep.mubr.f32.mxu0 0.0
    %458 = vmatmul.mubr.f32.gmra.mxu0 %v175
    %v459 = vpop.f32.mrf.mxu0
    %v460 = vpop.f32.mrf.mxu0
    %v461 = vadd.f32 0.0, %v460
    %462 = vmatprep.mubr.f32.mxu0 0.0
    %463 = vmatmul.mubr.f32.gmra.mxu0 %v178
    %v464 = vpop.f32.mrf.mxu0
    %v465 = vpop.f32.mrf.mxu0
    %v466 = vadd.f32 0.0, %v465
    %467 = vmatprep.mubr.f32.mxu0 0.0
    %468 = vmatmul.mubr.f32.gmra.mxu0 %v181
    %v469 = vpop.f32.mrf.mxu0
    %v470 = vpop.f32.mrf.mxu0
    %v471 = vadd.f32 0.0, %v470
    %472 = vmatprep.mubr.f32.mxu0 0.0
    %473 = vmatmul.mubr.f32.gmra.mxu0 %v184
    %v474 = vpop.f32.mrf.mxu0
    %v475 = vpop.f32.mrf.mxu0
    %v476 = vadd.f32 0.0, %v475
    %477 = vmatprep.mubr.f32.mxu0 0.0
    %478 = vmatmul.mubr.f32.gmra.mxu0 %v187
    %v479 = vpop.f32.mrf.mxu0
    %v480 = vpop.f32.mrf.mxu0
    %v481 = vadd.f32 0.0, %v480
    %482 = vmatprep.mubr.f32.mxu0 0.0
    %483 = vmatmul.mubr.f32.gmra.mxu0 %v190
    %v484 = vpop.f32.mrf.mxu0
    %v485 = vpop.f32.mrf.mxu0
    %v486 = vadd.f32 0.0, %v485
    %487 = vmatprep.mubr.f32.mxu0 0.0
    %488 = vmatmul.mubr.f32.gmra.mxu0 %v193
    %v489 = vpop.f32.mrf.mxu0
    %v490 = vpop.f32.mrf.mxu0
    %v491 = vadd.f32 0.0, %v490
    %492 = vmatprep.mubr.f32.mxu0 0.0
    %493 = vmatmul.mubr.f32.gmra.mxu0 %v196
    %v494 = vpop.f32.mrf.mxu0
    %v495 = vpop.f32.mrf.mxu0
    %v496 = vadd.f32 0.0, %v495
    %497 = vmatprep.mubr.f32.mxu0 0.0
    %498 = vmatmul.mubr.f32.gmra.mxu0 %v199
    %v499 = vpop.f32.mrf.mxu0
    %v500 = vpop.f32.mrf.mxu0
    %v501 = vadd.f32 0.0, %v500
    %502 = vmatprep.mubr.f32.mxu0 0.0
    %503 = vmatmul.mubr.f32.gmra.mxu0 %v202
    %v504 = vpop.f32.mrf.mxu0
    %v505 = vpop.f32.mrf.mxu0
    %v506 = vadd.f32 0.0, %v505
    %507 = vmatprep.mubr.f32.mxu0 0.0
    %508 = vmatmul.mubr.f32.gmra.mxu0 %v205
    %v509 = vpop.f32.mrf.mxu0
    %v510 = vpop.f32.mrf.mxu0
    %v511 = vadd.f32 0.0, %v510
    %512 = vdwg.mxu0
    %513 = vmatprep.subr.mxu0 0.0
    %514 = vmatpush1.msra.mxu0 0.0
    %515 = vmatprep.subr.mxu0 0.0
    %516 = vmatpush1.msra.mxu0 0.0
    %517 = vmatprep.subr.mxu0 0.0
    %518 = vmatpush1.msra.mxu0 0.0
    %519 = vmatprep.subr.mxu0 0.0
    %520 = vmatpush1.msra.mxu0 0.0
    %521 = vmatprep.subr.mxu0 0.0
    %522 = vmatpush1.msra.mxu0 0.0
    %523 = vmatprep.subr.mxu0 0.0
    %524 = vmatpush1.msra.mxu0 0.0
    %525 = vmatprep.subr.mxu0 0.0
    %526 = vmatpush1.msra.mxu0 0.0
    %527 = vmatprep.subr.mxu0 0.0
    %528 = vmatpush1.msra.mxu0 0.0
    %529 = vmatprep.subr.mxu0 0.0
    %530 = vmatpush1.msra.mxu0 0.0
    %531 = vmatprep.subr.mxu0 0.0
    %532 = vmatpush1.msra.mxu0 0.0
    %533 = vmatprep.subr.mxu0 0.0
    %534 = vmatpush1.msra.mxu0 %v221
    %535 = vmatprep.subr.mxu0 0.0
    %536 = vmatpush1.msra.mxu0 %v152
    %537 = vmatprep.subr.mxu0 0.0
    %538 = vmatpush1.msra.mxu0 %v147
    %539 = vmatprep.subr.mxu0 0.0
    %540 = vmatpush1.msra.mxu0 %v142
    %541 = vmatprep.subr.mxu0 0.0
    %542 = vmatpush1.msra.mxu0 %v137
    %543 = vmatprep.subr.mxu0 0.0
    %544 = vmatpush1.msra.mxu0 %v132
    %545 = vmatprep.subr.mxu0 0.0
    %546 = vmatpush2.msra.mxu0 0.0
    %547 = vmatprep.subr.mxu0 0.0
    %548 = vmatpush2.msra.mxu0 0.0
    %549 = vmatprep.subr.mxu0 0.0
    %550 = vmatpush2.msra.mxu0 0.0
    %551 = vmatprep.subr.mxu0 0.0
    %552 = vmatpush2.msra.mxu0 0.0
    %553 = vmatprep.subr.mxu0 0.0
    %554 = vmatpush2.msra.mxu0 0.0
    %555 = vmatprep.subr.mxu0 0.0
    %556 = vmatpush2.msra.mxu0 0.0
    %557 = vmatprep.subr.mxu0 0.0
    %558 = vmatpush2.msra.mxu0 0.0
    %559 = vmatprep.subr.mxu0 0.0
    %560 = vmatpush2.msra.mxu0 0.0
    %561 = vmatprep.subr.mxu0 0.0
    %562 = vmatpush2.msra.mxu0 0.0
    %563 = vmatprep.subr.mxu0 0.0
    %564 = vmatpush2.msra.mxu0 0.0
    %565 = vmatprep.subr.mxu0 0.0
    %566 = vmatpush2.msra.mxu0 0.0
    %567 = vmatprep.subr.mxu0 0.0
    %568 = vmatpush2.msra.mxu0 0.0
    %569 = vmatprep.subr.mxu0 0.0
    %570 = vmatpush2.msra.mxu0 0.0
    %571 = vmatprep.subr.mxu0 0.0
    %572 = vmatpush2.msra.mxu0 0.0
    %573 = vmatprep.subr.mxu0 0.0
    %574 = vmatpush2.msra.mxu0 0.0
    %575 = vmatprep.subr.mxu0 0.0
    %576 = vmatpush2.msra.mxu0 0.0
    %577 = vmatprep.mubr.f32.mxu0 0.0
    %578 = vmatmul.mubr.f32.gmra.mxu0 %v160
    %v579 = vpop.f32.mrf.mxu0
    %v580 = vadd.f32 0.0, %v579
    %v581 = vpop.f32.mrf.mxu0
    %582 = vmatprep.mubr.f32.mxu0 0.0
    %583 = vmatmul.mubr.f32.gmra.mxu0 %v163
    %v584 = vpop.f32.mrf.mxu0
    %v585 = vadd.f32 0.0, %v584
    %v586 = vpop.f32.mrf.mxu0
    %587 = vmatprep.mubr.f32.mxu0 0.0
    %588 = vmatmul.mubr.f32.gmra.mxu0 %v166
    %v589 = vpop.f32.mrf.mxu0
    %v590 = vadd.f32 0.0, %v589
    %v591 = vpop.f32.mrf.mxu0
    %592 = vmatprep.mubr.f32.mxu0 0.0
    %593 = vmatmul.mubr.f32.gmra.mxu0 %v169
    %v594 = vpop.f32.mrf.mxu0
    %v595 = vadd.f32 0.0, %v594
    %v596 = vpop.f32.mrf.mxu0
    %597 = vmatprep.mubr.f32.mxu0 0.0
    %598 = vmatmul.mubr.f32.gmra.mxu0 %v172
    %v599 = vpop.f32.mrf.mxu0
    %v600 = vadd.f32 0.0, %v599
    %v601 = vpop.f32.mrf.mxu0
    %602 = vmatprep.mubr.f32.mxu0 0.0
    %603 = vmatmul.mubr.f32.gmra.mxu0 %v175
    %v604 = vpop.f32.mrf.mxu0
    %v605 = vadd.f32 0.0, %v604
    %v606 = vpop.f32.mrf.mxu0
    %607 = vmatprep.mubr.f32.mxu0 0.0
    %608 = vmatmul.mubr.f32.gmra.mxu0 %v178
    %v609 = vpop.f32.mrf.mxu0
    %v610 = vadd.f32 0.0, %v609
    %v611 = vpop.f32.mrf.mxu0
    %612 = vmatprep.mubr.f32.mxu0 0.0
    %613 = vmatmul.mubr.f32.gmra.mxu0 %v181
    %v614 = vpop.f32.mrf.mxu0
    %v615 = vadd.f32 0.0, %v614
    %v616 = vpop.f32.mrf.mxu0
    %617 = vmatprep.mubr.f32.mxu0 0.0
    %618 = vmatmul.mubr.f32.gmra.mxu0 %v184
    %v619 = vpop.f32.mrf.mxu0
    %v620 = vadd.f32 0.0, %v619
    %v621 = vpop.f32.mrf.mxu0
    %622 = vmatprep.mubr.f32.mxu0 0.0
    %623 = vmatmul.mubr.f32.gmra.mxu0 %v187
    %v624 = vpop.f32.mrf.mxu0
    %v625 = vadd.f32 0.0, %v624
    %v626 = vpop.f32.mrf.mxu0
    %627 = vmatprep.mubr.f32.mxu0 0.0
    %628 = vmatmul.mubr.f32.gmra.mxu0 %v190
    %v629 = vpop.f32.mrf.mxu0
    %v630 = vadd.f32 0.0, %v629
    %v631 = vpop.f32.mrf.mxu0
    %632 = vmatprep.mubr.f32.mxu0 0.0
    %633 = vmatmul.mubr.f32.gmra.mxu0 %v193
    %v634 = vpop.f32.mrf.mxu0
    %v635 = vadd.f32 0.0, %v634
    %v636 = vpop.f32.mrf.mxu0
    %637 = vmatprep.mubr.f32.mxu0 0.0
    %638 = vmatmul.mubr.f32.gmra.mxu0 %v196
    %v639 = vpop.f32.mrf.mxu0
    %v640 = vadd.f32 0.0, %v639
    %v641 = vpop.f32.mrf.mxu0
    %642 = vmatprep.mubr.f32.mxu0 0.0
    %643 = vmatmul.mubr.f32.gmra.mxu0 %v199
    %v644 = vpop.f32.mrf.mxu0
    %v645 = vadd.f32 0.0, %v644
    %v646 = vpop.f32.mrf.mxu0
    %647 = vmatprep.mubr.f32.mxu0 0.0
    %648 = vmatmul.mubr.f32.gmra.mxu0 %v202
    %v649 = vpop.f32.mrf.mxu0
    %v650 = vadd.f32 0.0, %v649
    %v651 = vpop.f32.mrf.mxu0
    %652 = vmatprep.mubr.f32.mxu0 0.0
    %653 = vmatmul.mubr.f32.gmra.mxu0 %v205
    %v654 = vpop.f32.mrf.mxu0
    %v655 = vadd.f32 0.0, %v654
    %v656 = vpop.f32.mrf.mxu0
    %657 = vdwg.mxu0
    %v658 = vld [vmem:[%s7] sm:$0xff]
    %v659 = vld [vmem:[%s7 + $0x8] sm:$0xff]
    %v660 = vld [vmem:[%s7 + $0x10] sm:$0xff]
    %v661 = vld [vmem:[%s7 + $0x18] sm:$0xff]
    %vm662 = vcmask 130048
    %v664 = vsel %vm662, %v60, 0
    %v667 = vsel %vm662, %v61, 0
    %669 = vmatprep.subr.mxu0 0.0
    %670 = vmatpush1.msra.mxu0 0.0
    %671 = vmatprep.subr.mxu0 0.0
    %672 = vmatpush1.msra.mxu0 0.0
    %673 = vmatprep.subr.mxu0 0.0
    %674 = vmatpush1.msra.mxu0 0.0
    %675 = vmatprep.subr.mxu0 0.0
    %676 = vmatpush1.msra.mxu0 0.0
    %677 = vmatprep.subr.mxu0 0.0
    %678 = vmatpush1.msra.mxu0 0.0
    %679 = vmatprep.subr.mxu0 0.0
    %680 = vmatpush1.msra.mxu0 0.0
    %681 = vmatprep.subr.mxu0 0.0
    %682 = vmatpush1.msra.mxu0 0.0
    %683 = vmatprep.subr.mxu0 0.0
    %684 = vmatpush1.msra.mxu0 0.0
    %685 = vmatprep.subr.mxu0 0.0
    %686 = vmatpush1.msra.mxu0 0.0
    %687 = vmatprep.subr.mxu0 0.0
    %688 = vmatpush1.msra.mxu0 0.0
    %689 = vmatprep.subr.mxu0 0.0
    %690 = vmatpush1.msra.mxu0 0.0
    %691 = vmatprep.subr.mxu0 0.0
    %692 = vmatpush1.msra.mxu0 0.0
    %693 = vmatprep.subr.mxu0 0.0
    %694 = vmatpush1.msra.mxu0 0.0
    %695 = vmatprep.subr.mxu0 0.0
    %696 = vmatpush1.msra.mxu0 0.0
    %697 = vmatprep.subr.mxu0 %v661
    %698 = vmatpush1.msra.mxu0 %v660
    %699 = vmatprep.subr.mxu0 %v659
    %700 = vmatpush1.msra.mxu0 %v658
    %701 = vmatprep.subr.mxu0 0.0
    %702 = vmatpush2.msra.mxu0 0.0
    %703 = vmatprep.subr.mxu0 0.0
    %704 = vmatpush2.msra.mxu0 0.0
    %705 = vmatprep.subr.mxu0 0.0
    %706 = vmatpush2.msra.mxu0 0.0
    %707 = vmatprep.subr.mxu0 0.0
    %708 = vmatpush2.msra.mxu0 0.0
    %709 = vmatprep.subr.mxu0 0.0
    %710 = vmatpush2.msra.mxu0 0.0
    %711 = vmatprep.subr.mxu0 0.0
    %712 = vmatpush2.msra.mxu0 0.0
    %713 = vmatprep.subr.mxu0 0.0
    %714 = vmatpush2.msra.mxu0 0.0
    %715 = vmatprep.subr.mxu0 0.0
    %716 = vmatpush2.msra.mxu0 0.0
    %717 = vmatprep.subr.mxu0 0.0
    %718 = vmatpush2.msra.mxu0 0.0
    %719 = vmatprep.subr.mxu0 0.0
    %720 = vmatpush2.msra.mxu0 0.0
    %721 = vmatprep.subr.mxu0 0.0
    %722 = vmatpush2.msra.mxu0 0.0
    %723 = vmatprep.subr.mxu0 0.0
    %724 = vmatpush2.msra.mxu0 0.0
    %725 = vmatprep.subr.mxu0 0.0
    %726 = vmatpush2.msra.mxu0 0.0
    %727 = vmatprep.subr.mxu0 0.0
    %728 = vmatpush2.msra.mxu0 0.0
    %729 = vmatprep.subr.mxu0 0.0
    %730 = vmatpush2.msra.mxu0 0.0
    %731 = vmatprep.subr.mxu0 0.0
    %732 = vmatpush2.msra.mxu0 0.0
    %733 = vmatprep.mubr.f32.mxu0 0.0
    %734 = vmatmul.mubr.f32.gmra.mxu0 %v664
    %v735 = vpop.f32.mrf.mxu0
    %v736 = vadd.f32 0.0, %v735
    %v737 = vpop.f32.mrf.mxu0
    %v738 = vadd.f32 0.0, %v737
    %739 = vmatprep.mubr.f32.mxu0 0.0
    %740 = vmatmul.mubr.f32.gmra.mxu0 %v667
    %v741 = vpop.f32.mrf.mxu0
    %v742 = vadd.f32 0.0, %v741
    %v743 = vpop.f32.mrf.mxu0
    %v744 = vadd.f32 0.0, %v743
    %745 = vdwg.mxu0
    %v746 = vld [vmem:[%s12] sm:$0x1]
    %v748 = vlaneseq
    %v749 = vshrl.u32 %v748, 7
    %v750 = vsub.s32 0, %v749
    %v751 = vrot.slane %v746, %v750
    %v753 = vadd.f32 %v580, %v751
    %v754 = vadd.f32 %v585, %v751
    %v755 = vadd.f32 %v590, %v751
    %v756 = vadd.f32 %v595, %v751
    %v757 = vadd.f32 %v600, %v751
    %v758 = vadd.f32 %v605, %v751
    %v759 = vadd.f32 %v610, %v751
    %v760 = vadd.f32 %v615, %v751
    %v761 = vadd.f32 %v620, %v751
    %v762 = vadd.f32 %v625, %v751
    %v763 = vadd.f32 %v630, %v751
    %v764 = vadd.f32 %v635, %v751
    %v765 = vadd.f32 %v640, %v751
    %v766 = vadd.f32 %v645, %v751
    %v767 = vadd.f32 %v650, %v751
    %v768 = vadd.f32 %v655, %v751
    %v769 = vxor.u32 %v753, 2147483648
    %v770 = vxor.u32 %v754, 2147483648
    %v771 = vxor.u32 %v755, 2147483648
    %v772 = vxor.u32 %v756, 2147483648
    %v773 = vxor.u32 %v757, 2147483648
    %v774 = vxor.u32 %v758, 2147483648
    %v775 = vxor.u32 %v759, 2147483648
    %v776 = vxor.u32 %v760, 2147483648
    %v777 = vxor.u32 %v761, 2147483648
    %v778 = vxor.u32 %v762, 2147483648
    %v779 = vxor.u32 %v763, 2147483648
    %v780 = vxor.u32 %v764, 2147483648
    %v781 = vxor.u32 %v765, 2147483648
    %v782 = vxor.u32 %v766, 2147483648
    %v783 = vxor.u32 %v767, 2147483648
    %v784 = vxor.u32 %v768, 2147483648
    %v785 = vmul.f32 %v769, 1.442695
    %v786 = vpow.pop %v785
    %v787 = vmul.f32 %v770, 1.442695
    %v788 = vpow.pop %v787
    %v789 = vmul.f32 %v771, 1.442695
    %v790 = vpow.pop %v789
    %v791 = vmul.f32 %v772, 1.442695
    %v792 = vpow.pop %v791
    %v793 = vmul.f32 %v773, 1.442695
    %v794 = vpow.pop %v793
    %v795 = vmul.f32 %v774, 1.442695
    %v796 = vpow.pop %v795
    %v797 = vmul.f32 %v775, 1.442695
    %v798 = vpow.pop %v797
    %v799 = vmul.f32 %v776, 1.442695
    %v800 = vpow.pop %v799
    %v801 = vmul.f32 %v777, 1.442695
    %v802 = vpow.pop %v801
    %v803 = vmul.f32 %v778, 1.442695
    %v804 = vpow.pop %v803
    %v805 = vmul.f32 %v779, 1.442695
    %v806 = vpow.pop %v805
    %v807 = vmul.f32 %v780, 1.442695
    %v808 = vpow.pop %v807
    %v809 = vmul.f32 %v781, 1.442695
    %v810 = vpow.pop %v809
    %v811 = vmul.f32 %v782, 1.442695
    %v812 = vpow.pop %v811
    %v813 = vmul.f32 %v783, 1.442695
    %v814 = vpow.pop %v813
    %v815 = vmul.f32 %v784, 1.442695
    %v816 = vpow.pop %v815
    %v817 = vadd.f32 %v786, 1.0
    %v818 = vadd.f32 %v788, 1.0
    %v819 = vadd.f32 %v790, 1.0
    %v820 = vadd.f32 %v792, 1.0
    %v821 = vadd.f32 %v794, 1.0
    %v822 = vadd.f32 %v796, 1.0
    %v823 = vadd.f32 %v798, 1.0
    %v824 = vadd.f32 %v800, 1.0
    %v825 = vadd.f32 %v802, 1.0
    %v826 = vadd.f32 %v804, 1.0
    %v827 = vadd.f32 %v806, 1.0
    %v828 = vadd.f32 %v808, 1.0
    %v829 = vadd.f32 %v810, 1.0
    %v830 = vadd.f32 %v812, 1.0
    %v831 = vadd.f32 %v814, 1.0
    %v832 = vadd.f32 %v816, 1.0
    %v833 = vrcp.pop %v817
    %v834 = vmul.f32 1.0, %v833
    %v835 = vrcp.pop %v818
    %v836 = vmul.f32 1.0, %v835
    %v837 = vrcp.pop %v819
    %v838 = vmul.f32 1.0, %v837
    %v839 = vrcp.pop %v820
    %v840 = vmul.f32 1.0, %v839
    %v841 = vrcp.pop %v821
    %v842 = vmul.f32 1.0, %v841
    %v843 = vrcp.pop %v822
    %v844 = vmul.f32 1.0, %v843
    %v845 = vrcp.pop %v823
    %v846 = vmul.f32 1.0, %v845
    %v847 = vrcp.pop %v824
    %v848 = vmul.f32 1.0, %v847
    %v849 = vrcp.pop %v825
    %v850 = vmul.f32 1.0, %v849
    %v851 = vrcp.pop %v826
    %v852 = vmul.f32 1.0, %v851
    %v853 = vrcp.pop %v827
    %v854 = vmul.f32 1.0, %v853
    %v855 = vrcp.pop %v828
    %v856 = vmul.f32 1.0, %v855
    %v857 = vrcp.pop %v829
    %v858 = vmul.f32 1.0, %v857
    %v859 = vrcp.pop %v830
    %v860 = vmul.f32 1.0, %v859
    %v861 = vrcp.pop %v831
    %v862 = vmul.f32 1.0, %v861
    %v863 = vrcp.pop %v832
    %v864 = vmul.f32 1.0, %v863
    %v865 = vmul.f32 %v80, %v290
    %v866 = vmul.f32 %v81, %v295
    %v867 = vmul.f32 %v82, %v300
    %v868 = vmul.f32 %v83, %v305
    %v869 = vmul.f32 %v84, %v310
    %v870 = vmul.f32 %v85, %v315
    %v871 = vmul.f32 %v86, %v320
    %v872 = vmul.f32 %v87, %v325
    %v873 = vmul.f32 %v88, %v330
    %v874 = vmul.f32 %v89, %v335
    %v875 = vmul.f32 %v90, %v340
    %v876 = vmul.f32 %v91, %v345
    %v877 = vmul.f32 %v92, %v350
    %v878 = vmul.f32 %v93, %v355
    %v879 = vmul.f32 %v94, %v360
    %v880 = vmul.f32 %v95, %v365
    %881 = vmatprep.subr.mxu0 0.0
    %882 = vmatpush1.msra.mxu0 %v111
    %883 = vmatprep.subr.mxu0 0.0
    %884 = vmatpush1.msra.mxu0 %v110
    %885 = vmatprep.subr.mxu0 0.0
    %886 = vmatpush1.msra.mxu0 %v109
    %887 = vmatprep.subr.mxu0 0.0
    %888 = vmatpush1.msra.mxu0 %v108
    %889 = vmatprep.subr.mxu0 0.0
    %890 = vmatpush1.msra.mxu0 %v107
    %891 = vmatprep.subr.mxu0 0.0
    %892 = vmatpush1.msra.mxu0 %v106
    %893 = vmatprep.subr.mxu0 0.0
    %894 = vmatpush1.msra.mxu0 %v105
    %895 = vmatprep.subr.mxu0 0.0
    %896 = vmatpush1.msra.mxu0 %v104
    %897 = vmatprep.subr.mxu0 0.0
    %898 = vmatpush1.msra.mxu0 %v103
    %899 = vmatprep.subr.mxu0 0.0
    %900 = vmatpush1.msra.mxu0 %v102
    %901 = vmatprep.subr.mxu0 0.0
    %902 = vmatpush1.msra.mxu0 %v101
    %903 = vmatprep.subr.mxu0 0.0
    %904 = vmatpush1.msra.mxu0 %v100
    %905 = vmatprep.subr.mxu0 0.0
    %906 = vmatpush1.msra.mxu0 %v99
    %907 = vmatprep.subr.mxu0 0.0
    %908 = vmatpush1.msra.mxu0 %v98
    %909 = vmatprep.subr.mxu0 0.0
    %910 = vmatpush1.msra.mxu0 %v97
    %911 = vmatprep.subr.mxu0 0.0
    %912 = vmatpush1.msra.mxu0 %v96
    %913 = vmatprep.subr.mxu0 0.0
    %914 = vmatpush2.msra.mxu0 0.0
    %915 = vmatprep.subr.mxu0 0.0
    %916 = vmatpush2.msra.mxu0 0.0
    %917 = vmatprep.subr.mxu0 0.0
    %918 = vmatpush2.msra.mxu0 0.0
    %919 = vmatprep.subr.mxu0 0.0
    %920 = vmatpush2.msra.mxu0 0.0
    %921 = vmatprep.subr.mxu0 0.0
    %922 = vmatpush2.msra.mxu0 0.0
    %923 = vmatprep.subr.mxu0 0.0
    %924 = vmatpush2.msra.mxu0 0.0
    %925 = vmatprep.subr.mxu0 0.0
    %926 = vmatpush2.msra.mxu0 0.0
    %927 = vmatprep.subr.mxu0 0.0
    %928 = vmatpush2.msra.mxu0 0.0
    %929 = vmatprep.subr.mxu0 0.0
    %930 = vmatpush2.msra.mxu0 0.0
    %931 = vmatprep.subr.mxu0 0.0
    %932 = vmatpush2.msra.mxu0 0.0
    %933 = vmatprep.subr.mxu0 0.0
    %934 = vmatpush2.msra.mxu0 0.0
    %935 = vmatprep.subr.mxu0 0.0
    %936 = vmatpush2.msra.mxu0 0.0
    %937 = vmatprep.subr.mxu0 0.0
    %938 = vmatpush2.msra.mxu0 0.0
    %939 = vmatprep.subr.mxu0 0.0
    %940 = vmatpush2.msra.mxu0 0.0
    %941 = vmatprep.subr.mxu0 0.0
    %942 = vmatpush2.msra.mxu0 0.0
    %943 = vmatprep.subr.mxu0 0.0
    %944 = vmatpush2.msra.mxu0 0.0
    %945 = vmatprep.mubr.f32.mxu0 0.0
    %946 = vmatmul.mubr.f32.gmra.mxu0 %v865
    %v947 = vpop.f32.mrf.mxu0
    %v948 = vadd.f32 %v436, %v947
    %v949 = vpop.f32.mrf.mxu0
    %950 = vmatprep.mubr.f32.mxu0 0.0
    %951 = vmatmul.mubr.f32.gmra.mxu0 %v866
    %v952 = vpop.f32.mrf.mxu0
    %v953 = vadd.f32 %v441, %v952
    %v954 = vpop.f32.mrf.mxu0
    %955 = vmatprep.mubr.f32.mxu0 0.0
    %956 = vmatmul.mubr.f32.gmra.mxu0 %v867
    %v957 = vpop.f32.mrf.mxu0
    %v958 = vadd.f32 %v446, %v957
    %v959 = vpop.f32.mrf.mxu0
    %960 = vmatprep.mubr.f32.mxu0 0.0
    %961 = vmatmul.mubr.f32.gmra.mxu0 %v868
    %v962 = vpop.f32.mrf.mxu0
    %v963 = vadd.f32 %v451, %v962
    %v964 = vpop.f32.mrf.mxu0
    %965 = vmatprep.mubr.f32.mxu0 0.0
    %966 = vmatmul.mubr.f32.gmra.mxu0 %v869
    %v967 = vpop.f32.mrf.mxu0
    %v968 = vadd.f32 %v456, %v967
    %v969 = vpop.f32.mrf.mxu0
    %970 = vmatprep.mubr.f32.mxu0 0.0
    %971 = vmatmul.mubr.f32.gmra.mxu0 %v870
    %v972 = vpop.f32.mrf.mxu0
    %v973 = vadd.f32 %v461, %v972
    %v974 = vpop.f32.mrf.mxu0
    %975 = vmatprep.mubr.f32.mxu0 0.0
    %976 = vmatmul.mubr.f32.gmra.mxu0 %v871
    %v977 = vpop.f32.mrf.mxu0
    %v978 = vadd.f32 %v466, %v977
    %v979 = vpop.f32.mrf.mxu0
    %980 = vmatprep.mubr.f32.mxu0 0.0
    %981 = vmatmul.mubr.f32.gmra.mxu0 %v872
    %v982 = vpop.f32.mrf.mxu0
    %v983 = vadd.f32 %v471, %v982
    %v984 = vpop.f32.mrf.mxu0
    %985 = vmatprep.mubr.f32.mxu0 0.0
    %986 = vmatmul.mubr.f32.gmra.mxu0 %v873
    %v987 = vpop.f32.mrf.mxu0
    %v988 = vadd.f32 %v476, %v987
    %v989 = vpop.f32.mrf.mxu0
    %990 = vmatprep.mubr.f32.mxu0 0.0
    %991 = vmatmul.mubr.f32.gmra.mxu0 %v874
    %v992 = vpop.f32.mrf.mxu0
    %v993 = vadd.f32 %v481, %v992
    %v994 = vpop.f32.mrf.mxu0
    %995 = vmatprep.mubr.f32.mxu0 0.0
    %996 = vmatmul.mubr.f32.gmra.mxu0 %v875
    %v997 = vpop.f32.mrf.mxu0
    %v998 = vadd.f32 %v486, %v997
    %v999 = vpop.f32.mrf.mxu0
    %1000 = vmatprep.mubr.f32.mxu0 0.0
    %1001 = vmatmul.mubr.f32.gmra.mxu0 %v876
    %v1002 = vpop.f32.mrf.mxu0
    %v1003 = vadd.f32 %v491, %v1002
    %v1004 = vpop.f32.mrf.mxu0
    %1005 = vmatprep.mubr.f32.mxu0 0.0
    %1006 = vmatmul.mubr.f32.gmra.mxu0 %v877
    %v1007 = vpop.f32.mrf.mxu0
    %v1008 = vadd.f32 %v496, %v1007
    %v1009 = vpop.f32.mrf.mxu0
    %1010 = vmatprep.mubr.f32.mxu0 0.0
    %1011 = vmatmul.mubr.f32.gmra.mxu0 %v878
    %v1012 = vpop.f32.mrf.mxu0
    %v1013 = vadd.f32 %v501, %v1012
    %v1014 = vpop.f32.mrf.mxu0
    %1015 = vmatprep.mubr.f32.mxu0 0.0
    %1016 = vmatmul.mubr.f32.gmra.mxu0 %v879
    %v1017 = vpop.f32.mrf.mxu0
    %v1018 = vadd.f32 %v506, %v1017
    %v1019 = vpop.f32.mrf.mxu0
    %1020 = vmatprep.mubr.f32.mxu0 0.0
    %1021 = vmatmul.mubr.f32.gmra.mxu0 %v880
    %v1022 = vpop.f32.mrf.mxu0
    %v1023 = vadd.f32 %v511, %v1022
    %v1024 = vpop.f32.mrf.mxu0
    %1025 = vdwg.mxu0
    %v1026 = vld [vmem:[%s11 + $0x2] sm:$0x1]
    %v1028 = vlaneseq
    %v1029 = vshrl.u32 %v1028, 7
    %v1030 = vsub.s32 0, %v1029
    %v1031 = vrot.slane %v1026, %v1030
    %v1033 = vmul.f32 %v948, %v1031
    %v1034 = vmul.f32 %v953, %v1031
    %v1035 = vmul.f32 %v958, %v1031
    %v1036 = vmul.f32 %v963, %v1031
    %v1037 = vmul.f32 %v968, %v1031
    %v1038 = vmul.f32 %v973, %v1031
    %v1039 = vmul.f32 %v978, %v1031
    %v1040 = vmul.f32 %v983, %v1031
    %v1041 = vmul.f32 %v988, %v1031
    %v1042 = vmul.f32 %v993, %v1031
    %v1043 = vmul.f32 %v998, %v1031
    %v1044 = vmul.f32 %v1003, %v1031
    %v1045 = vmul.f32 %v1008, %v1031
    %v1046 = vmul.f32 %v1013, %v1031
    %v1047 = vmul.f32 %v1018, %v1031
    %v1048 = vmul.f32 %v1023, %v1031
    %1049 = vadd.xlane.f32.xlu0 %v1033
    %v1050 = vpop.xlane.xlu0 %1049
    %1051 = vadd.xlane.f32.xlu0 %v1034
    %v1052 = vpop.xlane.xlu0 %1051
    %1053 = vadd.xlane.f32.xlu0 %v1035
    %v1054 = vpop.xlane.xlu0 %1053
    %1055 = vadd.xlane.f32.xlu0 %v1036
    %v1056 = vpop.xlane.xlu0 %1055
    %1057 = vadd.xlane.f32.xlu0 %v1037
    %v1058 = vpop.xlane.xlu0 %1057
    %1059 = vadd.xlane.f32.xlu0 %v1038
    %v1060 = vpop.xlane.xlu0 %1059
    %1061 = vadd.xlane.f32.xlu0 %v1039
    %v1062 = vpop.xlane.xlu0 %1061
    %1063 = vadd.xlane.f32.xlu0 %v1040
    %v1064 = vpop.xlane.xlu0 %1063
    %1065 = vadd.xlane.f32.xlu0 %v1041
    %v1066 = vpop.xlane.xlu0 %1065
    %1067 = vadd.xlane.f32.xlu0 %v1042
    %v1068 = vpop.xlane.xlu0 %1067
    %1069 = vadd.xlane.f32.xlu0 %v1043
    %v1070 = vpop.xlane.xlu0 %1069
    %1071 = vadd.xlane.f32.xlu0 %v1044
    %v1072 = vpop.xlane.xlu0 %1071
    %1073 = vadd.xlane.f32.xlu0 %v1045
    %v1074 = vpop.xlane.xlu0 %1073
    %1075 = vadd.xlane.f32.xlu0 %v1046
    %v1076 = vpop.xlane.xlu0 %1075
    %1077 = vadd.xlane.f32.xlu0 %v1047
    %v1078 = vpop.xlane.xlu0 %1077
    %1079 = vadd.xlane.f32.xlu0 %v1048
    %v1080 = vpop.xlane.xlu0 %1079
    %v1081 = vmul.f32 %v834, %v1050
    %v1082 = vmul.f32 %v836, %v1052
    %v1083 = vmul.f32 %v838, %v1054
    %v1084 = vmul.f32 %v840, %v1056
    %v1085 = vmul.f32 %v842, %v1058
    %v1086 = vmul.f32 %v844, %v1060
    %v1087 = vmul.f32 %v846, %v1062
    %v1088 = vmul.f32 %v848, %v1064
    %v1089 = vmul.f32 %v850, %v1066
    %v1090 = vmul.f32 %v852, %v1068
    %v1091 = vmul.f32 %v854, %v1070
    %v1092 = vmul.f32 %v856, %v1072
    %v1093 = vmul.f32 %v858, %v1074
    %v1094 = vmul.f32 %v860, %v1076
    %v1095 = vmul.f32 %v862, %v1078
    %v1096 = vmul.f32 %v864, %v1080
    %1113 = vrot.lane.b32.xlu0 %v580, 125
    %v1114 = vpop.permute.xlu0 %1113
    %1115 = vrot.lane.b32.xlu0 %v585, 125
    %v1116 = vpop.permute.xlu0 %1115
    %1117 = vrot.lane.b32.xlu0 %v590, 125
    %v1118 = vpop.permute.xlu0 %1117
    %1119 = vrot.lane.b32.xlu0 %v595, 125
    %v1120 = vpop.permute.xlu0 %1119
    %1121 = vrot.lane.b32.xlu0 %v600, 125
    %v1122 = vpop.permute.xlu0 %1121
    %1123 = vrot.lane.b32.xlu0 %v605, 125
    %v1124 = vpop.permute.xlu0 %1123
    %1125 = vrot.lane.b32.xlu0 %v610, 125
    %v1126 = vpop.permute.xlu0 %1125
    %1127 = vrot.lane.b32.xlu0 %v615, 125
    %v1128 = vpop.permute.xlu0 %1127
    %1129 = vrot.lane.b32.xlu0 %v620, 125
    %v1130 = vpop.permute.xlu0 %1129
    %1131 = vrot.lane.b32.xlu0 %v625, 125
    %v1132 = vpop.permute.xlu0 %1131
    %1133 = vrot.lane.b32.xlu0 %v630, 125
    %v1134 = vpop.permute.xlu0 %1133
    %1135 = vrot.lane.b32.xlu0 %v635, 125
    %v1136 = vpop.permute.xlu0 %1135
    %1137 = vrot.lane.b32.xlu0 %v640, 125
    %v1138 = vpop.permute.xlu0 %1137
    %1139 = vrot.lane.b32.xlu0 %v645, 125
    %v1140 = vpop.permute.xlu0 %1139
    %1141 = vrot.lane.b32.xlu0 %v650, 125
    %v1142 = vpop.permute.xlu0 %1141
    %1143 = vrot.lane.b32.xlu0 %v655, 125
    %v1144 = vpop.permute.xlu0 %1143
    %v1161 = vadd.f32 %v1081, %v1114
    %v1162 = vadd.f32 %v1082, %v1116
    %v1163 = vadd.f32 %v1083, %v1118
    %v1164 = vadd.f32 %v1084, %v1120
    %v1165 = vadd.f32 %v1085, %v1122
    %v1166 = vadd.f32 %v1086, %v1124
    %v1167 = vadd.f32 %v1087, %v1126
    %v1168 = vadd.f32 %v1088, %v1128
    %v1169 = vadd.f32 %v1089, %v1130
    %v1170 = vadd.f32 %v1090, %v1132
    %v1171 = vadd.f32 %v1091, %v1134
    %v1172 = vadd.f32 %v1092, %v1136
    %v1173 = vadd.f32 %v1093, %v1138
    %v1174 = vadd.f32 %v1094, %v1140
    %v1175 = vadd.f32 %v1095, %v1142
    %v1176 = vadd.f32 %v1096, %v1144
    %v1177 = vld [vmem:[%s13] sm:$0x1]
    %v1179 = vlaneseq
    %v1180 = vshrl.u32 %v1179, 7
    %v1181 = vsub.s32 0, %v1180
    %v1182 = vrot.slane %v1177, %v1181
    %v1184 = vadd.f32 %v1161, %v1182
    %v1185 = vadd.f32 %v1162, %v1182
    %v1186 = vadd.f32 %v1163, %v1182
    %v1187 = vadd.f32 %v1164, %v1182
    %v1188 = vadd.f32 %v1165, %v1182
    %v1189 = vadd.f32 %v1166, %v1182
    %v1190 = vadd.f32 %v1167, %v1182
    %v1191 = vadd.f32 %v1168, %v1182
    %v1192 = vadd.f32 %v1169, %v1182
    %v1193 = vadd.f32 %v1170, %v1182
    %v1194 = vadd.f32 %v1171, %v1182
    %v1195 = vadd.f32 %v1172, %v1182
    %v1196 = vadd.f32 %v1173, %v1182
    %v1197 = vadd.f32 %v1174, %v1182
    %v1198 = vadd.f32 %v1175, %v1182
    %v1199 = vadd.f32 %v1176, %v1182
    %v1200 = vtanh.pop %v1184
    %v1201 = vtanh.pop %v1185
    %v1202 = vtanh.pop %v1186
    %v1203 = vtanh.pop %v1187
    %v1204 = vtanh.pop %v1188
    %v1205 = vtanh.pop %v1189
    %v1206 = vtanh.pop %v1190
    %v1207 = vtanh.pop %v1191
    %v1208 = vtanh.pop %v1192
    %v1209 = vtanh.pop %v1193
    %v1210 = vtanh.pop %v1194
    %v1211 = vtanh.pop %v1195
    %v1212 = vtanh.pop %v1196
    %v1213 = vtanh.pop %v1197
    %v1214 = vtanh.pop %v1198
    %v1215 = vtanh.pop %v1199
    %v1216 = vmul.f32 %v1200, 1.442695
    %v1217 = vpow.pop %v1216
    %v1218 = vmul.f32 %v1201, 1.442695
    %v1219 = vpow.pop %v1218
    %v1220 = vmul.f32 %v1202, 1.442695
    %v1221 = vpow.pop %v1220
    %v1222 = vmul.f32 %v1203, 1.442695
    %v1223 = vpow.pop %v1222
    %v1224 = vmul.f32 %v1204, 1.442695
    %v1225 = vpow.pop %v1224
    %v1226 = vmul.f32 %v1205, 1.442695
    %v1227 = vpow.pop %v1226
    %v1228 = vmul.f32 %v1206, 1.442695
    %v1229 = vpow.pop %v1228
    %v1230 = vmul.f32 %v1207, 1.442695
    %v1231 = vpow.pop %v1230
    %v1232 = vmul.f32 %v1208, 1.442695
    %v1233 = vpow.pop %v1232
    %v1234 = vmul.f32 %v1209, 1.442695
    %v1235 = vpow.pop %v1234
    %v1236 = vmul.f32 %v1210, 1.442695
    %v1237 = vpow.pop %v1236
    %v1238 = vmul.f32 %v1211, 1.442695
    %v1239 = vpow.pop %v1238
    %v1240 = vmul.f32 %v1212, 1.442695
    %v1241 = vpow.pop %v1240
    %v1242 = vmul.f32 %v1213, 1.442695
    %v1243 = vpow.pop %v1242
    %v1244 = vmul.f32 %v1214, 1.442695
    %v1245 = vpow.pop %v1244
    %v1246 = vmul.f32 %v1215, 1.442695
    %v1247 = vpow.pop %v1246
    %1264 = vrot.lane.b32.xlu0 %v64, 2
    %v1265 = vpop.permute.xlu0 %1264
    %1266 = vrot.lane.b32.xlu0 %v65, 2
    %v1267 = vpop.permute.xlu0 %1266
    %1268 = vrot.lane.b32.xlu0 %v66, 2
    %v1269 = vpop.permute.xlu0 %1268
    %1270 = vrot.lane.b32.xlu0 %v67, 2
    %v1271 = vpop.permute.xlu0 %1270
    %1272 = vrot.lane.b32.xlu0 %v68, 2
    %v1273 = vpop.permute.xlu0 %1272
    %1274 = vrot.lane.b32.xlu0 %v69, 2
    %v1275 = vpop.permute.xlu0 %1274
    %1276 = vrot.lane.b32.xlu0 %v70, 2
    %v1277 = vpop.permute.xlu0 %1276
    %1278 = vrot.lane.b32.xlu0 %v71, 2
    %v1279 = vpop.permute.xlu0 %1278
    %1280 = vrot.lane.b32.xlu0 %v72, 2
    %v1281 = vpop.permute.xlu0 %1280
    %1282 = vrot.lane.b32.xlu0 %v73, 2
    %v1283 = vpop.permute.xlu0 %1282
    %1284 = vrot.lane.b32.xlu0 %v74, 2
    %v1285 = vpop.permute.xlu0 %1284
    %1286 = vrot.lane.b32.xlu0 %v75, 2
    %v1287 = vpop.permute.xlu0 %1286
    %1288 = vrot.lane.b32.xlu0 %v76, 2
    %v1289 = vpop.permute.xlu0 %1288
    %1290 = vrot.lane.b32.xlu0 %v77, 2
    %v1291 = vpop.permute.xlu0 %1290
    %1292 = vrot.lane.b32.xlu0 %v78, 2
    %v1293 = vpop.permute.xlu0 %1292
    %1294 = vrot.lane.b32.xlu0 %v79, 2
    %v1295 = vpop.permute.xlu0 %1294
    %v1312 = vmul.f32 %v1217, %v1265
    %v1313 = vmul.f32 %v1219, %v1267
    %v1314 = vmul.f32 %v1221, %v1269
    %v1315 = vmul.f32 %v1223, %v1271
    %v1316 = vmul.f32 %v1225, %v1273
    %v1317 = vmul.f32 %v1227, %v1275
    %v1318 = vmul.f32 %v1229, %v1277
    %v1319 = vmul.f32 %v1231, %v1279
    %v1320 = vmul.f32 %v1233, %v1281
    %v1321 = vmul.f32 %v1235, %v1283
    %v1322 = vmul.f32 %v1237, %v1285
    %v1323 = vmul.f32 %v1239, %v1287
    %v1324 = vmul.f32 %v1241, %v1289
    %v1325 = vmul.f32 %v1243, %v1291
    %v1326 = vmul.f32 %v1245, %v1293
    %v1327 = vmul.f32 %v1247, %v1295
    %vm1328 = vcmask 23568
    %v1329 = vsel %vm1328, %v1312, 0.0
    %v1330 = vrot.slane %v1329, 4
    %v1331 = vadd.f32 %v1329, %v1330
    %v1332 = vrot.slane %v1331, 2
    %v1333 = vadd.f32 %v1331, %v1332
    %v1334 = vrot.slane %v1333, 1
    %v1335 = vadd.f32 %v1333, %v1334
    %v1336 = vsel %vm1328, %v1313, 0.0
    %v1337 = vrot.slane %v1336, 4
    %v1338 = vadd.f32 %v1336, %v1337
    %v1339 = vrot.slane %v1338, 2
    %v1340 = vadd.f32 %v1338, %v1339
    %v1341 = vrot.slane %v1340, 1
    %v1342 = vadd.f32 %v1340, %v1341
    %v1343 = vsel %vm1328, %v1314, 0.0
    %v1344 = vrot.slane %v1343, 4
    %v1345 = vadd.f32 %v1343, %v1344
    %v1346 = vrot.slane %v1345, 2
    %v1347 = vadd.f32 %v1345, %v1346
    %v1348 = vrot.slane %v1347, 1
    %v1349 = vadd.f32 %v1347, %v1348
    %v1350 = vsel %vm1328, %v1315, 0.0
    %v1351 = vrot.slane %v1350, 4
    %v1352 = vadd.f32 %v1350, %v1351
    %v1353 = vrot.slane %v1352, 2
    %v1354 = vadd.f32 %v1352, %v1353
    %v1355 = vrot.slane %v1354, 1
    %v1356 = vadd.f32 %v1354, %v1355
    %v1357 = vsel %vm1328, %v1316, 0.0
    %v1358 = vrot.slane %v1357, 4
    %v1359 = vadd.f32 %v1357, %v1358
    %v1360 = vrot.slane %v1359, 2
    %v1361 = vadd.f32 %v1359, %v1360
    %v1362 = vrot.slane %v1361, 1
    %v1363 = vadd.f32 %v1361, %v1362
    %v1364 = vsel %vm1328, %v1317, 0.0
    %v1365 = vrot.slane %v1364, 4
    %v1366 = vadd.f32 %v1364, %v1365
    %v1367 = vrot.slane %v1366, 2
    %v1368 = vadd.f32 %v1366, %v1367
    %v1369 = vrot.slane %v1368, 1
    %v1370 = vadd.f32 %v1368, %v1369
    %v1371 = vsel %vm1328, %v1318, 0.0
    %v1372 = vrot.slane %v1371, 4
    %v1373 = vadd.f32 %v1371, %v1372
    %v1374 = vrot.slane %v1373, 2
    %v1375 = vadd.f32 %v1373, %v1374
    %v1376 = vrot.slane %v1375, 1
    %v1377 = vadd.f32 %v1375, %v1376
    %v1378 = vsel %vm1328, %v1319, 0.0
    %v1379 = vrot.slane %v1378, 4
    %v1380 = vadd.f32 %v1378, %v1379
    %v1381 = vrot.slane %v1380, 2
    %v1382 = vadd.f32 %v1380, %v1381
    %v1383 = vrot.slane %v1382, 1
    %v1384 = vadd.f32 %v1382, %v1383
    %v1385 = vsel %vm1328, %v1320, 0.0
    %v1386 = vrot.slane %v1385, 4
    %v1387 = vadd.f32 %v1385, %v1386
    %v1388 = vrot.slane %v1387, 2
    %v1389 = vadd.f32 %v1387, %v1388
    %v1390 = vrot.slane %v1389, 1
    %v1391 = vadd.f32 %v1389, %v1390
    %v1392 = vsel %vm1328, %v1321, 0.0
    %v1393 = vrot.slane %v1392, 4
    %v1394 = vadd.f32 %v1392, %v1393
    %v1395 = vrot.slane %v1394, 2
    %v1396 = vadd.f32 %v1394, %v1395
    %v1397 = vrot.slane %v1396, 1
    %v1398 = vadd.f32 %v1396, %v1397
    %v1399 = vsel %vm1328, %v1322, 0.0
    %v1400 = vrot.slane %v1399, 4
    %v1401 = vadd.f32 %v1399, %v1400
    %v1402 = vrot.slane %v1401, 2
    %v1403 = vadd.f32 %v1401, %v1402
    %v1404 = vrot.slane %v1403, 1
    %v1405 = vadd.f32 %v1403, %v1404
    %v1406 = vsel %vm1328, %v1323, 0.0
    %v1407 = vrot.slane %v1406, 4
    %v1408 = vadd.f32 %v1406, %v1407
    %v1409 = vrot.slane %v1408, 2
    %v1410 = vadd.f32 %v1408, %v1409
    %v1411 = vrot.slane %v1410, 1
    %v1412 = vadd.f32 %v1410, %v1411
    %v1413 = vsel %vm1328, %v1324, 0.0
    %v1414 = vrot.slane %v1413, 4
    %v1415 = vadd.f32 %v1413, %v1414
    %v1416 = vrot.slane %v1415, 2
    %v1417 = vadd.f32 %v1415, %v1416
    %v1418 = vrot.slane %v1417, 1
    %v1419 = vadd.f32 %v1417, %v1418
    %v1420 = vsel %vm1328, %v1325, 0.0
    %v1421 = vrot.slane %v1420, 4
    %v1422 = vadd.f32 %v1420, %v1421
    %v1423 = vrot.slane %v1422, 2
    %v1424 = vadd.f32 %v1422, %v1423
    %v1425 = vrot.slane %v1424, 1
    %v1426 = vadd.f32 %v1424, %v1425
    %v1427 = vsel %vm1328, %v1326, 0.0
    %v1428 = vrot.slane %v1427, 4
    %v1429 = vadd.f32 %v1427, %v1428
    %v1430 = vrot.slane %v1429, 2
    %v1431 = vadd.f32 %v1429, %v1430
    %v1432 = vrot.slane %v1431, 1
    %v1433 = vadd.f32 %v1431, %v1432
    %v1434 = vsel %vm1328, %v1327, 0.0
    %v1435 = vrot.slane %v1434, 4
    %v1436 = vadd.f32 %v1434, %v1435
    %v1437 = vrot.slane %v1436, 2
    %v1438 = vadd.f32 %v1436, %v1437
    %v1439 = vrot.slane %v1438, 1
    %v1440 = vadd.f32 %v1438, %v1439
    %v1441 = vmul.f32 %v834, %v1312
    %v1442 = vmul.f32 %v836, %v1313
    %v1443 = vmul.f32 %v838, %v1314
    %v1444 = vmul.f32 %v840, %v1315
    %v1445 = vmul.f32 %v842, %v1316
    %v1446 = vmul.f32 %v844, %v1317
    %v1447 = vmul.f32 %v846, %v1318
    %v1448 = vmul.f32 %v848, %v1319
    %v1449 = vmul.f32 %v850, %v1320
    %v1450 = vmul.f32 %v852, %v1321
    %v1451 = vmul.f32 %v854, %v1322
    %v1452 = vmul.f32 %v856, %v1323
    %v1453 = vmul.f32 %v858, %v1324
    %v1454 = vmul.f32 %v860, %v1325
    %v1455 = vmul.f32 %v862, %v1326
    %v1456 = vmul.f32 %v864, %v1327
    %1458 = vset.pattern.permute.xlu0 2
    %1459 = vperm.xlu0 %1458, %v1441
    %v1460 = vpop.permute.xlu0 %1459
    %1463 = vset.pattern.permute.xlu0 2
    %1464 = vperm.xlu0 %1463, %v1442
    %v1465 = vpop.permute.xlu0 %1464
    %1468 = vset.pattern.permute.xlu0 2
    %1469 = vperm.xlu0 %1468, %v1443
    %v1470 = vpop.permute.xlu0 %1469
    %1473 = vset.pattern.permute.xlu0 2
    %1474 = vperm.xlu0 %1473, %v1444
    %v1475 = vpop.permute.xlu0 %1474
    %1478 = vset.pattern.permute.xlu0 2
    %1479 = vperm.xlu0 %1478, %v1445
    %v1480 = vpop.permute.xlu0 %1479
    %1483 = vset.pattern.permute.xlu0 2
    %1484 = vperm.xlu0 %1483, %v1446
    %v1485 = vpop.permute.xlu0 %1484
    %1488 = vset.pattern.permute.xlu0 2
    %1489 = vperm.xlu0 %1488, %v1447
    %v1490 = vpop.permute.xlu0 %1489
    %1493 = vset.pattern.permute.xlu0 2
    %1494 = vperm.xlu0 %1493, %v1448
    %v1495 = vpop.permute.xlu0 %1494
    %1498 = vset.pattern.permute.xlu0 2
    %1499 = vperm.xlu0 %1498, %v1449
    %v1500 = vpop.permute.xlu0 %1499
    %1503 = vset.pattern.permute.xlu0 2
    %1504 = vperm.xlu0 %1503, %v1450
    %v1505 = vpop.permute.xlu0 %1504
    %1508 = vset.pattern.permute.xlu0 2
    %1509 = vperm.xlu0 %1508, %v1451
    %v1510 = vpop.permute.xlu0 %1509
    %1513 = vset.pattern.permute.xlu0 2
    %1514 = vperm.xlu0 %1513, %v1452
    %v1515 = vpop.permute.xlu0 %1514
    %1518 = vset.pattern.permute.xlu0 2
    %1519 = vperm.xlu0 %1518, %v1453
    %v1520 = vpop.permute.xlu0 %1519
    %1523 = vset.pattern.permute.xlu0 2
    %1524 = vperm.xlu0 %1523, %v1454
    %v1525 = vpop.permute.xlu0 %1524
    %1528 = vset.pattern.permute.xlu0 2
    %1529 = vperm.xlu0 %1528, %v1455
    %v1530 = vpop.permute.xlu0 %1529
    %1533 = vset.pattern.permute.xlu0 2
    %1534 = vperm.xlu0 %1533, %v1456
    %v1535 = vpop.permute.xlu0 %1534
    %v1537 = vmul.f32 %v948, %v1460
    %v1538 = vmul.f32 %v953, %v1465
    %v1539 = vmul.f32 %v958, %v1470
    %v1540 = vmul.f32 %v963, %v1475
    %v1541 = vmul.f32 %v968, %v1480
    %v1542 = vmul.f32 %v973, %v1485
    %v1543 = vmul.f32 %v978, %v1490
    %v1544 = vmul.f32 %v983, %v1495
    %v1545 = vmul.f32 %v988, %v1500
    %v1546 = vmul.f32 %v993, %v1505
    %v1547 = vmul.f32 %v998, %v1510
    %v1548 = vmul.f32 %v1003, %v1515
    %v1549 = vmul.f32 %v1008, %v1520
    %v1550 = vmul.f32 %v1013, %v1525
    %v1551 = vmul.f32 %v1018, %v1530
    %v1552 = vmul.f32 %v1023, %v1535
    %v1553 = vrot.slane %v1537, 4
    %v1554 = vadd.f32 %v1537, %v1553
    %v1555 = vrot.slane %v1554, 2
    %v1556 = vadd.f32 %v1554, %v1555
    %v1557 = vrot.slane %v1556, 1
    %v1558 = vadd.f32 %v1556, %v1557
    %v1559 = vrot.slane %v1538, 4
    %v1560 = vadd.f32 %v1538, %v1559
    %v1561 = vrot.slane %v1560, 2
    %v1562 = vadd.f32 %v1560, %v1561
    %v1563 = vrot.slane %v1562, 1
    %v1564 = vadd.f32 %v1562, %v1563
    %v1565 = vrot.slane %v1539, 4
    %v1566 = vadd.f32 %v1539, %v1565
    %v1567 = vrot.slane %v1566, 2
    %v1568 = vadd.f32 %v1566, %v1567
    %v1569 = vrot.slane %v1568, 1
    %v1570 = vadd.f32 %v1568, %v1569
    %v1571 = vrot.slane %v1540, 4
    %v1572 = vadd.f32 %v1540, %v1571
    %v1573 = vrot.slane %v1572, 2
    %v1574 = vadd.f32 %v1572, %v1573
    %v1575 = vrot.slane %v1574, 1
    %v1576 = vadd.f32 %v1574, %v1575
    %v1577 = vrot.slane %v1541, 4
    %v1578 = vadd.f32 %v1541, %v1577
    %v1579 = vrot.slane %v1578, 2
    %v1580 = vadd.f32 %v1578, %v1579
    %v1581 = vrot.slane %v1580, 1
    %v1582 = vadd.f32 %v1580, %v1581
    %v1583 = vrot.slane %v1542, 4
    %v1584 = vadd.f32 %v1542, %v1583
    %v1585 = vrot.slane %v1584, 2
    %v1586 = vadd.f32 %v1584, %v1585
    %v1587 = vrot.slane %v1586, 1
    %v1588 = vadd.f32 %v1586, %v1587
    %v1589 = vrot.slane %v1543, 4
    %v1590 = vadd.f32 %v1543, %v1589
    %v1591 = vrot.slane %v1590, 2
    %v1592 = vadd.f32 %v1590, %v1591
    %v1593 = vrot.slane %v1592, 1
    %v1594 = vadd.f32 %v1592, %v1593
    %v1595 = vrot.slane %v1544, 4
    %v1596 = vadd.f32 %v1544, %v1595
    %v1597 = vrot.slane %v1596, 2
    %v1598 = vadd.f32 %v1596, %v1597
    %v1599 = vrot.slane %v1598, 1
    %v1600 = vadd.f32 %v1598, %v1599
    %v1601 = vrot.slane %v1545, 4
    %v1602 = vadd.f32 %v1545, %v1601
    %v1603 = vrot.slane %v1602, 2
    %v1604 = vadd.f32 %v1602, %v1603
    %v1605 = vrot.slane %v1604, 1
    %v1606 = vadd.f32 %v1604, %v1605
    %v1607 = vrot.slane %v1546, 4
    %v1608 = vadd.f32 %v1546, %v1607
    %v1609 = vrot.slane %v1608, 2
    %v1610 = vadd.f32 %v1608, %v1609
    %v1611 = vrot.slane %v1610, 1
    %v1612 = vadd.f32 %v1610, %v1611
    %v1613 = vrot.slane %v1547, 4
    %v1614 = vadd.f32 %v1547, %v1613
    %v1615 = vrot.slane %v1614, 2
    %v1616 = vadd.f32 %v1614, %v1615
    %v1617 = vrot.slane %v1616, 1
    %v1618 = vadd.f32 %v1616, %v1617
    %v1619 = vrot.slane %v1548, 4
    %v1620 = vadd.f32 %v1548, %v1619
    %v1621 = vrot.slane %v1620, 2
    %v1622 = vadd.f32 %v1620, %v1621
    %v1623 = vrot.slane %v1622, 1
    %v1624 = vadd.f32 %v1622, %v1623
    %v1625 = vrot.slane %v1549, 4
    %v1626 = vadd.f32 %v1549, %v1625
    %v1627 = vrot.slane %v1626, 2
    %v1628 = vadd.f32 %v1626, %v1627
    %v1629 = vrot.slane %v1628, 1
    %v1630 = vadd.f32 %v1628, %v1629
    %v1631 = vrot.slane %v1550, 4
    %v1632 = vadd.f32 %v1550, %v1631
    %v1633 = vrot.slane %v1632, 2
    %v1634 = vadd.f32 %v1632, %v1633
    %v1635 = vrot.slane %v1634, 1
    %v1636 = vadd.f32 %v1634, %v1635
    %v1637 = vrot.slane %v1551, 4
    %v1638 = vadd.f32 %v1551, %v1637
    %v1639 = vrot.slane %v1638, 2
    %v1640 = vadd.f32 %v1638, %v1639
    %v1641 = vrot.slane %v1640, 1
    %v1642 = vadd.f32 %v1640, %v1641
    %v1643 = vrot.slane %v1552, 4
    %v1644 = vadd.f32 %v1552, %v1643
    %v1645 = vrot.slane %v1644, 2
    %v1646 = vadd.f32 %v1644, %v1645
    %v1647 = vrot.slane %v1646, 1
    %v1648 = vadd.f32 %v1646, %v1647
    %v1649 = vadd.f32 %v1335, 1e-09
    %v1650 = vadd.f32 %v1342, 1e-09
    %v1651 = vadd.f32 %v1349, 1e-09
    %v1652 = vadd.f32 %v1356, 1e-09
    %v1653 = vadd.f32 %v1363, 1e-09
    %v1654 = vadd.f32 %v1370, 1e-09
    %v1655 = vadd.f32 %v1377, 1e-09
    %v1656 = vadd.f32 %v1384, 1e-09
    %v1657 = vadd.f32 %v1391, 1e-09
    %v1658 = vadd.f32 %v1398, 1e-09
    %v1659 = vadd.f32 %v1405, 1e-09
    %v1660 = vadd.f32 %v1412, 1e-09
    %v1661 = vadd.f32 %v1419, 1e-09
    %v1662 = vadd.f32 %v1426, 1e-09
    %v1663 = vadd.f32 %v1433, 1e-09
    %v1664 = vadd.f32 %v1440, 1e-09
    %v1665 = vrcp.pop %v1649
    %v1666 = vrcp.pop %v1650
    %v1667 = vrcp.pop %v1651
    %v1668 = vrcp.pop %v1652
    %v1669 = vrcp.pop %v1653
    %v1670 = vrcp.pop %v1654
    %v1671 = vrcp.pop %v1655
    %v1672 = vrcp.pop %v1656
    %v1673 = vrcp.pop %v1657
    %v1674 = vrcp.pop %v1658
    %v1675 = vrcp.pop %v1659
    %v1676 = vrcp.pop %v1660
    %v1677 = vrcp.pop %v1661
    %v1678 = vrcp.pop %v1662
    %v1679 = vrcp.pop %v1663
    %v1680 = vrcp.pop %v1664
    %1682 = vset.pattern.permute.xlu0 2
    %1683 = vperm.xlu0 %1682, %v1665
    %v1684 = vpop.permute.xlu0 %1683
    %1687 = vset.pattern.permute.xlu0 2
    %1688 = vperm.xlu0 %1687, %v1666
    %v1689 = vpop.permute.xlu0 %1688
    %1692 = vset.pattern.permute.xlu0 2
    %1693 = vperm.xlu0 %1692, %v1667
    %v1694 = vpop.permute.xlu0 %1693
    %1697 = vset.pattern.permute.xlu0 2
    %1698 = vperm.xlu0 %1697, %v1668
    %v1699 = vpop.permute.xlu0 %1698
    %1702 = vset.pattern.permute.xlu0 2
    %1703 = vperm.xlu0 %1702, %v1669
    %v1704 = vpop.permute.xlu0 %1703
    %1707 = vset.pattern.permute.xlu0 2
    %1708 = vperm.xlu0 %1707, %v1670
    %v1709 = vpop.permute.xlu0 %1708
    %1712 = vset.pattern.permute.xlu0 2
    %1713 = vperm.xlu0 %1712, %v1671
    %v1714 = vpop.permute.xlu0 %1713
    %1717 = vset.pattern.permute.xlu0 2
    %1718 = vperm.xlu0 %1717, %v1672
    %v1719 = vpop.permute.xlu0 %1718
    %1722 = vset.pattern.permute.xlu0 2
    %1723 = vperm.xlu0 %1722, %v1673
    %v1724 = vpop.permute.xlu0 %1723
    %1727 = vset.pattern.permute.xlu0 2
    %1728 = vperm.xlu0 %1727, %v1674
    %v1729 = vpop.permute.xlu0 %1728
    %1732 = vset.pattern.permute.xlu0 2
    %1733 = vperm.xlu0 %1732, %v1675
    %v1734 = vpop.permute.xlu0 %1733
    %1737 = vset.pattern.permute.xlu0 2
    %1738 = vperm.xlu0 %1737, %v1676
    %v1739 = vpop.permute.xlu0 %1738
    %1742 = vset.pattern.permute.xlu0 2
    %1743 = vperm.xlu0 %1742, %v1677
    %v1744 = vpop.permute.xlu0 %1743
    %1747 = vset.pattern.permute.xlu0 2
    %1748 = vperm.xlu0 %1747, %v1678
    %v1749 = vpop.permute.xlu0 %1748
    %1752 = vset.pattern.permute.xlu0 2
    %1753 = vperm.xlu0 %1752, %v1679
    %v1754 = vpop.permute.xlu0 %1753
    %1757 = vset.pattern.permute.xlu0 2
    %1758 = vperm.xlu0 %1757, %v1680
    %v1759 = vpop.permute.xlu0 %1758
    %v1761 = vmul.f32 %v1558, %v1684
    %v1762 = vmul.f32 %v1564, %v1689
    %v1763 = vmul.f32 %v1570, %v1694
    %v1764 = vmul.f32 %v1576, %v1699
    %v1765 = vmul.f32 %v1582, %v1704
    %v1766 = vmul.f32 %v1588, %v1709
    %v1767 = vmul.f32 %v1594, %v1714
    %v1768 = vmul.f32 %v1600, %v1719
    %v1769 = vmul.f32 %v1606, %v1724
    %v1770 = vmul.f32 %v1612, %v1729
    %v1771 = vmul.f32 %v1618, %v1734
    %v1772 = vmul.f32 %v1624, %v1739
    %v1773 = vmul.f32 %v1630, %v1744
    %v1774 = vmul.f32 %v1636, %v1749
    %v1775 = vmul.f32 %v1642, %v1754
    %v1776 = vmul.f32 %v1648, %v1759
    %s1777 = scalar_lea.vmem %s9, 32
    %v1778 = vld [vmem:[%s1777] sm:$0xff]
    %v1779 = vld [vmem:[%s1777 + $0x8] sm:$0xff]
    %s1780 = scalar_lea.vmem %s10, 2
    %v1781 = vld [vmem:[%s1780] sm:$0x1]
    %v1783 = vlaneseq
    %v1784 = vshrl.u32 %v1783, 7
    %v1785 = vsub.s32 0, %v1784
    %v1786 = vrot.slane %v1781, %v1785
    %vm1804 = vcmask 1041409
    %v1805 = vsel %vm1804, %v1762, %v1761
    %vm1806 = vcmask 1042434
    %v1807 = vsel %vm1806, %v1763, %v1805
    %vm1808 = vcmask 1043459
    %v1809 = vsel %vm1808, %v1764, %v1807
    %vm1810 = vcmask 1044484
    %v1811 = vsel %vm1810, %v1765, %v1809
    %vm1812 = vcmask 1045509
    %v1813 = vsel %vm1812, %v1766, %v1811
    %vm1814 = vcmask 1046534
    %v1815 = vsel %vm1814, %v1767, %v1813
    %vm1816 = vcmask 1047559
    %v1817 = vsel %vm1816, %v1768, %v1815
    %v1818 = vsel %vm1804, %v1770, %v1769
    %v1819 = vsel %vm1806, %v1771, %v1818
    %v1820 = vsel %vm1808, %v1772, %v1819
    %v1821 = vsel %vm1810, %v1773, %v1820
    %v1822 = vsel %vm1812, %v1774, %v1821
    %v1823 = vsel %vm1814, %v1775, %v1822
    %v1824 = vsel %vm1816, %v1776, %v1823
    %v1825 = vsel %vm662, %v1817, 0
    %v1827 = vsel %vm662, %v1824, 0
    %1829 = vmatprep.subr.mxu0 0.0
    %1830 = vmatpush1.msra.mxu0 0.0
    %1831 = vmatprep.subr.mxu0 0.0
    %1832 = vmatpush1.msra.mxu0 0.0
    %1833 = vmatprep.subr.mxu0 0.0
    %1834 = vmatpush1.msra.mxu0 0.0
    %1835 = vmatprep.subr.mxu0 0.0
    %1836 = vmatpush1.msra.mxu0 0.0
    %1837 = vmatprep.subr.mxu0 0.0
    %1838 = vmatpush1.msra.mxu0 0.0
    %1839 = vmatprep.subr.mxu0 0.0
    %1840 = vmatpush1.msra.mxu0 0.0
    %1841 = vmatprep.subr.mxu0 0.0
    %1842 = vmatpush1.msra.mxu0 0.0
    %1843 = vmatprep.subr.mxu0 0.0
    %1844 = vmatpush1.msra.mxu0 0.0
    %1845 = vmatprep.subr.mxu0 0.0
    %1846 = vmatpush1.msra.mxu0 0.0
    %1847 = vmatprep.subr.mxu0 0.0
    %1848 = vmatpush1.msra.mxu0 0.0
    %1849 = vmatprep.subr.mxu0 0.0
    %1850 = vmatpush1.msra.mxu0 0.0
    %1851 = vmatprep.subr.mxu0 0.0
    %1852 = vmatpush1.msra.mxu0 0.0
    %1853 = vmatprep.subr.mxu0 0.0
    %1854 = vmatpush1.msra.mxu0 0.0
    %1855 = vmatprep.subr.mxu0 0.0
    %1856 = vmatpush1.msra.mxu0 0.0
    %1857 = vmatprep.subr.mxu0 0.0
    %1858 = vmatpush1.msra.mxu0 %v1779
    %1859 = vmatprep.subr.mxu0 0.0
    %1860 = vmatpush1.msra.mxu0 %v1778
    %1861 = vmatprep.subr.mxu0 0.0
    %1862 = vmatpush2.msra.mxu0 0.0
    %1863 = vmatprep.subr.mxu0 0.0
    %1864 = vmatpush2.msra.mxu0 0.0
    %1865 = vmatprep.subr.mxu0 0.0
    %1866 = vmatpush2.msra.mxu0 0.0
    %1867 = vmatprep.subr.mxu0 0.0
    %1868 = vmatpush2.msra.mxu0 0.0
    %1869 = vmatprep.subr.mxu0 0.0
    %1870 = vmatpush2.msra.mxu0 0.0
    %1871 = vmatprep.subr.mxu0 0.0
    %1872 = vmatpush2.msra.mxu0 0.0
    %1873 = vmatprep.subr.mxu0 0.0
    %1874 = vmatpush2.msra.mxu0 0.0
    %1875 = vmatprep.subr.mxu0 0.0
    %1876 = vmatpush2.msra.mxu0 0.0
    %1877 = vmatprep.subr.mxu0 0.0
    %1878 = vmatpush2.msra.mxu0 0.0
    %1879 = vmatprep.subr.mxu0 0.0
    %1880 = vmatpush2.msra.mxu0 0.0
    %1881 = vmatprep.subr.mxu0 0.0
    %1882 = vmatpush2.msra.mxu0 0.0
    %1883 = vmatprep.subr.mxu0 0.0
    %1884 = vmatpush2.msra.mxu0 0.0
    %1885 = vmatprep.subr.mxu0 0.0
    %1886 = vmatpush2.msra.mxu0 0.0
    %1887 = vmatprep.subr.mxu0 0.0
    %1888 = vmatpush2.msra.mxu0 0.0
    %1889 = vmatprep.subr.mxu0 0.0
    %1890 = vmatpush2.msra.mxu0 0.0
    %1891 = vmatprep.subr.mxu0 0.0
    %1892 = vmatpush2.msra.mxu0 0.0
    %1893 = vmatprep.mubr.f32.mxu0 0.0
    %1894 = vmatmul.mubr.f32.gmra.mxu0 %v1825
    %v1895 = vpop.f32.mrf.mxu0
    %v1896 = vadd.f32 %v1786, %v1895
    %v1897 = vpop.f32.mrf.mxu0
    %1898 = vmatprep.mubr.f32.mxu0 0.0
    %1899 = vmatmul.mubr.f32.gmra.mxu0 %v1827
    %v1900 = vpop.f32.mrf.mxu0
    %v1901 = vadd.f32 %v1786, %v1900
    %v1902 = vpop.f32.mrf.mxu0
    %1903 = vdwg.mxu0
    %s1904 = scalar_lea.vmem %s8, 2
    %v1905 = vld [vmem:[%s1904] sm:$0x1]
    %v1907 = vlaneseq
    %v1908 = vshrl.u32 %v1907, 7
    %v1909 = vsub.s32 0, %v1908
    %v1910 = vrot.slane %v1905, %v1909
    %1911 = vrot.lane.b32.xlu0 %v1910, 96
    %v1912 = vpop.permute.xlu0 %1911
    %v1914 = vadd.f32 %v736, %v1912
    %v1915 = vadd.f32 %v738, %v1912
    %v1916 = vadd.f32 %v742, %v1912
    %v1917 = vadd.f32 %v744, %v1912
    %1920 = vrot.lane.b32.xlu0 %v1914, 32
    %v1921 = vpop.permute.xlu0 %1920
    %1922 = vrot.lane.b32.xlu0 %v1916, 32
    %v1923 = vpop.permute.xlu0 %1922
    %v1926 = vadd.f32 %v1896, %v1921
    %v1927 = vadd.f32 %v1901, %v1923
    %v1928 = vxor.u32 %v1926, 2147483648
    %v1929 = vxor.u32 %v1927, 2147483648
    %v1930 = vmul.f32 %v1928, 1.442695
    %v1931 = vpow.pop %v1930
    %v1932 = vmul.f32 %v1929, 1.442695
    %v1933 = vpow.pop %v1932
    %v1934 = vadd.f32 %v1931, 1.0
    %v1935 = vadd.f32 %v1933, 1.0
    %v1936 = vrcp.pop %v1934
    %v1937 = vmul.f32 1.0, %v1936
    %v1938 = vrcp.pop %v1935
    %v1939 = vmul.f32 1.0, %v1938
    %v1940 = vmul.f32 %v1937, %v1915
    %v1941 = vmul.f32 %v1939, %v1917
    %1944 = vrot.lane.b32.xlu0 %v1940, 32
    %v1945 = vpop.permute.xlu0 %1944
    %1946 = vrot.lane.b32.xlu0 %v1941, 32
    %v1947 = vpop.permute.xlu0 %1946
    %v1950 = vadd.f32 %v1896, %v1945
    %v1951 = vadd.f32 %v1901, %v1947
    %v1952 = vtanh.pop %v1950
    %v1953 = vtanh.pop %v1951
    %v1954 = vsub.f32 1.0, %v1937
    %v1955 = vsub.f32 1.0, %v1939
    %1958 = vrot.lane.b32.xlu0 %v1952, 112
    %v1959 = vpop.permute.xlu0 %1958
    %1960 = vrot.lane.b32.xlu0 %v1953, 112
    %v1961 = vpop.permute.xlu0 %1960
    %v1964 = vmul.f32 %v1954, %v1959
    %v1965 = vmul.f32 %v1955, %v1961
    %1966 = vrot.lane.b32.xlu0 %v60, 16
    %v1967 = vpop.permute.xlu0 %1966
    %1968 = vrot.lane.b32.xlu0 %v61, 16
    %v1969 = vpop.permute.xlu0 %1968
    %v1972 = vmul.f32 %v1937, %v1967
    %v1973 = vmul.f32 %v1939, %v1969
    %v1974 = vadd.f32 %v1964, %v1972
    %v1975 = vadd.f32 %v1965, %v1973
    %1977 = vset.pattern.permute.xlu0 0
    %1978 = vperm.xlu0 %1977, %v62
    %v1979 = vpop.permute.xlu0 %1978
    %1982 = vset.pattern.permute.xlu0 0
    %1983 = vperm.xlu0 %1982, %v63
    %v1984 = vpop.permute.xlu0 %1983
    %v1986 = vmul.f32 %v1974, %v1979
    %v1987 = vmul.f32 %v1975, %v1984
    %1990 = vrot.lane.b32.xlu0 %v1986, 112
    %v1991 = vpop.permute.xlu0 %1990
    %1992 = vrot.lane.b32.xlu0 %v1987, 112
    %v1993 = vpop.permute.xlu0 %1992
    %v1996 = vsel %vm662, %v1991, %v1967
    %v1997 = vsel %vm662, %v1993, %v1969
    %v1998 = vld [vmem:[%s14] sm:$0xff]
    %v1999 = vld [vmem:[%s14 + $0x8] sm:$0xff]
    %v2000 = vld [vmem:[%s14 + $0x10] sm:$0xff]
    %v2001 = vld [vmem:[%s14 + $0x18] sm:$0xff]
    %v2002 = vld [vmem:[%s14 + $0x20] sm:$0xff]
    %v2003 = vld [vmem:[%s14 + $0x28] sm:$0xff]
    %v2004 = vld [vmem:[%s14 + $0x30] sm:$0xff]
    %v2005 = vld [vmem:[%s14 + $0x38] sm:$0xff]
    %v2006 = vld [vmem:[%s14 + $0x40] sm:$0xff]
    %v2007 = vld [vmem:[%s14 + $0x48] sm:$0xff]
    %v2008 = vld [vmem:[%s14 + $0x50] sm:$0xff]
    %v2009 = vld [vmem:[%s14 + $0x58] sm:$0xff]
    %v2010 = vld [vmem:[%s15] sm:$0x1]
    %v2012 = vlaneseq
    %v2013 = vshrl.u32 %v2012, 7
    %v2014 = vsub.s32 0, %v2013
    %v2015 = vrot.slane %v2010, %v2014
    %vm2017 = vcmask 785408
    %v2019 = vsel %vm2017, 0.0, 0
    %2021 = vmatprep.subr.mxu0 0.0
    %2022 = vmatpush1.msra.mxu0 0.0
    %2023 = vmatprep.subr.mxu0 0.0
    %2024 = vmatpush1.msra.mxu0 0.0
    %2025 = vmatprep.subr.mxu0 0.0
    %2026 = vmatpush1.msra.mxu0 0.0
    %2027 = vmatprep.subr.mxu0 0.0
    %2028 = vmatpush1.msra.mxu0 0.0
    %2029 = vmatprep.subr.mxu0 0.0
    %2030 = vmatpush1.msra.mxu0 %v2009
    %2031 = vmatprep.subr.mxu0 0.0
    %2032 = vmatpush1.msra.mxu0 %v2008
    %2033 = vmatprep.subr.mxu0 0.0
    %2034 = vmatpush1.msra.mxu0 %v2007
    %2035 = vmatprep.subr.mxu0 0.0
    %2036 = vmatpush1.msra.mxu0 %v2006
    %2037 = vmatprep.subr.mxu0 0.0
    %2038 = vmatpush1.msra.mxu0 %v2005
    %2039 = vmatprep.subr.mxu0 0.0
    %2040 = vmatpush1.msra.mxu0 %v2004
    %2041 = vmatprep.subr.mxu0 0.0
    %2042 = vmatpush1.msra.mxu0 %v2003
    %2043 = vmatprep.subr.mxu0 0.0
    %2044 = vmatpush1.msra.mxu0 %v2002
    %2045 = vmatprep.subr.mxu0 0.0
    %2046 = vmatpush1.msra.mxu0 %v2001
    %2047 = vmatprep.subr.mxu0 0.0
    %2048 = vmatpush1.msra.mxu0 %v2000
    %2049 = vmatprep.subr.mxu0 0.0
    %2050 = vmatpush1.msra.mxu0 %v1999
    %2051 = vmatprep.subr.mxu0 0.0
    %2052 = vmatpush1.msra.mxu0 %v1998
    %2053 = vmatprep.subr.mxu0 0.0
    %2054 = vmatpush2.msra.mxu0 0.0
    %2055 = vmatprep.subr.mxu0 0.0
    %2056 = vmatpush2.msra.mxu0 0.0
    %2057 = vmatprep.subr.mxu0 0.0
    %2058 = vmatpush2.msra.mxu0 0.0
    %2059 = vmatprep.subr.mxu0 0.0
    %2060 = vmatpush2.msra.mxu0 0.0
    %2061 = vmatprep.subr.mxu0 0.0
    %2062 = vmatpush2.msra.mxu0 0.0
    %2063 = vmatprep.subr.mxu0 0.0
    %2064 = vmatpush2.msra.mxu0 0.0
    %2065 = vmatprep.subr.mxu0 0.0
    %2066 = vmatpush2.msra.mxu0 0.0
    %2067 = vmatprep.subr.mxu0 0.0
    %2068 = vmatpush2.msra.mxu0 0.0
    %2069 = vmatprep.subr.mxu0 0.0
    %2070 = vmatpush2.msra.mxu0 0.0
    %2071 = vmatprep.subr.mxu0 0.0
    %2072 = vmatpush2.msra.mxu0 0.0
    %2073 = vmatprep.subr.mxu0 0.0
    %2074 = vmatpush2.msra.mxu0 0.0
    %2075 = vmatprep.subr.mxu0 0.0
    %2076 = vmatpush2.msra.mxu0 0.0
    %2077 = vmatprep.subr.mxu0 0.0
    %2078 = vmatpush2.msra.mxu0 0.0
    %2079 = vmatprep.subr.mxu0 0.0
    %2080 = vmatpush2.msra.mxu0 0.0
    %2081 = vmatprep.subr.mxu0 0.0
    %2082 = vmatpush2.msra.mxu0 0.0
    %2083 = vmatprep.subr.mxu0 0.0
    %2084 = vmatpush2.msra.mxu0 0.0
    %2085 = vmatprep.mubr.f32.mxu0 0.0
    %2086 = vmatmul.mubr.f32.gmra.mxu0 %v2019
    %v2087 = vpop.f32.mrf.mxu0
    %v2088 = vadd.f32 %v2015, %v2087
    %v2089 = vpop.f32.mrf.mxu0
    %2090 = vdwg.mxu0
    %v2091 = vxor.u32 %v2088, 2147483648
    %v2092 = vmul.f32 %v2091, 1.442695
    %v2093 = vpow.pop %v2092
    %v2094 = vadd.f32 %v2093, 1.0
    %v2095 = vrcp.pop %v2094
    %v2096 = vmul.f32 1.0, %v2095
    %v2097 = vtanh.pop %v2088
    %v2098 = vmul.f32 %v2096, 0.0
    %2100 = vrot.lane.b32.xlu0 %v2097, 64
    %v2101 = vpop.permute.xlu0 %2100
    %v2103 = vmul.f32 %v2096, %v2101
    %2105 = vrot.lane.b32.xlu0 %v2103, 32
    %v2106 = vpop.permute.xlu0 %2105
    %v2108 = vadd.f32 %v2098, %v2106
    %v2109 = vtanh.pop %v2108
    %2111 = vrot.lane.b32.xlu0 %v2109, 64
    %v2112 = vpop.permute.xlu0 %2111
    %v2114 = vmul.f32 %v2096, %v2112
    %v2117 = vunpack.c.l.s4 1966171168
    %v2118 = vunpack.c.0.s8 %v2117
    %v2119 = vlaneseq
    %v2120 = vshrl.u32 %v2119, 7
    %v2121 = vsub.s32 %v2118, %v2120
    %v2122 = vrot.slane %v2114, %v2121
    %v2123 = vcombine.high %v2122, %v2122
    %v2125 = vunpack.c.l.s4 1966171168
    %v2126 = vunpack.c.0.s8 %v2125
    %v2127 = vlaneseq
    %v2128 = vshrl.u32 %v2127, 7
    %v2129 = vsub.s32 %v2126, %v2128
    %v2130 = vrot.slane %v2122, %v2129
    %v2132 = vunpack.c.l.s4 1966171168
    %v2133 = vunpack.c.0.s8 %v2132
    %v2134 = vlaneseq
    %v2135 = vshrl.u32 %v2134, 7
    %v2136 = vsub.s32 %v2133, %v2135
    %v2137 = vrot.slane %v2123, %v2136
    %v2138 = vlaneseq
    %v2139 = vshrl.u32 %v2138, 7
    %v2140 = vsub.s32 0, %v2139
    %v2141 = vrot.slane %v2130, %v2140
    %v2142 = vlaneseq
    %v2143 = vshrl.u32 %v2142, 7
    %v2144 = vsub.s32 0, %v2143
    %v2145 = vrot.slane %v2137, %v2144
    %2146 = vrot.lane.b32.xlu0 %v2141, 32
    %v2147 = vpop.permute.xlu0 %2146
    %2148 = vrot.lane.b32.xlu0 %v2145, 32
    %v2149 = vpop.permute.xlu0 %2148
    %v2152 = vmul.f32 %v1996, %v2147
    %v2153 = vmul.f32 %v1997, %v2149
    %vm2154 = vcmask 261120
    %v2155 = vsel %vm2154, %v2152, 0.0
    %2156 = vadd.xlane.f32.xlu0 %v2155
    %v2157 = vpop.xlane.xlu0 %2156
    %v2158 = vsel %vm2154, %v2153, 0.0
    %2159 = vadd.xlane.f32.xlu0 %v2158
    %v2160 = vpop.xlane.xlu0 %2159
    %v2161 = vsub.f32 %v62, 1.0
    %v2162 = vsub.f32 %v63, 1.0
    %v2163 = vmul.f32 %v2161, 1e+09
    %v2164 = vmul.f32 %v2162, 1e+09
    %v2165 = vadd.f32 %v2157, %v2163
    %v2166 = vadd.f32 %v2160, %v2164
    %vm2167 = vcmask 7168
    %v2168 = vsel %vm2167, %v2165, -inf
    %v2169 = vrot.slane %v2168, 4
    %v2170 = vmax.f32 %v2168, %v2169
    %v2171 = vrot.slane %v2170, 2
    %v2172 = vmax.f32 %v2170, %v2171
    %v2173 = vrot.slane %v2172, 1
    %v2174 = vmax.f32 %v2172, %v2173
    %v2175 = vsel %vm2167, %v2166, -inf
    %v2176 = vrot.slane %v2175, 4
    %v2177 = vmax.f32 %v2175, %v2176
    %v2178 = vrot.slane %v2177, 2
    %v2179 = vmax.f32 %v2177, %v2178
    %v2180 = vrot.slane %v2179, 1
    %v2181 = vmax.f32 %v2179, %v2180
    %v2182 = vsub.f32 %v2165, %v2174
    %v2183 = vsub.f32 %v2166, %v2181
    %v2184 = vmul.f32 %v2182, 1.442695
    %v2185 = vpow.pop %v2184
    %v2186 = vmul.f32 %v2183, 1.442695
    %v2187 = vpow.pop %v2186
    %v2188 = vmul.f32 %v2185, %v62
    %v2189 = vmul.f32 %v2187, %v63
    %v2190 = vsel %vm2167, %v2188, 0.0
    %v2191 = vrot.slane %v2190, 4
    %v2192 = vadd.f32 %v2190, %v2191
    %v2193 = vrot.slane %v2192, 2
    %v2194 = vadd.f32 %v2192, %v2193
    %v2195 = vrot.slane %v2194, 1
    %v2196 = vadd.f32 %v2194, %v2195
    %v2197 = vsel %vm2167, %v2189, 0.0
    %v2198 = vrot.slane %v2197, 4
    %v2199 = vadd.f32 %v2197, %v2198
    %v2200 = vrot.slane %v2199, 2
    %v2201 = vadd.f32 %v2199, %v2200
    %v2202 = vrot.slane %v2201, 1
    %v2203 = vadd.f32 %v2201, %v2202
    %v2204 = vadd.f32 %v2196, 1e-09
    %v2205 = vadd.f32 %v2203, 1e-09
    %v2206 = vrcp.pop %v2204
    %v2207 = vrcp.pop %v2205
    %v2208 = vmul.f32 %v2188, %v2206
    %v2209 = vmul.f32 %v2189, %v2207
    %2211 = vset.pattern.permute.xlu0 0
    %2212 = vperm.xlu0 %2211, %v2208
    %v2213 = vpop.permute.xlu0 %2212
    %2216 = vset.pattern.permute.xlu0 0
    %2217 = vperm.xlu0 %2216, %v2209
    %v2218 = vpop.permute.xlu0 %2217
    %v2220 = vmul.f32 %v2213, %v1996
    %v2221 = vmul.f32 %v2218, %v1997
    %v2222 = vsel %vm2154, %v2220, 0.0
    %v2223 = vrot.slane %v2222, 4
    %v2224 = vadd.f32 %v2222, %v2223
    %v2225 = vrot.slane %v2224, 2
    %v2226 = vadd.f32 %v2224, %v2225
    %v2227 = vrot.slane %v2226, 1
    %v2228 = vadd.f32 %v2226, %v2227
    %v2229 = vsel %vm2154, %v2221, 0.0
    %v2230 = vrot.slane %v2229, 4
    %v2231 = vadd.f32 %v2229, %v2230
    %v2232 = vrot.slane %v2231, 2
    %v2233 = vadd.f32 %v2231, %v2232
    %v2234 = vrot.slane %v2233, 1
    %v2235 = vadd.f32 %v2233, %v2234
    %2236 = vrot.lane.b32.xlu0 %v2114, 32
    %v2237 = vpop.permute.xlu0 %2236
    %v2241 = vsel %vm1804, %v2235, %v2228
    %2242 = vrot.lane.b32.xlu0 %v2241, 32
    %v2243 = vpop.permute.xlu0 %2242
    %v2245 = vsel %vm2154, %v2237, %v2243
    %2247 = vrot.lane.b32.xlu0 %v2245, 32
    %v2248 = vpop.permute.xlu0 %2247
    %v2250 = vsel %vm2154, %v2237, %v2248
    %v2252 = vsel %vm2017, %v2250, 0
    %2254 = vmatprep.subr.mxu0 0.0
    %2255 = vmatpush1.msra.mxu0 0.0
    %2256 = vmatprep.subr.mxu0 0.0
    %2257 = vmatpush1.msra.mxu0 0.0
    %2258 = vmatprep.subr.mxu0 0.0
    %2259 = vmatpush1.msra.mxu0 0.0
    %2260 = vmatprep.subr.mxu0 0.0
    %2261 = vmatpush1.msra.mxu0 0.0
    %2262 = vmatprep.subr.mxu0 0.0
    %2263 = vmatpush1.msra.mxu0 %v2009
    %2264 = vmatprep.subr.mxu0 0.0
    %2265 = vmatpush1.msra.mxu0 %v2008
    %2266 = vmatprep.subr.mxu0 0.0
    %2267 = vmatpush1.msra.mxu0 %v2007
    %2268 = vmatprep.subr.mxu0 0.0
    %2269 = vmatpush1.msra.mxu0 %v2006
    %2270 = vmatprep.subr.mxu0 0.0
    %2271 = vmatpush1.msra.mxu0 %v2005
    %2272 = vmatprep.subr.mxu0 0.0
    %2273 = vmatpush1.msra.mxu0 %v2004
    %2274 = vmatprep.subr.mxu0 0.0
    %2275 = vmatpush1.msra.mxu0 %v2003
    %2276 = vmatprep.subr.mxu0 0.0
    %2277 = vmatpush1.msra.mxu0 %v2002
    %2278 = vmatprep.subr.mxu0 0.0
    %2279 = vmatpush1.msra.mxu0 %v2001
    %2280 = vmatprep.subr.mxu0 0.0
    %2281 = vmatpush1.msra.mxu0 %v2000
    %2282 = vmatprep.subr.mxu0 0.0
    %2283 = vmatpush1.msra.mxu0 %v1999
    %2284 = vmatprep.subr.mxu0 0.0
    %2285 = vmatpush1.msra.mxu0 %v1998
    %2286 = vmatprep.subr.mxu0 0.0
    %2287 = vmatpush2.msra.mxu0 0.0
    %2288 = vmatprep.subr.mxu0 0.0
    %2289 = vmatpush2.msra.mxu0 0.0
    %2290 = vmatprep.subr.mxu0 0.0
    %2291 = vmatpush2.msra.mxu0 0.0
    %2292 = vmatprep.subr.mxu0 0.0
    %2293 = vmatpush2.msra.mxu0 0.0
    %2294 = vmatprep.subr.mxu0 0.0
    %2295 = vmatpush2.msra.mxu0 0.0
    %2296 = vmatprep.subr.mxu0 0.0
    %2297 = vmatpush2.msra.mxu0 0.0
    %2298 = vmatprep.subr.mxu0 0.0
    %2299 = vmatpush2.msra.mxu0 0.0
    %2300 = vmatprep.subr.mxu0 0.0
    %2301 = vmatpush2.msra.mxu0 0.0
    %2302 = vmatprep.subr.mxu0 0.0
    %2303 = vmatpush2.msra.mxu0 0.0
    %2304 = vmatprep.subr.mxu0 0.0
    %2305 = vmatpush2.msra.mxu0 0.0
    %2306 = vmatprep.subr.mxu0 0.0
    %2307 = vmatpush2.msra.mxu0 0.0
    %2308 = vmatprep.subr.mxu0 0.0
    %2309 = vmatpush2.msra.mxu0 0.0
    %2310 = vmatprep.subr.mxu0 0.0
    %2311 = vmatpush2.msra.mxu0 0.0
    %2312 = vmatprep.subr.mxu0 0.0
    %2313 = vmatpush2.msra.mxu0 0.0
    %2314 = vmatprep.subr.mxu0 0.0
    %2315 = vmatpush2.msra.mxu0 0.0
    %2316 = vmatprep.subr.mxu0 0.0
    %2317 = vmatpush2.msra.mxu0 0.0
    %2318 = vmatprep.mubr.f32.mxu0 0.0
    %2319 = vmatmul.mubr.f32.gmra.mxu0 %v2252
    %v2320 = vpop.f32.mrf.mxu0
    %v2321 = vadd.f32 %v2015, %v2320
    %v2322 = vpop.f32.mrf.mxu0
    %2323 = vdwg.mxu0
    %v2324 = vxor.u32 %v2321, 2147483648
    %v2325 = vmul.f32 %v2324, 1.442695
    %v2326 = vpow.pop %v2325
    %v2327 = vadd.f32 %v2326, 1.0
    %v2328 = vrcp.pop %v2327
    %v2329 = vmul.f32 1.0, %v2328
    %v2330 = vtanh.pop %v2321
    %v2331 = vmul.f32 %v2329, %v2108
    %2333 = vrot.lane.b32.xlu0 %v2330, 64
    %v2334 = vpop.permute.xlu0 %2333
    %v2336 = vmul.f32 %v2329, %v2334
    %2338 = vrot.lane.b32.xlu0 %v2336, 32
    %v2339 = vpop.permute.xlu0 %2338
    %v2341 = vadd.f32 %v2331, %v2339
    %v2342 = vtanh.pop %v2341
    %2344 = vrot.lane.b32.xlu0 %v2342, 64
    %v2345 = vpop.permute.xlu0 %2344
    %v2347 = vmul.f32 %v2329, %v2345
    %v2350 = vunpack.c.l.s4 1966171168
    %v2351 = vunpack.c.0.s8 %v2350
    %v2352 = vlaneseq
    %v2353 = vshrl.u32 %v2352, 7
    %v2354 = vsub.s32 %v2351, %v2353
    %v2355 = vrot.slane %v2347, %v2354
    %v2356 = vcombine.high %v2355, %v2355
    %v2358 = vunpack.c.l.s4 1966171168
    %v2359 = vunpack.c.0.s8 %v2358
    %v2360 = vlaneseq
    %v2361 = vshrl.u32 %v2360, 7
    %v2362 = vsub.s32 %v2359, %v2361
    %v2363 = vrot.slane %v2355, %v2362
    %v2365 = vunpack.c.l.s4 1966171168
    %v2366 = vunpack.c.0.s8 %v2365
    %v2367 = vlaneseq
    %v2368 = vshrl.u32 %v2367, 7
    %v2369 = vsub.s32 %v2366, %v2368
    %v2370 = vrot.slane %v2356, %v2369
    %v2371 = vlaneseq
    %v2372 = vshrl.u32 %v2371, 7
    %v2373 = vsub.s32 0, %v2372
    %v2374 = vrot.slane %v2363, %v2373
    %v2375 = vlaneseq
    %v2376 = vshrl.u32 %v2375, 7
    %v2377 = vsub.s32 0, %v2376
    %v2378 = vrot.slane %v2370, %v2377
    %2379 = vrot.lane.b32.xlu0 %v2374, 32
    %v2380 = vpop.permute.xlu0 %2379
    %2381 = vrot.lane.b32.xlu0 %v2378, 32
    %v2382 = vpop.permute.xlu0 %2381
    %v2385 = vmul.f32 %v1996, %v2380
    %v2386 = vmul.f32 %v1997, %v2382
    %v2387 = vsel %vm2154, %v2385, 0.0
    %2388 = vadd.xlane.f32.xlu0 %v2387
    %v2389 = vpop.xlane.xlu0 %2388
    %v2390 = vsel %vm2154, %v2386, 0.0
    %2391 = vadd.xlane.f32.xlu0 %v2390
    %v2392 = vpop.xlane.xlu0 %2391
    %v2393 = vadd.f32 %v2389, %v2163
    %v2394 = vadd.f32 %v2392, %v2164
    %v2395 = vsel %vm2167, %v2393, -inf
    %v2396 = vrot.slane %v2395, 4
    %v2397 = vmax.f32 %v2395, %v2396
    %v2398 = vrot.slane %v2397, 2
    %v2399 = vmax.f32 %v2397, %v2398
    %v2400 = vrot.slane %v2399, 1
    %v2401 = vmax.f32 %v2399, %v2400
    %v2402 = vsel %vm2167, %v2394, -inf
    %v2403 = vrot.slane %v2402, 4
    %v2404 = vmax.f32 %v2402, %v2403
    %v2405 = vrot.slane %v2404, 2
    %v2406 = vmax.f32 %v2404, %v2405
    %v2407 = vrot.slane %v2406, 1
    %v2408 = vmax.f32 %v2406, %v2407
    %v2409 = vsub.f32 %v2393, %v2401
    %v2410 = vsub.f32 %v2394, %v2408
    %v2411 = vmul.f32 %v2409, 1.442695
    %v2412 = vpow.pop %v2411
    %v2413 = vmul.f32 %v2410, 1.442695
    %v2414 = vpow.pop %v2413
    %v2415 = vmul.f32 %v2412, %v62
    %v2416 = vmul.f32 %v2414, %v63
    %v2417 = vsel %vm2167, %v2415, 0.0
    %v2418 = vrot.slane %v2417, 4
    %v2419 = vadd.f32 %v2417, %v2418
    %v2420 = vrot.slane %v2419, 2
    %v2421 = vadd.f32 %v2419, %v2420
    %v2422 = vrot.slane %v2421, 1
    %v2423 = vadd.f32 %v2421, %v2422
    %v2424 = vsel %vm2167, %v2416, 0.0
    %v2425 = vrot.slane %v2424, 4
    %v2426 = vadd.f32 %v2424, %v2425
    %v2427 = vrot.slane %v2426, 2
    %v2428 = vadd.f32 %v2426, %v2427
    %v2429 = vrot.slane %v2428, 1
    %v2430 = vadd.f32 %v2428, %v2429
    %v2431 = vadd.f32 %v2423, 1e-09
    %v2432 = vadd.f32 %v2430, 1e-09
    %v2433 = vrcp.pop %v2431
    %v2434 = vrcp.pop %v2432
    %v2435 = vmul.f32 %v2415, %v2433
    %v2436 = vmul.f32 %v2416, %v2434
    %2438 = vset.pattern.permute.xlu0 0
    %2439 = vperm.xlu0 %2438, %v2435
    %v2440 = vpop.permute.xlu0 %2439
    %2443 = vset.pattern.permute.xlu0 0
    %2444 = vperm.xlu0 %2443, %v2436
    %v2445 = vpop.permute.xlu0 %2444
    %v2447 = vmul.f32 %v2440, %v1996
    %v2448 = vmul.f32 %v2445, %v1997
    %v2449 = vsel %vm2154, %v2447, 0.0
    %v2450 = vrot.slane %v2449, 4
    %v2451 = vadd.f32 %v2449, %v2450
    %v2452 = vrot.slane %v2451, 2
    %v2453 = vadd.f32 %v2451, %v2452
    %v2454 = vrot.slane %v2453, 1
    %v2455 = vadd.f32 %v2453, %v2454
    %v2456 = vsel %vm2154, %v2448, 0.0
    %v2457 = vrot.slane %v2456, 4
    %v2458 = vadd.f32 %v2456, %v2457
    %v2459 = vrot.slane %v2458, 2
    %v2460 = vadd.f32 %v2458, %v2459
    %v2461 = vrot.slane %v2460, 1
    %v2462 = vadd.f32 %v2460, %v2461
    %2463 = vrot.lane.b32.xlu0 %v2347, 32
    %v2464 = vpop.permute.xlu0 %2463
    %v2468 = vsel %vm1804, %v2462, %v2455
    %2469 = vrot.lane.b32.xlu0 %v2468, 32
    %v2470 = vpop.permute.xlu0 %2469
    %v2472 = vsel %vm2154, %v2464, %v2470
    %2474 = vrot.lane.b32.xlu0 %v2472, 32
    %v2475 = vpop.permute.xlu0 %2474
    %v2477 = vsel %vm2154, %v2464, %v2475
    %v2479 = vsel %vm2017, %v2477, 0
    %2481 = vmatprep.subr.mxu0 0.0
    %2482 = vmatpush1.msra.mxu0 0.0
    %2483 = vmatprep.subr.mxu0 0.0
    %2484 = vmatpush1.msra.mxu0 0.0
    %2485 = vmatprep.subr.mxu0 0.0
    %2486 = vmatpush1.msra.mxu0 0.0
    %2487 = vmatprep.subr.mxu0 0.0
    %2488 = vmatpush1.msra.mxu0 0.0
    %2489 = vmatprep.subr.mxu0 0.0
    %2490 = vmatpush1.msra.mxu0 %v2009
    %2491 = vmatprep.subr.mxu0 0.0
    %2492 = vmatpush1.msra.mxu0 %v2008
    %2493 = vmatprep.subr.mxu0 0.0
    %2494 = vmatpush1.msra.mxu0 %v2007
    %2495 = vmatprep.subr.mxu0 0.0
    %2496 = vmatpush1.msra.mxu0 %v2006
    %2497 = vmatprep.subr.mxu0 0.0
    %2498 = vmatpush1.msra.mxu0 %v2005
    %2499 = vmatprep.subr.mxu0 0.0
    %2500 = vmatpush1.msra.mxu0 %v2004
    %2501 = vmatprep.subr.mxu0 0.0
    %2502 = vmatpush1.msra.mxu0 %v2003
    %2503 = vmatprep.subr.mxu0 0.0
    %2504 = vmatpush1.msra.mxu0 %v2002
    %2505 = vmatprep.subr.mxu0 0.0
    %2506 = vmatpush1.msra.mxu0 %v2001
    %2507 = vmatprep.subr.mxu0 0.0
    %2508 = vmatpush1.msra.mxu0 %v2000
    %2509 = vmatprep.subr.mxu0 0.0
    %2510 = vmatpush1.msra.mxu0 %v1999
    %2511 = vmatprep.subr.mxu0 0.0
    %2512 = vmatpush1.msra.mxu0 %v1998
    %2513 = vmatprep.subr.mxu0 0.0
    %2514 = vmatpush2.msra.mxu0 0.0
    %2515 = vmatprep.subr.mxu0 0.0
    %2516 = vmatpush2.msra.mxu0 0.0
    %2517 = vmatprep.subr.mxu0 0.0
    %2518 = vmatpush2.msra.mxu0 0.0
    %2519 = vmatprep.subr.mxu0 0.0
    %2520 = vmatpush2.msra.mxu0 0.0
    %2521 = vmatprep.subr.mxu0 0.0
    %2522 = vmatpush2.msra.mxu0 0.0
    %2523 = vmatprep.subr.mxu0 0.0
    %2524 = vmatpush2.msra.mxu0 0.0
    %2525 = vmatprep.subr.mxu0 0.0
    %2526 = vmatpush2.msra.mxu0 0.0
    %2527 = vmatprep.subr.mxu0 0.0
    %2528 = vmatpush2.msra.mxu0 0.0
    %2529 = vmatprep.subr.mxu0 0.0
    %2530 = vmatpush2.msra.mxu0 0.0
    %2531 = vmatprep.subr.mxu0 0.0
    %2532 = vmatpush2.msra.mxu0 0.0
    %2533 = vmatprep.subr.mxu0 0.0
    %2534 = vmatpush2.msra.mxu0 0.0
    %2535 = vmatprep.subr.mxu0 0.0
    %2536 = vmatpush2.msra.mxu0 0.0
    %2537 = vmatprep.subr.mxu0 0.0
    %2538 = vmatpush2.msra.mxu0 0.0
    %2539 = vmatprep.subr.mxu0 0.0
    %2540 = vmatpush2.msra.mxu0 0.0
    %2541 = vmatprep.subr.mxu0 0.0
    %2542 = vmatpush2.msra.mxu0 0.0
    %2543 = vmatprep.subr.mxu0 0.0
    %2544 = vmatpush2.msra.mxu0 0.0
    %2545 = vmatprep.mubr.f32.mxu0 0.0
    %2546 = vmatmul.mubr.f32.gmra.mxu0 %v2479
    %v2547 = vpop.f32.mrf.mxu0
    %v2548 = vadd.f32 %v2015, %v2547
    %v2549 = vpop.f32.mrf.mxu0
    %2550 = vdwg.mxu0
    %v2551 = vxor.u32 %v2548, 2147483648
    %v2552 = vmul.f32 %v2551, 1.442695
    %v2553 = vpow.pop %v2552
    %v2554 = vadd.f32 %v2553, 1.0
    %v2555 = vrcp.pop %v2554
    %v2556 = vmul.f32 1.0, %v2555
    %v2557 = vtanh.pop %v2548
    %v2558 = vmul.f32 %v2556, %v2341
    %2560 = vrot.lane.b32.xlu0 %v2557, 64
    %v2561 = vpop.permute.xlu0 %2560
    %v2563 = vmul.f32 %v2556, %v2561
    %2565 = vrot.lane.b32.xlu0 %v2563, 32
    %v2566 = vpop.permute.xlu0 %2565
    %v2568 = vadd.f32 %v2558, %v2566
    %v2569 = vtanh.pop %v2568
    %2571 = vrot.lane.b32.xlu0 %v2569, 64
    %v2572 = vpop.permute.xlu0 %2571
    %v2574 = vmul.f32 %v2556, %v2572
    %v2577 = vunpack.c.l.s4 1966171168
    %v2578 = vunpack.c.0.s8 %v2577
    %v2579 = vlaneseq
    %v2580 = vshrl.u32 %v2579, 7
    %v2581 = vsub.s32 %v2578, %v2580
    %v2582 = vrot.slane %v2574, %v2581
    %v2583 = vcombine.high %v2582, %v2582
    %v2585 = vunpack.c.l.s4 1966171168
    %v2586 = vunpack.c.0.s8 %v2585
    %v2587 = vlaneseq
    %v2588 = vshrl.u32 %v2587, 7
    %v2589 = vsub.s32 %v2586, %v2588
    %v2590 = vrot.slane %v2582, %v2589
    %v2592 = vunpack.c.l.s4 1966171168
    %v2593 = vunpack.c.0.s8 %v2592
    %v2594 = vlaneseq
    %v2595 = vshrl.u32 %v2594, 7
    %v2596 = vsub.s32 %v2593, %v2595
    %v2597 = vrot.slane %v2583, %v2596
    %v2598 = vlaneseq
    %v2599 = vshrl.u32 %v2598, 7
    %v2600 = vsub.s32 0, %v2599
    %v2601 = vrot.slane %v2590, %v2600
    %v2602 = vlaneseq
    %v2603 = vshrl.u32 %v2602, 7
    %v2604 = vsub.s32 0, %v2603
    %v2605 = vrot.slane %v2597, %v2604
    %2606 = vrot.lane.b32.xlu0 %v2601, 32
    %v2607 = vpop.permute.xlu0 %2606
    %2608 = vrot.lane.b32.xlu0 %v2605, 32
    %v2609 = vpop.permute.xlu0 %2608
    %v2612 = vmul.f32 %v1996, %v2607
    %v2613 = vmul.f32 %v1997, %v2609
    %v2614 = vsel %vm2154, %v2612, 0.0
    %2615 = vadd.xlane.f32.xlu0 %v2614
    %v2616 = vpop.xlane.xlu0 %2615
    %v2617 = vsel %vm2154, %v2613, 0.0
    %2618 = vadd.xlane.f32.xlu0 %v2617
    %v2619 = vpop.xlane.xlu0 %2618
    %v2620 = vadd.f32 %v2616, %v2163
    %v2621 = vadd.f32 %v2619, %v2164
    %v2622 = vsel %vm2167, %v2620, -inf
    %v2623 = vrot.slane %v2622, 4
    %v2624 = vmax.f32 %v2622, %v2623
    %v2625 = vrot.slane %v2624, 2
    %v2626 = vmax.f32 %v2624, %v2625
    %v2627 = vrot.slane %v2626, 1
    %v2628 = vmax.f32 %v2626, %v2627
    %v2629 = vsel %vm2167, %v2621, -inf
    %v2630 = vrot.slane %v2629, 4
    %v2631 = vmax.f32 %v2629, %v2630
    %v2632 = vrot.slane %v2631, 2
    %v2633 = vmax.f32 %v2631, %v2632
    %v2634 = vrot.slane %v2633, 1
    %v2635 = vmax.f32 %v2633, %v2634
    %v2636 = vsub.f32 %v2620, %v2628
    %v2637 = vsub.f32 %v2621, %v2635
    %v2638 = vmul.f32 %v2636, 1.442695
    %v2639 = vpow.pop %v2638
    %v2640 = vmul.f32 %v2637, 1.442695
    %v2641 = vpow.pop %v2640
    %v2642 = vmul.f32 %v2639, %v62
    %v2643 = vmul.f32 %v2641, %v63
    %v2644 = vsel %vm2167, %v2642, 0.0
    %v2645 = vrot.slane %v2644, 4
    %v2646 = vadd.f32 %v2644, %v2645
    %v2647 = vrot.slane %v2646, 2
    %v2648 = vadd.f32 %v2646, %v2647
    %v2649 = vrot.slane %v2648, 1
    %v2650 = vadd.f32 %v2648, %v2649
    %v2651 = vsel %vm2167, %v2643, 0.0
    %v2652 = vrot.slane %v2651, 4
    %v2653 = vadd.f32 %v2651, %v2652
    %v2654 = vrot.slane %v2653, 2
    %v2655 = vadd.f32 %v2653, %v2654
    %v2656 = vrot.slane %v2655, 1
    %v2657 = vadd.f32 %v2655, %v2656
    %v2658 = vadd.f32 %v2650, 1e-09
    %v2659 = vadd.f32 %v2657, 1e-09
    %v2660 = vrcp.pop %v2658
    %v2661 = vrcp.pop %v2659
    %v2662 = vmul.f32 %v2642, %v2660
    %v2663 = vmul.f32 %v2643, %v2661
    %2665 = vset.pattern.permute.xlu0 0
    %2666 = vperm.xlu0 %2665, %v2662
    %v2667 = vpop.permute.xlu0 %2666
    %2670 = vset.pattern.permute.xlu0 0
    %2671 = vperm.xlu0 %2670, %v2663
    %v2672 = vpop.permute.xlu0 %2671
    %v2674 = vmul.f32 %v2667, %v1996
    %v2675 = vmul.f32 %v2672, %v1997
    %v2676 = vsel %vm2154, %v2674, 0.0
    %v2677 = vrot.slane %v2676, 4
    %v2678 = vadd.f32 %v2676, %v2677
    %v2679 = vrot.slane %v2678, 2
    %v2680 = vadd.f32 %v2678, %v2679
    %v2681 = vrot.slane %v2680, 1
    %v2682 = vadd.f32 %v2680, %v2681
    %v2683 = vsel %vm2154, %v2675, 0.0
    %v2684 = vrot.slane %v2683, 4
    %v2685 = vadd.f32 %v2683, %v2684
    %v2686 = vrot.slane %v2685, 2
    %v2687 = vadd.f32 %v2685, %v2686
    %v2688 = vrot.slane %v2687, 1
    %v2689 = vadd.f32 %v2687, %v2688
    %2690 = vrot.lane.b32.xlu0 %v2574, 32
    %v2691 = vpop.permute.xlu0 %2690
    %v2695 = vsel %vm1804, %v2689, %v2682
    %2696 = vrot.lane.b32.xlu0 %v2695, 32
    %v2697 = vpop.permute.xlu0 %2696
    %v2699 = vsel %vm2154, %v2691, %v2697
    %v2700 = vld [vmem:[%s16] sm:$0xff]
    %v2701 = vld [vmem:[%s16 + $0x8] sm:$0xff]
    %v2702 = vld [vmem:[%s16 + $0x10] sm:$0xff]
    %v2703 = vld [vmem:[%s16 + $0x18] sm:$0xff]
    %v2704 = vld [vmem:[%s16 + $0x20] sm:$0xff]
    %v2705 = vld [vmem:[%s16 + $0x28] sm:$0xff]
    %v2706 = vld [vmem:[%s16 + $0x30] sm:$0xff]
    %v2707 = vld [vmem:[%s16 + $0x38] sm:$0xff]
    %v2708 = vld [vmem:[%s17] sm:$0x1]
    %v2710 = vlaneseq
    %v2711 = vshrl.u32 %v2710, 7
    %v2712 = vsub.s32 0, %v2711
    %v2713 = vrot.slane %v2708, %v2712
    %vm2715 = vcmask 523264
    %v2717 = vsel %vm2715, %v2699, 0
    %2719 = vmatprep.subr.mxu0 0.0
    %2720 = vmatpush1.msra.mxu0 0.0
    %2721 = vmatprep.subr.mxu0 0.0
    %2722 = vmatpush1.msra.mxu0 0.0
    %2723 = vmatprep.subr.mxu0 0.0
    %2724 = vmatpush1.msra.mxu0 0.0
    %2725 = vmatprep.subr.mxu0 0.0
    %2726 = vmatpush1.msra.mxu0 0.0
    %2727 = vmatprep.subr.mxu0 0.0
    %2728 = vmatpush1.msra.mxu0 0.0
    %2729 = vmatprep.subr.mxu0 0.0
    %2730 = vmatpush1.msra.mxu0 0.0
    %2731 = vmatprep.subr.mxu0 0.0
    %2732 = vmatpush1.msra.mxu0 0.0
    %2733 = vmatprep.subr.mxu0 0.0
    %2734 = vmatpush1.msra.mxu0 0.0
    %2735 = vmatprep.subr.mxu0 0.0
    %2736 = vmatpush1.msra.mxu0 %v2707
    %2737 = vmatprep.subr.mxu0 0.0
    %2738 = vmatpush1.msra.mxu0 %v2706
    %2739 = vmatprep.subr.mxu0 0.0
    %2740 = vmatpush1.msra.mxu0 %v2705
    %2741 = vmatprep.subr.mxu0 0.0
    %2742 = vmatpush1.msra.mxu0 %v2704
    %2743 = vmatprep.subr.mxu0 0.0
    %2744 = vmatpush1.msra.mxu0 %v2703
    %2745 = vmatprep.subr.mxu0 0.0
    %2746 = vmatpush1.msra.mxu0 %v2702
    %2747 = vmatprep.subr.mxu0 0.0
    %2748 = vmatpush1.msra.mxu0 %v2701
    %2749 = vmatprep.subr.mxu0 0.0
    %2750 = vmatpush1.msra.mxu0 %v2700
    %2751 = vmatprep.subr.mxu0 0.0
    %2752 = vmatpush2.msra.mxu0 0.0
    %2753 = vmatprep.subr.mxu0 0.0
    %2754 = vmatpush2.msra.mxu0 0.0
    %2755 = vmatprep.subr.mxu0 0.0
    %2756 = vmatpush2.msra.mxu0 0.0
    %2757 = vmatprep.subr.mxu0 0.0
    %2758 = vmatpush2.msra.mxu0 0.0
    %2759 = vmatprep.subr.mxu0 0.0
    %2760 = vmatpush2.msra.mxu0 0.0
    %2761 = vmatprep.subr.mxu0 0.0
    %2762 = vmatpush2.msra.mxu0 0.0
    %2763 = vmatprep.subr.mxu0 0.0
    %2764 = vmatpush2.msra.mxu0 0.0
    %2765 = vmatprep.subr.mxu0 0.0
    %2766 = vmatpush2.msra.mxu0 0.0
    %2767 = vmatprep.subr.mxu0 0.0
    %2768 = vmatpush2.msra.mxu0 0.0
    %2769 = vmatprep.subr.mxu0 0.0
    %2770 = vmatpush2.msra.mxu0 0.0
    %2771 = vmatprep.subr.mxu0 0.0
    %2772 = vmatpush2.msra.mxu0 0.0
    %2773 = vmatprep.subr.mxu0 0.0
    %2774 = vmatpush2.msra.mxu0 0.0
    %2775 = vmatprep.subr.mxu0 0.0
    %2776 = vmatpush2.msra.mxu0 0.0
    %2777 = vmatprep.subr.mxu0 0.0
    %2778 = vmatpush2.msra.mxu0 0.0
    %2779 = vmatprep.subr.mxu0 0.0
    %2780 = vmatpush2.msra.mxu0 0.0
    %2781 = vmatprep.subr.mxu0 0.0
    %2782 = vmatpush2.msra.mxu0 0.0
    %2783 = vmatprep.mubr.f32.mxu0 0.0
    %2784 = vmatmul.mubr.f32.gmra.mxu0 %v2717
    %v2785 = vpop.f32.mrf.mxu0
    %v2786 = vadd.f32 %v2713, %v2785
    %v2787 = vpop.f32.mrf.mxu0
    %2788 = vdwg.mxu0
    %vm2789 = vcmask 91136
    %2790 = vst.msk [vmem:[#allocation2] sm:$0x3] %vm2789, %v2786
    // Predicated region
    $region74: #{mol_graph_forward.1} parent=1 // pred_check
      _
    $region75: #{mol_graph_forward.1} parent=1 // pred_check_branch
      %2792 = sbr.rel (0) target = $region77
    $region76: #{mol_graph_forward.1} parent=1 // pred_region
      %s2794 = ssub.s32 32, 32
      %2795 = vsyncadd [#allocation3], %s2794
      %s2797 = sshll.u32 [#allocation2], 4
      %s2798 = int_to_ptr.vmem [resolvable:$true] %s2797
      %2800 = dma.vmem_to_hbm [thread:$0]  %s2798, 32, %s18, [#allocation3]
    $region77: #{mol_graph_forward.1} parent=1 // pred_fallthru
      _
    // Predicated region
    $region78: #{mol_graph_forward.1} parent=1 // pred_check
      _
    $region79: #{mol_graph_forward.1} parent=1 // pred_check_branch
      %2802 = sbr.rel (0) target = $region81
    $region80: #{mol_graph_forward.1} parent=1 // pred_region
      %2803 = dma.done [#allocation3], 32
    $region81: #{mol_graph_forward.1} parent=1 // pred_fallthru
      _
    %2804 = vsyncpa [#allocation3], 1

</llo_original>
